<compile_context>
chip_gen: v5e
topology: v5e:2x2
jax: 0.10.0
libtpu: 0.0.40
codegen_flags: <defaults>
</compile_context>

<pallas_src>
import jax
import jax.numpy as jnp
from jax.experimental import pallas as pl
from jax.experimental.pallas import tpu as pltpu


def _round_up(v, m):
    return ((v + m - 1) // m) * m


def _largest_divisor_tile(dim, max_tile, mult):
    """Largest multiple of `mult` that divides `dim` and is <= `max_tile`.

    Returns `dim` itself when dim <= max_tile (a full-extent block has no
    divisibility constraint).  Returns None if no such tile exists.
    """
    if dim <= max_tile:
        return dim
    t = (max_tile // mult) * mult
    while t >= mult:
        if dim % t == 0:
            return t
        t -= mult
    return None


def _padded_vmem_bytes(rows, cols, dtype):
    """Bytes of one VMEM buffer holding a (rows, cols) tile (sublane/lane padded)."""
    it = jnp.dtype(dtype).itemsize
    sub = max(8, 32 // it)  # f32: 8, bf16: 16, int8/fp8: 32 sublanes per vreg row
    return _round_up(max(rows, 1), sub) * _round_up(max(cols, 1), 128) * it


def conv2d_1x1(
    x_nchw,
    w_oihw,
    *,
    tm=None,                          # Cout tile override (multiple of 8)
    tk=None,                          # Cin  tile override (multiple of 128 or full Cin)
    x_block_budget=4 * 1024 * 1024,   # per-buffer budget for the (tk, N*M) x block
    w_block_budget=15 * 1024 * 1024,  # per-buffer budget for the (tm, tk) w block -> tm=928 for the module
):
    """1x1 conv, stride 1, no bias. x: (N, Cin, H, W); w: (Cout, Cin, 1, 1)."""
    N, Cin, H, W = x_nchw.shape
    Cout, Cin_w, kh, kw = w_oihw.shape
    assert (kh, kw) == (1, 1) and Cin_w == Cin

    M = H * W
    NM = N * M
    out_dtype = x_nchw.dtype
    x_itemsize = jnp.dtype(x_nchw.dtype).itemsize
    w_itemsize = jnp.dtype(w_oihw.dtype).itemsize
    nm_lanes = _round_up(max(NM, 1), 128)  # lane-padded width, for VMEM sizing only

    # Fold batch into the lane axis: (N, Cin, M) -> (Cin, N, M) -> (Cin, N*M).
    # For N == 1 this is a free reshape; for N > 1 a tiny activation transpose.
    x2 = jnp.moveaxis(x_nchw.reshape(N, Cin, M), 1, 0).reshape(Cin, NM)
    w2 = w_oihw.reshape(Cout, Cin)

    # ---- K (Cin) tile: collapse to a single K step whenever the x block fits.
    if tk is None:
        if Cin * nm_lanes * x_itemsize <= x_block_budget:
            tk = Cin
        else:
            max_tk = max(128, (x_block_budget // (nm_lanes * x_itemsize)) // 128 * 128)
            tk = _largest_divisor_tile(Cin, max_tk, 128)
            if tk is None:
                tk = min(max_tk, 512)
    if Cin % tk != 0:
        # Correctness-only fallback (pads the big weight in HBM); the divisor-
        # preferring tile selection above avoids this for sensible shapes.
        cin_p = _round_up(Cin, tk)
        x2 = jnp.pad(x2, ((0, cin_p - Cin), (0, 0)))
        w2 = jnp.pad(w2, ((0, 0), (0, cin_p - Cin)))
        Cin = cin_p

    # ---- Cout tile: weight slab (tm, tk) sized to the budget; Pallas double-
    # buffers it so the weight streams from HBM back-to-back.
    if tm is None:
        max_tm = max(8, (w_block_budget // (tk * w_itemsize)) // 8 * 8)
        tm = _largest_divisor_tile(Cout, max_tm, 8)
        if tm is None:
            tm = min(max_tm, 512)
    cout_p = _round_up(Cout, tm)
    if cout_p != Cout:
        # Last-resort correctness path only (materializes a padded weight copy).
        w2 = jnp.pad(w2, ((0, cout_p - Cout), (0, 0)))

    n_i = cout_p // tm
    n_k = Cin // tk
    grid = (n_i, n_k)

    # f32 inputs: HIGHEST precision (multi-pass MXU) is free — kernel is HBM-bound.
    f32_inputs = (jnp.dtype(x_nchw.dtype) == jnp.float32
                  and jnp.dtype(w_oihw.dtype) == jnp.float32)
    prec = jax.lax.Precision.HIGHEST if f32_inputs else jax.lax.Precision.DEFAULT

    out_is_f32 = jnp.dtype(out_dtype) == jnp.float32

    if n_k == 1:
        # Single K step: no accumulator, no init/finalize branches.
        def kernel(w_ref, x_ref, o_ref):
            o_ref[...] = jnp.dot(
                w_ref[...], x_ref[...],
                preferred_element_type=jnp.float32, precision=prec,
            ).astype(o_ref.dtype)

        scratch_shapes = []
    elif out_is_f32:
        # K-tiled: accumulate directly into the resident f32 output block.
        def kernel(w_ref, x_ref, o_ref):
            k = pl.program_id(1)

            @pl.when(k == 0)
            def _():
                o_ref[...] = jnp.zeros_like(o_ref)

            o_ref[...] += jnp.dot(
                w_ref[...], x_ref[...],
                preferred_element_type=jnp.float32, precision=prec,
            )

        scratch_shapes = []
    else:
        # Narrow output dtype: keep a separate f32 accumulator.
        def kernel(w_ref, x_ref, o_ref, acc_ref):
            k = pl.program_id(1)

            @pl.when(k == 0)
            def _():
                acc_ref[...] = jnp.zeros_like(acc_ref)

            acc_ref[...] += jnp.dot(
                w_ref[...], x_ref[...],
                preferred_element_type=jnp.float32, precision=prec,
            )

            @pl.when(k == pl.num_programs(1) - 1)
            def _():
                o_ref[...] = acc_ref[...].astype(o_ref.dtype)

        scratch_shapes = [pltpu.VMEM((tm, NM), jnp.float32)]

    # Explicit VMEM limit derived from the actual (padded, double-buffered) tiles
    # so the chosen tiles are honored on every generation's default scoped VMEM.
    vmem_bytes = (
        2 * _padded_vmem_bytes(tm, tk, w2.dtype)       # weight double buffer
        + 2 * _padded_vmem_bytes(tk, NM, x2.dtype)     # activation double buffer
        + 2 * _padded_vmem_bytes(tm, NM, out_dtype)    # output double buffer
    )
    if scratch_shapes:
        vmem_bytes += _padded_vmem_bytes(tm, NM, jnp.float32)
    vmem_limit = int(vmem_bytes * 1.25) + (2 << 20)    # headroom for internal scratch

    cost = pl.CostEstimate(
        flops=int(2 * cout_p * Cin * NM),
        transcendentals=0,
        bytes_accessed=int(
            w2.size * jnp.dtype(w2.dtype).itemsize
            + x2.size * jnp.dtype(x2.dtype).itemsize
            + cout_p * NM * jnp.dtype(out_dtype).itemsize
        ),
    )

    out2 = pl.pallas_call(
        kernel,
        out_shape=jax.ShapeDtypeStruct((cout_p, NM), out_dtype),
        grid_spec=pltpu.PrefetchScalarGridSpec(
            num_scalar_prefetch=0,
            grid=grid,
            in_specs=[
                # Weight slab (tm, tk): each (i, k) tile is read exactly once.
                pl.BlockSpec((tm, tk), lambda i, k: (i, k)),
                # Activation block (tk, N*M): index independent of i, so it is
                # not re-DMAed across Cout tiles.
                pl.BlockSpec((tk, NM), lambda i, k: (k, 0)),
            ],
            out_specs=pl.BlockSpec((tm, NM), lambda i, k: (i, 0)),
            scratch_shapes=scratch_shapes,
        ),
        compiler_params=pltpu.CompilerParams(
            # Cout tiles are the leading parallel axis -> 2 TCs (v7x) each stream
            # a disjoint half of the weight; K (reduction) stays innermost.
            dimension_semantics=("parallel", "arbitrary"),
            vmem_limit_bytes=vmem_limit,
        ),
        cost_estimate=cost,
    )(w2, x2)

    if cout_p != Cout:
        out2 = out2[:Cout, :]
    # (Cout, N*M) -> (N, Cout, H, W); free for N == 1.
    return jnp.moveaxis(out2.reshape(Cout, N, M), 1, 0).reshape(N, Cout, H, W)


if __name__ == "__main__":
    key = jax.random.PRNGKey(0)
    kx, kw, kx2 = jax.random.split(key, 3)

    # Small shapes consistent with the module (Conv2d(3712, 3712, 1x1) on
    # (1, 3712, 7, 7)): 1x1 conv, Cin == Cout, 7x7 spatial, scaled-down channels.
    N, C, H, W = 1, 384, 7, 7
    x = jax.random.normal(kx, (N, C, H, W), dtype=jnp.float32)
    weight = jax.random.normal(kw, (C, C, 1, 1), dtype=jnp.float32) * 0.02

    ref = jnp.einsum(
        "oc,nchw->nohw", weight[:, :, 0, 0], x,
        precision=jax.lax.Precision.HIGHEST,
    )

    # Default path: single K step, weight streamed once, direct write to o_ref.
    out = jax.block_until_ready(conv2d_1x1(x, weight))
    assert out.shape == (N, C, H, W)
    assert jnp.allclose(out, ref, atol=1e-3, rtol=1e-3)

    # Batched input: batch is folded into the lane axis; weight still streamed once.
    Nb = 2
    xb = jax.random.normal(kx2, (Nb, C, H, W), dtype=jnp.float32)
    refb = jnp.einsum(
        "oc,nchw->nohw", weight[:, :, 0, 0], xb,
        precision=jax.lax.Precision.HIGHEST,
    )
    outb = jax.block_until_ready(conv2d_1x1(xb, weight))
    assert outb.shape == (Nb, C, H, W)
    assert jnp.allclose(outb, refb, atol=1e-3, rtol=1e-3)

    # Forced small tiles: exercises the Cout-tiled, K-accumulating path.
    out2 = jax.block_until_ready(conv2d_1x1(x, weight, tm=128, tk=128))
    assert jnp.allclose(out2, ref, atol=1e-3, rtol=1e-3)

    print("KERNEL_OK")
</pallas_src>

<mosaic_0001>
module attributes {stable_mosaic.version = 11 : i64} {
  func.func @kernel(%arg0: i32, %arg1: i32, %arg2: memref<384x384xf32, #tpu.memory_space<vmem>>, %arg3: memref<384x49xf32, #tpu.memory_space<vmem>>, %arg4: memref<384x49xf32, #tpu.memory_space<vmem>>) attributes {dimension_semantics = [#tpu.dimension_semantics<parallel>, #tpu.dimension_semantics<arbitrary>], iteration_bounds = array<i64: 1, 1>, scalar_prefetch = 0 : i64, scratch_operands = 0 : i64, tpu.core_type = #tpu.core_type<tc>, window_params = [{transform_indices = @transform_0, window_bounds = array<i64: 384, 384>}, {transform_indices = @transform_1, window_bounds = array<i64: 384, 49>}, {transform_indices = @transform_2, window_bounds = array<i64: 384, 49>}]} {
    %c0 = arith.constant 0 : index
    %c0_0 = arith.constant 0 : index
    %0 = vector.load %arg2[%c0, %c0_0] : memref<384x384xf32, #tpu.memory_space<vmem>>, vector<384x384xf32>
    %c0_1 = arith.constant 0 : index
    %c0_2 = arith.constant 0 : index
    %1 = vector.load %arg3[%c0_1, %c0_2] : memref<384x49xf32, #tpu.memory_space<vmem>>, vector<384x49xf32>
    %cst = arith.constant dense<0.000000e+00> : vector<384x49xf32>
    %2 = tpu.matmul %0, %1, %cst {dimension_numbers = #tpu.dot_dimension_numbers<[1], [0], [0], [1], [0, 0, 1, 1], [], []>, precision = #tpu.contract_precision<fp32>} : vector<384x384xf32>, vector<384x49xf32>, vector<384x49xf32> -> vector<384x49xf32>
    %c0_3 = arith.constant 0 : index
    %c0_4 = arith.constant 0 : index
    %3 = vector.load %arg4[%c0_3, %c0_4] : memref<384x49xf32, #tpu.memory_space<vmem>>, vector<384x49xf32>
    tpu.vector_store %arg4[%c0_3, %c0_4], %2 {strides = array<i32>} : memref<384x49xf32, #tpu.memory_space<vmem>>, vector<384x49xf32>,
    return
  }
  func.func @transform_0(%arg0: i32, %arg1: i32) -> (i32, i32) {
    %c0_i32 = arith.constant 0 : i32
    return %arg0, %arg1 : i32, i32
  }
  func.func @transform_1(%arg0: i32, %arg1: i32) -> (i32, i32) {
    %c0_i32 = arith.constant 0 : i32
    %c0_i32_0 = arith.constant 0 : i32
    return %arg1, %c0_i32 : i32, i32
  }
  func.func @transform_2(%arg0: i32, %arg1: i32) -> (i32, i32) {
    %c0_i32 = arith.constant 0 : i32
    %c0_i32_0 = arith.constant 0 : i32
    return %arg0, %c0_i32 : i32, i32
  }
}

</mosaic_0001>

<llo_original>
// kernel: tpu_custom_call.1
$region0: #{tpu_custom_call.1}
  #allocation0 [shape = 'u32[]', space=smem, size = 0x4, offset = 0x4, fixed_abs, tag = 'smem constant byte address 0x4 - core index']
  #allocation1 [shape = 'u32[72,128]{1,0:T(1,128)}', space=vmem, size = 0x9000, scoped, tag = 'internal scratch']
  %s0 = inlined_call_operand.hbm [shape: f32[384,384], index: 0, kind: input, shape index: {}]
  %s1 = inlined_call_operand.vmem [shape: f32[384,49], index: 1, kind: input, shape index: {}]
  %s2 = inlined_call_operand.vmem [shape: f32[384,49], index: 2, kind: output, shape index: {}]
  %s3 = sld [smem:[#allocation0]]
  $region22: #{tpu_custom_call.1} parent=0
    _
  %s5 = ssub.s32 1, %s3
  %s6 = scalar_select 0, %s5, %s3
  $region1: #{tpu_custom_call.1} parent=0
    #allocation2 [shape = 'u8[589824]{0}', space=vmem, size = 0x90000, scoped, tag = 'input window, operand 0, single buffered']
    #allocation3 [shape = 's32[1]{0}', space=sflag, size = 0x4, scoped, tag = 'scoped memory for tpu_custom_call.1']
    %7 = vsyncpa [#allocation3], 0
    // Predicated region
    $region2: #{tpu_custom_call.1} parent=1 // pred_check
      _
    $region3: #{tpu_custom_call.1} parent=1 // pred_check_branch
      %9 = sbr.rel (0) target = $region5
    $region4: #{tpu_custom_call.1} parent=1 // pred_region
      %11 = vsyncadd [#allocation3], 0
      %s12 = sshll.u32 %s0, 4
      %s13 = int_to_ptr.hbm [resolvable:$true] %s12
      %s14 = sshll.u32 [#allocation2], 4
      %s15 = int_to_ptr.vmem [resolvable:$true] %s14
      %20 = dma.hbm_to_vmem [thread:$0]  %s13, 18432, %s15, [#allocation3], 384, 384, 24
    $region5: #{tpu_custom_call.1} parent=1 // pred_fallthru
      _
    // Predicated region
    $region6: #{tpu_custom_call.1} parent=1 // pred_check
      _
    $region7: #{tpu_custom_call.1} parent=1 // pred_check_branch
      %22 = sbr.rel (0) target = $region9
    $region8: #{tpu_custom_call.1} parent=1 // pred_region
      _
    $region9: #{tpu_custom_call.1} parent=1 // pred_fallthru
      _
    // Predicated region
    $region10: #{tpu_custom_call.1} parent=1 // pred_check
      _
    $region11: #{tpu_custom_call.1} parent=1 // pred_check_branch
      %24 = sbr.rel (0) target = $region13
    $region12: #{tpu_custom_call.1} parent=1 // pred_region
      %26 = dma.done [#allocation3], 18432
    $region13: #{tpu_custom_call.1} parent=1 // pred_fallthru
      _
    %v27 = vld [vmem:[#allocation2] sm:$0xff]
    %v28 = vld [vmem:[#allocation2 + $0x8] sm:$0xff]
    %v29 = vld [vmem:[#allocation2 + $0x10] sm:$0xff]
    %v30 = vld [vmem:[#allocation2 + $0x18] sm:$0xff]
    %v31 = vld [vmem:[#allocation2 + $0x20] sm:$0xff]
    %v32 = vld [vmem:[#allocation2 + $0x28] sm:$0xff]
    %v33 = vld [vmem:[#allocation2 + $0x30] sm:$0xff]
    %v34 = vld [vmem:[#allocation2 + $0x38] sm:$0xff]
    %v35 = vld [vmem:[#allocation2 + $0x40] sm:$0xff]
    %v36 = vld [vmem:[#allocation2 + $0x48] sm:$0xff]
    %v37 = vld [vmem:[#allocation2 + $0x50] sm:$0xff]
    %v38 = vld [vmem:[#allocation2 + $0x58] sm:$0xff]
    %v39 = vld [vmem:[#allocation2 + $0x60] sm:$0xff]
    %v40 = vld [vmem:[#allocation2 + $0x68] sm:$0xff]
    %v41 = vld [vmem:[#allocation2 + $0x70] sm:$0xff]
    %v42 = vld [vmem:[#allocation2 + $0x78] sm:$0xff]
    %v43 = vld [vmem:[#allocation2 + $0x80] sm:$0xff]
    %v44 = vld [vmem:[#allocation2 + $0x88] sm:$0xff]
    %v45 = vld [vmem:[#allocation2 + $0x90] sm:$0xff]
    %v46 = vld [vmem:[#allocation2 + $0x98] sm:$0xff]
    %v47 = vld [vmem:[#allocation2 + $0xa0] sm:$0xff]
    %v48 = vld [vmem:[#allocation2 + $0xa8] sm:$0xff]
    %v49 = vld [vmem:[#allocation2 + $0xb0] sm:$0xff]
    %v50 = vld [vmem:[#allocation2 + $0xb8] sm:$0xff]
    %v51 = vld [vmem:[#allocation2 + $0xc0] sm:$0xff]
    %v52 = vld [vmem:[#allocation2 + $0xc8] sm:$0xff]
    %v53 = vld [vmem:[#allocation2 + $0xd0] sm:$0xff]
    %v54 = vld [vmem:[#allocation2 + $0xd8] sm:$0xff]
    %v55 = vld [vmem:[#allocation2 + $0xe0] sm:$0xff]
    %v56 = vld [vmem:[#allocation2 + $0xe8] sm:$0xff]
    %v57 = vld [vmem:[#allocation2 + $0xf0] sm:$0xff]
    %v58 = vld [vmem:[#allocation2 + $0xf8] sm:$0xff]
    %v59 = vld [vmem:[#allocation2 + $0x100] sm:$0xff]
    %v60 = vld [vmem:[#allocation2 + $0x108] sm:$0xff]
    %v61 = vld [vmem:[#allocation2 + $0x110] sm:$0xff]
    %v62 = vld [vmem:[#allocation2 + $0x118] sm:$0xff]
    %v63 = vld [vmem:[#allocation2 + $0x120] sm:$0xff]
    %v64 = vld [vmem:[#allocation2 + $0x128] sm:$0xff]
    %v65 = vld [vmem:[#allocation2 + $0x130] sm:$0xff]
    %v66 = vld [vmem:[#allocation2 + $0x138] sm:$0xff]
    %v67 = vld [vmem:[#allocation2 + $0x140] sm:$0xff]
    %v68 = vld [vmem:[#allocation2 + $0x148] sm:$0xff]
    %v69 = vld [vmem:[#allocation2 + $0x150] sm:$0xff]
    %v70 = vld [vmem:[#allocation2 + $0x158] sm:$0xff]
    %v71 = vld [vmem:[#allocation2 + $0x160] sm:$0xff]
    %v72 = vld [vmem:[#allocation2 + $0x168] sm:$0xff]
    %v73 = vld [vmem:[#allocation2 + $0x170] sm:$0xff]
    %v74 = vld [vmem:[#allocation2 + $0x178] sm:$0xff]
    %v75 = vld [vmem:[#allocation2 + $0x180] sm:$0xff]
    %v76 = vld [vmem:[#allocation2 + $0x188] sm:$0xff]
    %v77 = vld [vmem:[#allocation2 + $0x190] sm:$0xff]
    %v78 = vld [vmem:[#allocation2 + $0x198] sm:$0xff]
    %v79 = vld [vmem:[#allocation2 + $0x1a0] sm:$0xff]
    %v80 = vld [vmem:[#allocation2 + $0x1a8] sm:$0xff]
    %v81 = vld [vmem:[#allocation2 + $0x1b0] sm:$0xff]
    %v82 = vld [vmem:[#allocation2 + $0x1b8] sm:$0xff]
    %v83 = vld [vmem:[#allocation2 + $0x1c0] sm:$0xff]
    %v84 = vld [vmem:[#allocation2 + $0x1c8] sm:$0xff]
    %v85 = vld [vmem:[#allocation2 + $0x1d0] sm:$0xff]
    %v86 = vld [vmem:[#allocation2 + $0x1d8] sm:$0xff]
    %v87 = vld [vmem:[#allocation2 + $0x1e0] sm:$0xff]
    %v88 = vld [vmem:[#allocation2 + $0x1e8] sm:$0xff]
    %v89 = vld [vmem:[#allocation2 + $0x1f0] sm:$0xff]
    %v90 = vld [vmem:[#allocation2 + $0x1f8] sm:$0xff]
    %v91 = vld [vmem:[#allocation2 + $0x200] sm:$0xff]
    %v92 = vld [vmem:[#allocation2 + $0x208] sm:$0xff]
    %v93 = vld [vmem:[#allocation2 + $0x210] sm:$0xff]
    %v94 = vld [vmem:[#allocation2 + $0x218] sm:$0xff]
    %v95 = vld [vmem:[#allocation2 + $0x220] sm:$0xff]
    %v96 = vld [vmem:[#allocation2 + $0x228] sm:$0xff]
    %v97 = vld [vmem:[#allocation2 + $0x230] sm:$0xff]
    %v98 = vld [vmem:[#allocation2 + $0x238] sm:$0xff]
    %v99 = vld [vmem:[#allocation2 + $0x240] sm:$0xff]
    %v100 = vld [vmem:[#allocation2 + $0x248] sm:$0xff]
    %v101 = vld [vmem:[#allocation2 + $0x250] sm:$0xff]
    %v102 = vld [vmem:[#allocation2 + $0x258] sm:$0xff]
    %v103 = vld [vmem:[#allocation2 + $0x260] sm:$0xff]
    %v104 = vld [vmem:[#allocation2 + $0x268] sm:$0xff]
    %v105 = vld [vmem:[#allocation2 + $0x270] sm:$0xff]
    %v106 = vld [vmem:[#allocation2 + $0x278] sm:$0xff]
    %v107 = vld [vmem:[#allocation2 + $0x280] sm:$0xff]
    %v108 = vld [vmem:[#allocation2 + $0x288] sm:$0xff]
    %v109 = vld [vmem:[#allocation2 + $0x290] sm:$0xff]
    %v110 = vld [vmem:[#allocation2 + $0x298] sm:$0xff]
    %v111 = vld [vmem:[#allocation2 + $0x2a0] sm:$0xff]
    %v112 = vld [vmem:[#allocation2 + $0x2a8] sm:$0xff]
    %v113 = vld [vmem:[#allocation2 + $0x2b0] sm:$0xff]
    %v114 = vld [vmem:[#allocation2 + $0x2b8] sm:$0xff]
    %v115 = vld [vmem:[#allocation2 + $0x2c0] sm:$0xff]
    %v116 = vld [vmem:[#allocation2 + $0x2c8] sm:$0xff]
    %v117 = vld [vmem:[#allocation2 + $0x2d0] sm:$0xff]
    %v118 = vld [vmem:[#allocation2 + $0x2d8] sm:$0xff]
    %v119 = vld [vmem:[#allocation2 + $0x2e0] sm:$0xff]
    %v120 = vld [vmem:[#allocation2 + $0x2e8] sm:$0xff]
    %v121 = vld [vmem:[#allocation2 + $0x2f0] sm:$0xff]
    %v122 = vld [vmem:[#allocation2 + $0x2f8] sm:$0xff]
    %v123 = vld [vmem:[#allocation2 + $0x300] sm:$0xff]
    %v124 = vld [vmem:[#allocation2 + $0x308] sm:$0xff]
    %v125 = vld [vmem:[#allocation2 + $0x310] sm:$0xff]
    %v126 = vld [vmem:[#allocation2 + $0x318] sm:$0xff]
    %v127 = vld [vmem:[#allocation2 + $0x320] sm:$0xff]
    %v128 = vld [vmem:[#allocation2 + $0x328] sm:$0xff]
    %v129 = vld [vmem:[#allocation2 + $0x330] sm:$0xff]
    %v130 = vld [vmem:[#allocation2 + $0x338] sm:$0xff]
    %v131 = vld [vmem:[#allocation2 + $0x340] sm:$0xff]
    %v132 = vld [vmem:[#allocation2 + $0x348] sm:$0xff]
    %v133 = vld [vmem:[#allocation2 + $0x350] sm:$0xff]
    %v134 = vld [vmem:[#allocation2 + $0x358] sm:$0xff]
    %v135 = vld [vmem:[#allocation2 + $0x360] sm:$0xff]
    %v136 = vld [vmem:[#allocation2 + $0x368] sm:$0xff]
    %v137 = vld [vmem:[#allocation2 + $0x370] sm:$0xff]
    %v138 = vld [vmem:[#allocation2 + $0x378] sm:$0xff]
    %v139 = vld [vmem:[#allocation2 + $0x380] sm:$0xff]
    %v140 = vld [vmem:[#allocation2 + $0x388] sm:$0xff]
    %v141 = vld [vmem:[#allocation2 + $0x390] sm:$0xff]
    %v142 = vld [vmem:[#allocation2 + $0x398] sm:$0xff]
    %v143 = vld [vmem:[#allocation2 + $0x3a0] sm:$0xff]
    %v144 = vld [vmem:[#allocation2 + $0x3a8] sm:$0xff]
    %v145 = vld [vmem:[#allocation2 + $0x3b0] sm:$0xff]
    %v146 = vld [vmem:[#allocation2 + $0x3b8] sm:$0xff]
    %v147 = vld [vmem:[#allocation2 + $0x3c0] sm:$0xff]
    %v148 = vld [vmem:[#allocation2 + $0x3c8] sm:$0xff]
    %v149 = vld [vmem:[#allocation2 + $0x3d0] sm:$0xff]
    %v150 = vld [vmem:[#allocation2 + $0x3d8] sm:$0xff]
    %v151 = vld [vmem:[#allocation2 + $0x3e0] sm:$0xff]
    %v152 = vld [vmem:[#allocation2 + $0x3e8] sm:$0xff]
    %v153 = vld [vmem:[#allocation2 + $0x3f0] sm:$0xff]
    %v154 = vld [vmem:[#allocation2 + $0x3f8] sm:$0xff]
    %v155 = vld [vmem:[#allocation2 + $0x400] sm:$0xff]
    %v156 = vld [vmem:[#allocation2 + $0x408] sm:$0xff]
    %v157 = vld [vmem:[#allocation2 + $0x410] sm:$0xff]
    %v158 = vld [vmem:[#allocation2 + $0x418] sm:$0xff]
    %v159 = vld [vmem:[#allocation2 + $0x420] sm:$0xff]
    %v160 = vld [vmem:[#allocation2 + $0x428] sm:$0xff]
    %v161 = vld [vmem:[#allocation2 + $0x430] sm:$0xff]
    %v162 = vld [vmem:[#allocation2 + $0x438] sm:$0xff]
    %v163 = vld [vmem:[#allocation2 + $0x440] sm:$0xff]
    %v164 = vld [vmem:[#allocation2 + $0x448] sm:$0xff]
    %v165 = vld [vmem:[#allocation2 + $0x450] sm:$0xff]
    %v166 = vld [vmem:[#allocation2 + $0x458] sm:$0xff]
    %v167 = vld [vmem:[#allocation2 + $0x460] sm:$0xff]
    %v168 = vld [vmem:[#allocation2 + $0x468] sm:$0xff]
    %v169 = vld [vmem:[#allocation2 + $0x470] sm:$0xff]
    %v170 = vld [vmem:[#allocation2 + $0x478] sm:$0xff]
    %v171 = vld [vmem:[%s1] sm:$0xff]
    %v172 = vld [vmem:[%s1 + $0x8] sm:$0xff]
    %v173 = vld [vmem:[%s1 + $0x10] sm:$0xff]
    %v174 = vld [vmem:[%s1 + $0x18] sm:$0xff]
    %v175 = vld [vmem:[%s1 + $0x20] sm:$0xff]
    %v176 = vld [vmem:[%s1 + $0x28] sm:$0xff]
    %v177 = vld [vmem:[%s1 + $0x30] sm:$0xff]
    %v178 = vld [vmem:[%s1 + $0x38] sm:$0xff]
    %v179 = vld [vmem:[%s1 + $0x40] sm:$0xff]
    %v180 = vld [vmem:[%s1 + $0x48] sm:$0xff]
    %v181 = vld [vmem:[%s1 + $0x50] sm:$0xff]
    %v182 = vld [vmem:[%s1 + $0x58] sm:$0xff]
    %v183 = vld [vmem:[%s1 + $0x60] sm:$0xff]
    %v184 = vld [vmem:[%s1 + $0x68] sm:$0xff]
    %v185 = vld [vmem:[%s1 + $0x70] sm:$0xff]
    %v186 = vld [vmem:[%s1 + $0x78] sm:$0xff]
    %v187 = vld [vmem:[%s1 + $0x80] sm:$0xff]
    %v188 = vld [vmem:[%s1 + $0x88] sm:$0xff]
    %v189 = vld [vmem:[%s1 + $0x90] sm:$0xff]
    %v190 = vld [vmem:[%s1 + $0x98] sm:$0xff]
    %v191 = vld [vmem:[%s1 + $0xa0] sm:$0xff]
    %v192 = vld [vmem:[%s1 + $0xa8] sm:$0xff]
    %v193 = vld [vmem:[%s1 + $0xb0] sm:$0xff]
    %v194 = vld [vmem:[%s1 + $0xb8] sm:$0xff]
    %v195 = vld [vmem:[%s1 + $0xc0] sm:$0xff]
    %v196 = vld [vmem:[%s1 + $0xc8] sm:$0xff]
    %v197 = vld [vmem:[%s1 + $0xd0] sm:$0xff]
    %v198 = vld [vmem:[%s1 + $0xd8] sm:$0xff]
    %v199 = vld [vmem:[%s1 + $0xe0] sm:$0xff]
    %v200 = vld [vmem:[%s1 + $0xe8] sm:$0xff]
    %v201 = vld [vmem:[%s1 + $0xf0] sm:$0xff]
    %v202 = vld [vmem:[%s1 + $0xf8] sm:$0xff]
    %v203 = vld [vmem:[%s1 + $0x100] sm:$0xff]
    %v204 = vld [vmem:[%s1 + $0x108] sm:$0xff]
    %v205 = vld [vmem:[%s1 + $0x110] sm:$0xff]
    %v206 = vld [vmem:[%s1 + $0x118] sm:$0xff]
    %v207 = vld [vmem:[%s1 + $0x120] sm:$0xff]
    %v208 = vld [vmem:[%s1 + $0x128] sm:$0xff]
    %v209 = vld [vmem:[%s1 + $0x130] sm:$0xff]
    %v210 = vld [vmem:[%s1 + $0x138] sm:$0xff]
    %v211 = vld [vmem:[%s1 + $0x140] sm:$0xff]
    %v212 = vld [vmem:[%s1 + $0x148] sm:$0xff]
    %v213 = vld [vmem:[%s1 + $0x150] sm:$0xff]
    %v214 = vld [vmem:[%s1 + $0x158] sm:$0xff]
    %v215 = vld [vmem:[%s1 + $0x160] sm:$0xff]
    %v216 = vld [vmem:[%s1 + $0x168] sm:$0xff]
    %v217 = vld [vmem:[%s1 + $0x170] sm:$0xff]
    %v218 = vld [vmem:[%s1 + $0x178] sm:$0xff]
    %v219 = vand.u32 %v186, 4294901760
    %220 = vmatpush.msra.mxu0 %v219
    %v221 = vand.u32 %v185, 4294901760
    %222 = vmatpush.msra.mxu0 %v221
    %v223 = vand.u32 %v184, 4294901760
    %224 = vmatpush.msra.mxu0 %v223
    %v225 = vand.u32 %v183, 4294901760
    %226 = vmatpush.msra.mxu0 %v225
    %v227 = vand.u32 %v182, 4294901760
    %228 = vmatpush.msra.mxu0 %v227
    %v229 = vand.u32 %v181, 4294901760
    %230 = vmatpush.msra.mxu0 %v229
    %v231 = vand.u32 %v180, 4294901760
    %232 = vmatpush.msra.mxu0 %v231
    %v233 = vand.u32 %v179, 4294901760
    %234 = vmatpush.msra.mxu0 %v233
    %v235 = vand.u32 %v178, 4294901760
    %236 = vmatpush.msra.mxu0 %v235
    %v237 = vand.u32 %v177, 4294901760
    %238 = vmatpush.msra.mxu0 %v237
    %v239 = vand.u32 %v176, 4294901760
    %240 = vmatpush.msra.mxu0 %v239
    %v241 = vand.u32 %v175, 4294901760
    %242 = vmatpush.msra.mxu0 %v241
    %v243 = vand.u32 %v174, 4294901760
    %244 = vmatpush.msra.mxu0 %v243
    %v245 = vand.u32 %v173, 4294901760
    %246 = vmatpush.msra.mxu0 %v245
    %v247 = vand.u32 %v172, 4294901760
    %248 = vmatpush.msra.mxu0 %v247
    %v249 = vand.u32 %v171, 4294901760
    %250 = vmatpush.msra.mxu0 %v249
    %v251 = vand.u32 %v27, 4294901760
    %v252 = vsub.f32 %v27, %v251
    %v253 = vand.u32 %v252, 4294901760
    %v254 = vsub.f32 %v252, %v253
    %v255 = vand.u32 %v254, 4294901760
    %256 = vmatmul.f32.gmra.mxu0 %v255
    %v257 = vpop.f32.mrf.mxu0
    %v258 = vadd.f32 0.0, %v257
    %v259 = vand.u32 %v30, 4294901760
    %v260 = vsub.f32 %v30, %v259
    %v261 = vand.u32 %v260, 4294901760
    %v262 = vsub.f32 %v260, %v261
    %v263 = vand.u32 %v262, 4294901760
    %264 = vmatmul.f32.gmra.mxu0 %v263
    %v265 = vpop.f32.mrf.mxu0
    %v266 = vadd.f32 0.0, %v265
    %v267 = vand.u32 %v33, 4294901760
    %v268 = vsub.f32 %v33, %v267
    %v269 = vand.u32 %v268, 4294901760
    %v270 = vsub.f32 %v268, %v269
    %v271 = vand.u32 %v270, 4294901760
    %272 = vmatmul.f32.gmra.mxu0 %v271
    %v273 = vpop.f32.mrf.mxu0
    %v274 = vadd.f32 0.0, %v273
    %v275 = vand.u32 %v36, 4294901760
    %v276 = vsub.f32 %v36, %v275
    %v277 = vand.u32 %v276, 4294901760
    %v278 = vsub.f32 %v276, %v277
    %v279 = vand.u32 %v278, 4294901760
    %280 = vmatmul.f32.gmra.mxu0 %v279
    %v281 = vpop.f32.mrf.mxu0
    %v282 = vadd.f32 0.0, %v281
    %v283 = vand.u32 %v39, 4294901760
    %v284 = vsub.f32 %v39, %v283
    %v285 = vand.u32 %v284, 4294901760
    %v286 = vsub.f32 %v284, %v285
    %v287 = vand.u32 %v286, 4294901760
    %288 = vmatmul.f32.gmra.mxu0 %v287
    %v289 = vpop.f32.mrf.mxu0
    %v290 = vadd.f32 0.0, %v289
    %v291 = vand.u32 %v42, 4294901760
    %v292 = vsub.f32 %v42, %v291
    %v293 = vand.u32 %v292, 4294901760
    %v294 = vsub.f32 %v292, %v293
    %v295 = vand.u32 %v294, 4294901760
    %296 = vmatmul.f32.gmra.mxu0 %v295
    %v297 = vpop.f32.mrf.mxu0
    %v298 = vadd.f32 0.0, %v297
    %v299 = vand.u32 %v45, 4294901760
    %v300 = vsub.f32 %v45, %v299
    %v301 = vand.u32 %v300, 4294901760
    %v302 = vsub.f32 %v300, %v301
    %v303 = vand.u32 %v302, 4294901760
    %304 = vmatmul.f32.gmra.mxu0 %v303
    %v305 = vpop.f32.mrf.mxu0
    %v306 = vadd.f32 0.0, %v305
    %v307 = vand.u32 %v48, 4294901760
    %v308 = vsub.f32 %v48, %v307
    %v309 = vand.u32 %v308, 4294901760
    %v310 = vsub.f32 %v308, %v309
    %v311 = vand.u32 %v310, 4294901760
    %312 = vmatmul.f32.gmra.mxu0 %v311
    %v313 = vpop.f32.mrf.mxu0
    %v314 = vadd.f32 0.0, %v313
    %v315 = vand.u32 %v51, 4294901760
    %v316 = vsub.f32 %v51, %v315
    %v317 = vand.u32 %v316, 4294901760
    %v318 = vsub.f32 %v316, %v317
    %v319 = vand.u32 %v318, 4294901760
    %320 = vmatmul.f32.gmra.mxu0 %v319
    %v321 = vpop.f32.mrf.mxu0
    %v322 = vadd.f32 0.0, %v321
    %v323 = vand.u32 %v54, 4294901760
    %v324 = vsub.f32 %v54, %v323
    %v325 = vand.u32 %v324, 4294901760
    %v326 = vsub.f32 %v324, %v325
    %v327 = vand.u32 %v326, 4294901760
    %328 = vmatmul.f32.gmra.mxu0 %v327
    %v329 = vpop.f32.mrf.mxu0
    %v330 = vadd.f32 0.0, %v329
    %v331 = vand.u32 %v57, 4294901760
    %v332 = vsub.f32 %v57, %v331
    %v333 = vand.u32 %v332, 4294901760
    %v334 = vsub.f32 %v332, %v333
    %v335 = vand.u32 %v334, 4294901760
    %336 = vmatmul.f32.gmra.mxu0 %v335
    %v337 = vpop.f32.mrf.mxu0
    %v338 = vadd.f32 0.0, %v337
    %v339 = vand.u32 %v60, 4294901760
    %v340 = vsub.f32 %v60, %v339
    %v341 = vand.u32 %v340, 4294901760
    %v342 = vsub.f32 %v340, %v341
    %v343 = vand.u32 %v342, 4294901760
    %344 = vmatmul.f32.gmra.mxu0 %v343
    %v345 = vpop.f32.mrf.mxu0
    %v346 = vadd.f32 0.0, %v345
    %v347 = vand.u32 %v63, 4294901760
    %v348 = vsub.f32 %v63, %v347
    %v349 = vand.u32 %v348, 4294901760
    %v350 = vsub.f32 %v348, %v349
    %v351 = vand.u32 %v350, 4294901760
    %352 = vmatmul.f32.gmra.mxu0 %v351
    %v353 = vpop.f32.mrf.mxu0
    %v354 = vadd.f32 0.0, %v353
    %v355 = vand.u32 %v66, 4294901760
    %v356 = vsub.f32 %v66, %v355
    %v357 = vand.u32 %v356, 4294901760
    %v358 = vsub.f32 %v356, %v357
    %v359 = vand.u32 %v358, 4294901760
    %360 = vmatmul.f32.gmra.mxu0 %v359
    %v361 = vpop.f32.mrf.mxu0
    %v362 = vadd.f32 0.0, %v361
    %v363 = vand.u32 %v69, 4294901760
    %v364 = vsub.f32 %v69, %v363
    %v365 = vand.u32 %v364, 4294901760
    %v366 = vsub.f32 %v364, %v365
    %v367 = vand.u32 %v366, 4294901760
    %368 = vmatmul.f32.gmra.mxu0 %v367
    %v369 = vpop.f32.mrf.mxu0
    %v370 = vadd.f32 0.0, %v369
    %v371 = vand.u32 %v72, 4294901760
    %v372 = vsub.f32 %v72, %v371
    %v373 = vand.u32 %v372, 4294901760
    %v374 = vsub.f32 %v372, %v373
    %v375 = vand.u32 %v374, 4294901760
    %376 = vmatmul.f32.gmra.mxu0 %v375
    %v377 = vpop.f32.mrf.mxu0
    %v378 = vadd.f32 0.0, %v377
    %v379 = vand.u32 %v75, 4294901760
    %v380 = vsub.f32 %v75, %v379
    %v381 = vand.u32 %v380, 4294901760
    %v382 = vsub.f32 %v380, %v381
    %v383 = vand.u32 %v382, 4294901760
    %384 = vmatmul.f32.gmra.mxu0 %v383
    %v385 = vpop.f32.mrf.mxu0
    %v386 = vadd.f32 0.0, %v385
    %v387 = vand.u32 %v78, 4294901760
    %v388 = vsub.f32 %v78, %v387
    %v389 = vand.u32 %v388, 4294901760
    %v390 = vsub.f32 %v388, %v389
    %v391 = vand.u32 %v390, 4294901760
    %392 = vmatmul.f32.gmra.mxu0 %v391
    %v393 = vpop.f32.mrf.mxu0
    %v394 = vadd.f32 0.0, %v393
    %v395 = vand.u32 %v81, 4294901760
    %v396 = vsub.f32 %v81, %v395
    %v397 = vand.u32 %v396, 4294901760
    %v398 = vsub.f32 %v396, %v397
    %v399 = vand.u32 %v398, 4294901760
    %400 = vmatmul.f32.gmra.mxu0 %v399
    %v401 = vpop.f32.mrf.mxu0
    %v402 = vadd.f32 0.0, %v401
    %v403 = vand.u32 %v84, 4294901760
    %v404 = vsub.f32 %v84, %v403
    %v405 = vand.u32 %v404, 4294901760
    %v406 = vsub.f32 %v404, %v405
    %v407 = vand.u32 %v406, 4294901760
    %408 = vmatmul.f32.gmra.mxu0 %v407
    %v409 = vpop.f32.mrf.mxu0
    %v410 = vadd.f32 0.0, %v409
    %v411 = vand.u32 %v87, 4294901760
    %v412 = vsub.f32 %v87, %v411
    %v413 = vand.u32 %v412, 4294901760
    %v414 = vsub.f32 %v412, %v413
    %v415 = vand.u32 %v414, 4294901760
    %416 = vmatmul.f32.gmra.mxu0 %v415
    %v417 = vpop.f32.mrf.mxu0
    %v418 = vadd.f32 0.0, %v417
    %v419 = vand.u32 %v90, 4294901760
    %v420 = vsub.f32 %v90, %v419
    %v421 = vand.u32 %v420, 4294901760
    %v422 = vsub.f32 %v420, %v421
    %v423 = vand.u32 %v422, 4294901760
    %424 = vmatmul.f32.gmra.mxu0 %v423
    %v425 = vpop.f32.mrf.mxu0
    %v426 = vadd.f32 0.0, %v425
    %v427 = vand.u32 %v93, 4294901760
    %v428 = vsub.f32 %v93, %v427
    %v429 = vand.u32 %v428, 4294901760
    %v430 = vsub.f32 %v428, %v429
    %v431 = vand.u32 %v430, 4294901760
    %432 = vmatmul.f32.gmra.mxu0 %v431
    %v433 = vpop.f32.mrf.mxu0
    %v434 = vadd.f32 0.0, %v433
    %v435 = vand.u32 %v96, 4294901760
    %v436 = vsub.f32 %v96, %v435
    %v437 = vand.u32 %v436, 4294901760
    %v438 = vsub.f32 %v436, %v437
    %v439 = vand.u32 %v438, 4294901760
    %440 = vmatmul.f32.gmra.mxu0 %v439
    %v441 = vpop.f32.mrf.mxu0
    %v442 = vadd.f32 0.0, %v441
    %v443 = vand.u32 %v99, 4294901760
    %v444 = vsub.f32 %v99, %v443
    %v445 = vand.u32 %v444, 4294901760
    %v446 = vsub.f32 %v444, %v445
    %v447 = vand.u32 %v446, 4294901760
    %448 = vmatmul.f32.gmra.mxu0 %v447
    %v449 = vpop.f32.mrf.mxu0
    %v450 = vadd.f32 0.0, %v449
    %v451 = vand.u32 %v102, 4294901760
    %v452 = vsub.f32 %v102, %v451
    %v453 = vand.u32 %v452, 4294901760
    %v454 = vsub.f32 %v452, %v453
    %v455 = vand.u32 %v454, 4294901760
    %456 = vmatmul.f32.gmra.mxu0 %v455
    %v457 = vpop.f32.mrf.mxu0
    %v458 = vadd.f32 0.0, %v457
    %v459 = vand.u32 %v105, 4294901760
    %v460 = vsub.f32 %v105, %v459
    %v461 = vand.u32 %v460, 4294901760
    %v462 = vsub.f32 %v460, %v461
    %v463 = vand.u32 %v462, 4294901760
    %464 = vmatmul.f32.gmra.mxu0 %v463
    %v465 = vpop.f32.mrf.mxu0
    %v466 = vadd.f32 0.0, %v465
    %v467 = vand.u32 %v108, 4294901760
    %v468 = vsub.f32 %v108, %v467
    %v469 = vand.u32 %v468, 4294901760
    %v470 = vsub.f32 %v468, %v469
    %v471 = vand.u32 %v470, 4294901760
    %472 = vmatmul.f32.gmra.mxu0 %v471
    %v473 = vpop.f32.mrf.mxu0
    %v474 = vadd.f32 0.0, %v473
    %v475 = vand.u32 %v111, 4294901760
    %v476 = vsub.f32 %v111, %v475
    %v477 = vand.u32 %v476, 4294901760
    %v478 = vsub.f32 %v476, %v477
    %v479 = vand.u32 %v478, 4294901760
    %480 = vmatmul.f32.gmra.mxu0 %v479
    %v481 = vpop.f32.mrf.mxu0
    %v482 = vadd.f32 0.0, %v481
    %v483 = vand.u32 %v114, 4294901760
    %v484 = vsub.f32 %v114, %v483
    %v485 = vand.u32 %v484, 4294901760
    %v486 = vsub.f32 %v484, %v485
    %v487 = vand.u32 %v486, 4294901760
    %488 = vmatmul.f32.gmra.mxu0 %v487
    %v489 = vpop.f32.mrf.mxu0
    %v490 = vadd.f32 0.0, %v489
    %v491 = vand.u32 %v117, 4294901760
    %v492 = vsub.f32 %v117, %v491
    %v493 = vand.u32 %v492, 4294901760
    %v494 = vsub.f32 %v492, %v493
    %v495 = vand.u32 %v494, 4294901760
    %496 = vmatmul.f32.gmra.mxu0 %v495
    %v497 = vpop.f32.mrf.mxu0
    %v498 = vadd.f32 0.0, %v497
    %v499 = vand.u32 %v120, 4294901760
    %v500 = vsub.f32 %v120, %v499
    %v501 = vand.u32 %v500, 4294901760
    %v502 = vsub.f32 %v500, %v501
    %v503 = vand.u32 %v502, 4294901760
    %504 = vmatmul.f32.gmra.mxu0 %v503
    %v505 = vpop.f32.mrf.mxu0
    %v506 = vadd.f32 0.0, %v505
    %v507 = vand.u32 %v123, 4294901760
    %v508 = vsub.f32 %v123, %v507
    %v509 = vand.u32 %v508, 4294901760
    %v510 = vsub.f32 %v508, %v509
    %v511 = vand.u32 %v510, 4294901760
    %512 = vmatmul.f32.gmra.mxu0 %v511
    %v513 = vpop.f32.mrf.mxu0
    %v514 = vadd.f32 0.0, %v513
    %v515 = vand.u32 %v126, 4294901760
    %v516 = vsub.f32 %v126, %v515
    %v517 = vand.u32 %v516, 4294901760
    %v518 = vsub.f32 %v516, %v517
    %v519 = vand.u32 %v518, 4294901760
    %520 = vmatmul.f32.gmra.mxu0 %v519
    %v521 = vpop.f32.mrf.mxu0
    %v522 = vadd.f32 0.0, %v521
    %v523 = vand.u32 %v129, 4294901760
    %v524 = vsub.f32 %v129, %v523
    %v525 = vand.u32 %v524, 4294901760
    %v526 = vsub.f32 %v524, %v525
    %v527 = vand.u32 %v526, 4294901760
    %528 = vmatmul.f32.gmra.mxu0 %v527
    %v529 = vpop.f32.mrf.mxu0
    %v530 = vadd.f32 0.0, %v529
    %v531 = vand.u32 %v132, 4294901760
    %v532 = vsub.f32 %v132, %v531
    %v533 = vand.u32 %v532, 4294901760
    %v534 = vsub.f32 %v532, %v533
    %v535 = vand.u32 %v534, 4294901760
    %536 = vmatmul.f32.gmra.mxu0 %v535
    %v537 = vpop.f32.mrf.mxu0
    %v538 = vadd.f32 0.0, %v537
    %v539 = vand.u32 %v135, 4294901760
    %v540 = vsub.f32 %v135, %v539
    %v541 = vand.u32 %v540, 4294901760
    %v542 = vsub.f32 %v540, %v541
    %v543 = vand.u32 %v542, 4294901760
    %544 = vmatmul.f32.gmra.mxu0 %v543
    %v545 = vpop.f32.mrf.mxu0
    %v546 = vadd.f32 0.0, %v545
    %v547 = vand.u32 %v138, 4294901760
    %v548 = vsub.f32 %v138, %v547
    %v549 = vand.u32 %v548, 4294901760
    %v550 = vsub.f32 %v548, %v549
    %v551 = vand.u32 %v550, 4294901760
    %552 = vmatmul.f32.gmra.mxu0 %v551
    %v553 = vpop.f32.mrf.mxu0
    %v554 = vadd.f32 0.0, %v553
    %v555 = vand.u32 %v141, 4294901760
    %v556 = vsub.f32 %v141, %v555
    %v557 = vand.u32 %v556, 4294901760
    %v558 = vsub.f32 %v556, %v557
    %v559 = vand.u32 %v558, 4294901760
    %560 = vmatmul.f32.gmra.mxu0 %v559
    %v561 = vpop.f32.mrf.mxu0
    %v562 = vadd.f32 0.0, %v561
    %v563 = vand.u32 %v144, 4294901760
    %v564 = vsub.f32 %v144, %v563
    %v565 = vand.u32 %v564, 4294901760
    %v566 = vsub.f32 %v564, %v565
    %v567 = vand.u32 %v566, 4294901760
    %568 = vmatmul.f32.gmra.mxu0 %v567
    %v569 = vpop.f32.mrf.mxu0
    %v570 = vadd.f32 0.0, %v569
    %v571 = vand.u32 %v147, 4294901760
    %v572 = vsub.f32 %v147, %v571
    %v573 = vand.u32 %v572, 4294901760
    %v574 = vsub.f32 %v572, %v573
    %v575 = vand.u32 %v574, 4294901760
    %576 = vmatmul.f32.gmra.mxu0 %v575
    %v577 = vpop.f32.mrf.mxu0
    %v578 = vadd.f32 0.0, %v577
    %v579 = vand.u32 %v150, 4294901760
    %v580 = vsub.f32 %v150, %v579
    %v581 = vand.u32 %v580, 4294901760
    %v582 = vsub.f32 %v580, %v581
    %v583 = vand.u32 %v582, 4294901760
    %584 = vmatmul.f32.gmra.mxu0 %v583
    %v585 = vpop.f32.mrf.mxu0
    %v586 = vadd.f32 0.0, %v585
    %v587 = vand.u32 %v153, 4294901760
    %v588 = vsub.f32 %v153, %v587
    %v589 = vand.u32 %v588, 4294901760
    %v590 = vsub.f32 %v588, %v589
    %v591 = vand.u32 %v590, 4294901760
    %592 = vmatmul.f32.gmra.mxu0 %v591
    %v593 = vpop.f32.mrf.mxu0
    %v594 = vadd.f32 0.0, %v593
    %v595 = vand.u32 %v156, 4294901760
    %v596 = vsub.f32 %v156, %v595
    %v597 = vand.u32 %v596, 4294901760
    %v598 = vsub.f32 %v596, %v597
    %v599 = vand.u32 %v598, 4294901760
    %600 = vmatmul.f32.gmra.mxu0 %v599
    %v601 = vpop.f32.mrf.mxu0
    %v602 = vadd.f32 0.0, %v601
    %v603 = vand.u32 %v159, 4294901760
    %v604 = vsub.f32 %v159, %v603
    %v605 = vand.u32 %v604, 4294901760
    %v606 = vsub.f32 %v604, %v605
    %v607 = vand.u32 %v606, 4294901760
    %608 = vmatmul.f32.gmra.mxu0 %v607
    %v609 = vpop.f32.mrf.mxu0
    %v610 = vadd.f32 0.0, %v609
    %v611 = vand.u32 %v162, 4294901760
    %v612 = vsub.f32 %v162, %v611
    %v613 = vand.u32 %v612, 4294901760
    %v614 = vsub.f32 %v612, %v613
    %v615 = vand.u32 %v614, 4294901760
    %616 = vmatmul.f32.gmra.mxu0 %v615
    %v617 = vpop.f32.mrf.mxu0
    %v618 = vadd.f32 0.0, %v617
    %v619 = vand.u32 %v165, 4294901760
    %v620 = vsub.f32 %v165, %v619
    %v621 = vand.u32 %v620, 4294901760
    %v622 = vsub.f32 %v620, %v621
    %v623 = vand.u32 %v622, 4294901760
    %624 = vmatmul.f32.gmra.mxu0 %v623
    %v625 = vpop.f32.mrf.mxu0
    %v626 = vadd.f32 0.0, %v625
    %v627 = vand.u32 %v168, 4294901760
    %v628 = vsub.f32 %v168, %v627
    %v629 = vand.u32 %v628, 4294901760
    %v630 = vsub.f32 %v628, %v629
    %v631 = vand.u32 %v630, 4294901760
    %632 = vmatmul.f32.gmra.mxu0 %v631
    %v633 = vpop.f32.mrf.mxu0
    %v634 = vadd.f32 0.0, %v633
    %635 = vdwg.mxu0
    %v636 = vand.u32 %v186, 4294901760
    %v637 = vsub.f32 %v186, %v636
    %v638 = vand.u32 %v637, 4294901760
    %v639 = vsub.f32 %v637, %v638
    %v640 = vand.u32 %v639, 4294901760
    %641 = vmatpush.msra.mxu0 %v640
    %v642 = vand.u32 %v185, 4294901760
    %v643 = vsub.f32 %v185, %v642
    %v644 = vand.u32 %v643, 4294901760
    %v645 = vsub.f32 %v643, %v644
    %v646 = vand.u32 %v645, 4294901760
    %647 = vmatpush.msra.mxu0 %v646
    %v648 = vand.u32 %v184, 4294901760
    %v649 = vsub.f32 %v184, %v648
    %v650 = vand.u32 %v649, 4294901760
    %v651 = vsub.f32 %v649, %v650
    %v652 = vand.u32 %v651, 4294901760
    %653 = vmatpush.msra.mxu0 %v652
    %v654 = vand.u32 %v183, 4294901760
    %v655 = vsub.f32 %v183, %v654
    %v656 = vand.u32 %v655, 4294901760
    %v657 = vsub.f32 %v655, %v656
    %v658 = vand.u32 %v657, 4294901760
    %659 = vmatpush.msra.mxu0 %v658
    %v660 = vand.u32 %v182, 4294901760
    %v661 = vsub.f32 %v182, %v660
    %v662 = vand.u32 %v661, 4294901760
    %v663 = vsub.f32 %v661, %v662
    %v664 = vand.u32 %v663, 4294901760
    %665 = vmatpush.msra.mxu0 %v664
    %v666 = vand.u32 %v181, 4294901760
    %v667 = vsub.f32 %v181, %v666
    %v668 = vand.u32 %v667, 4294901760
    %v669 = vsub.f32 %v667, %v668
    %v670 = vand.u32 %v669, 4294901760
    %671 = vmatpush.msra.mxu0 %v670
    %v672 = vand.u32 %v180, 4294901760
    %v673 = vsub.f32 %v180, %v672
    %v674 = vand.u32 %v673, 4294901760
    %v675 = vsub.f32 %v673, %v674
    %v676 = vand.u32 %v675, 4294901760
    %677 = vmatpush.msra.mxu0 %v676
    %v678 = vand.u32 %v179, 4294901760
    %v679 = vsub.f32 %v179, %v678
    %v680 = vand.u32 %v679, 4294901760
    %v681 = vsub.f32 %v679, %v680
    %v682 = vand.u32 %v681, 4294901760
    %683 = vmatpush.msra.mxu0 %v682
    %v684 = vand.u32 %v178, 4294901760
    %v685 = vsub.f32 %v178, %v684
    %v686 = vand.u32 %v685, 4294901760
    %v687 = vsub.f32 %v685, %v686
    %v688 = vand.u32 %v687, 4294901760
    %689 = vmatpush.msra.mxu0 %v688
    %v690 = vand.u32 %v177, 4294901760
    %v691 = vsub.f32 %v177, %v690
    %v692 = vand.u32 %v691, 4294901760
    %v693 = vsub.f32 %v691, %v692
    %v694 = vand.u32 %v693, 4294901760
    %695 = vmatpush.msra.mxu0 %v694
    %v696 = vand.u32 %v176, 4294901760
    %v697 = vsub.f32 %v176, %v696
    %v698 = vand.u32 %v697, 4294901760
    %v699 = vsub.f32 %v697, %v698
    %v700 = vand.u32 %v699, 4294901760
    %701 = vmatpush.msra.mxu0 %v700
    %v702 = vand.u32 %v175, 4294901760
    %v703 = vsub.f32 %v175, %v702
    %v704 = vand.u32 %v703, 4294901760
    %v705 = vsub.f32 %v703, %v704
    %v706 = vand.u32 %v705, 4294901760
    %707 = vmatpush.msra.mxu0 %v706
    %v708 = vand.u32 %v174, 4294901760
    %v709 = vsub.f32 %v174, %v708
    %v710 = vand.u32 %v709, 4294901760
    %v711 = vsub.f32 %v709, %v710
    %v712 = vand.u32 %v711, 4294901760
    %713 = vmatpush.msra.mxu0 %v712
    %v714 = vand.u32 %v173, 4294901760
    %v715 = vsub.f32 %v173, %v714
    %v716 = vand.u32 %v715, 4294901760
    %v717 = vsub.f32 %v715, %v716
    %v718 = vand.u32 %v717, 4294901760
    %719 = vmatpush.msra.mxu0 %v718
    %v720 = vand.u32 %v172, 4294901760
    %v721 = vsub.f32 %v172, %v720
    %v722 = vand.u32 %v721, 4294901760
    %v723 = vsub.f32 %v721, %v722
    %v724 = vand.u32 %v723, 4294901760
    %725 = vmatpush.msra.mxu0 %v724
    %v726 = vand.u32 %v171, 4294901760
    %v727 = vsub.f32 %v171, %v726
    %v728 = vand.u32 %v727, 4294901760
    %v729 = vsub.f32 %v727, %v728
    %v730 = vand.u32 %v729, 4294901760
    %731 = vmatpush.msra.mxu0 %v730
    %v732 = vand.u32 %v27, 4294901760
    %733 = vmatmul.f32.gmra.mxu0 %v732
    %v734 = vpop.f32.mrf.mxu0
    %v735 = vadd.f32 %v258, %v734
    %v736 = vand.u32 %v30, 4294901760
    %737 = vmatmul.f32.gmra.mxu0 %v736
    %v738 = vpop.f32.mrf.mxu0
    %v739 = vadd.f32 %v266, %v738
    %v740 = vand.u32 %v33, 4294901760
    %741 = vmatmul.f32.gmra.mxu0 %v740
    %v742 = vpop.f32.mrf.mxu0
    %v743 = vadd.f32 %v274, %v742
    %v744 = vand.u32 %v36, 4294901760
    %745 = vmatmul.f32.gmra.mxu0 %v744
    %v746 = vpop.f32.mrf.mxu0
    %v747 = vadd.f32 %v282, %v746
    %v748 = vand.u32 %v39, 4294901760
    %749 = vmatmul.f32.gmra.mxu0 %v748
    %v750 = vpop.f32.mrf.mxu0
    %v751 = vadd.f32 %v290, %v750
    %v752 = vand.u32 %v42, 4294901760
    %753 = vmatmul.f32.gmra.mxu0 %v752
    %v754 = vpop.f32.mrf.mxu0
    %v755 = vadd.f32 %v298, %v754
    %v756 = vand.u32 %v45, 4294901760
    %757 = vmatmul.f32.gmra.mxu0 %v756
    %v758 = vpop.f32.mrf.mxu0
    %v759 = vadd.f32 %v306, %v758
    %v760 = vand.u32 %v48, 4294901760
    %761 = vmatmul.f32.gmra.mxu0 %v760
    %v762 = vpop.f32.mrf.mxu0
    %v763 = vadd.f32 %v314, %v762
    %v764 = vand.u32 %v51, 4294901760
    %765 = vmatmul.f32.gmra.mxu0 %v764
    %v766 = vpop.f32.mrf.mxu0
    %v767 = vadd.f32 %v322, %v766
    %v768 = vand.u32 %v54, 4294901760
    %769 = vmatmul.f32.gmra.mxu0 %v768
    %v770 = vpop.f32.mrf.mxu0
    %v771 = vadd.f32 %v330, %v770
    %v772 = vand.u32 %v57, 4294901760
    %773 = vmatmul.f32.gmra.mxu0 %v772
    %v774 = vpop.f32.mrf.mxu0
    %v775 = vadd.f32 %v338, %v774
    %v776 = vand.u32 %v60, 4294901760
    %777 = vmatmul.f32.gmra.mxu0 %v776
    %v778 = vpop.f32.mrf.mxu0
    %v779 = vadd.f32 %v346, %v778
    %v780 = vand.u32 %v63, 4294901760
    %781 = vmatmul.f32.gmra.mxu0 %v780
    %v782 = vpop.f32.mrf.mxu0
    %v783 = vadd.f32 %v354, %v782
    %v784 = vand.u32 %v66, 4294901760
    %785 = vmatmul.f32.gmra.mxu0 %v784
    %v786 = vpop.f32.mrf.mxu0
    %v787 = vadd.f32 %v362, %v786
    %v788 = vand.u32 %v69, 4294901760
    %789 = vmatmul.f32.gmra.mxu0 %v788
    %v790 = vpop.f32.mrf.mxu0
    %v791 = vadd.f32 %v370, %v790
    %v792 = vand.u32 %v72, 4294901760
    %793 = vmatmul.f32.gmra.mxu0 %v792
    %v794 = vpop.f32.mrf.mxu0
    %v795 = vadd.f32 %v378, %v794
    %v796 = vand.u32 %v75, 4294901760
    %797 = vmatmul.f32.gmra.mxu0 %v796
    %v798 = vpop.f32.mrf.mxu0
    %v799 = vadd.f32 %v386, %v798
    %v800 = vand.u32 %v78, 4294901760
    %801 = vmatmul.f32.gmra.mxu0 %v800
    %v802 = vpop.f32.mrf.mxu0
    %v803 = vadd.f32 %v394, %v802
    %v804 = vand.u32 %v81, 4294901760
    %805 = vmatmul.f32.gmra.mxu0 %v804
    %v806 = vpop.f32.mrf.mxu0
    %v807 = vadd.f32 %v402, %v806
    %v808 = vand.u32 %v84, 4294901760
    %809 = vmatmul.f32.gmra.mxu0 %v808
    %v810 = vpop.f32.mrf.mxu0
    %v811 = vadd.f32 %v410, %v810
    %v812 = vand.u32 %v87, 4294901760
    %813 = vmatmul.f32.gmra.mxu0 %v812
    %v814 = vpop.f32.mrf.mxu0
    %v815 = vadd.f32 %v418, %v814
    %v816 = vand.u32 %v90, 4294901760
    %817 = vmatmul.f32.gmra.mxu0 %v816
    %v818 = vpop.f32.mrf.mxu0
    %v819 = vadd.f32 %v426, %v818
    %v820 = vand.u32 %v93, 4294901760
    %821 = vmatmul.f32.gmra.mxu0 %v820
    %v822 = vpop.f32.mrf.mxu0
    %v823 = vadd.f32 %v434, %v822
    %v824 = vand.u32 %v96, 4294901760
    %825 = vmatmul.f32.gmra.mxu0 %v824
    %v826 = vpop.f32.mrf.mxu0
    %v827 = vadd.f32 %v442, %v826
    %v828 = vand.u32 %v99, 4294901760
    %829 = vmatmul.f32.gmra.mxu0 %v828
    %v830 = vpop.f32.mrf.mxu0
    %v831 = vadd.f32 %v450, %v830
    %v832 = vand.u32 %v102, 4294901760
    %833 = vmatmul.f32.gmra.mxu0 %v832
    %v834 = vpop.f32.mrf.mxu0
    %v835 = vadd.f32 %v458, %v834
    %v836 = vand.u32 %v105, 4294901760
    %837 = vmatmul.f32.gmra.mxu0 %v836
    %v838 = vpop.f32.mrf.mxu0
    %v839 = vadd.f32 %v466, %v838
    %v840 = vand.u32 %v108, 4294901760
    %841 = vmatmul.f32.gmra.mxu0 %v840
    %v842 = vpop.f32.mrf.mxu0
    %v843 = vadd.f32 %v474, %v842
    %v844 = vand.u32 %v111, 4294901760
    %845 = vmatmul.f32.gmra.mxu0 %v844
    %v846 = vpop.f32.mrf.mxu0
    %v847 = vadd.f32 %v482, %v846
    %v848 = vand.u32 %v114, 4294901760
    %849 = vmatmul.f32.gmra.mxu0 %v848
    %v850 = vpop.f32.mrf.mxu0
    %v851 = vadd.f32 %v490, %v850
    %v852 = vand.u32 %v117, 4294901760
    %853 = vmatmul.f32.gmra.mxu0 %v852
    %v854 = vpop.f32.mrf.mxu0
    %v855 = vadd.f32 %v498, %v854
    %v856 = vand.u32 %v120, 4294901760
    %857 = vmatmul.f32.gmra.mxu0 %v856
    %v858 = vpop.f32.mrf.mxu0
    %v859 = vadd.f32 %v506, %v858
    %v860 = vand.u32 %v123, 4294901760
    %861 = vmatmul.f32.gmra.mxu0 %v860
    %v862 = vpop.f32.mrf.mxu0
    %v863 = vadd.f32 %v514, %v862
    %v864 = vand.u32 %v126, 4294901760
    %865 = vmatmul.f32.gmra.mxu0 %v864
    %v866 = vpop.f32.mrf.mxu0
    %v867 = vadd.f32 %v522, %v866
    %v868 = vand.u32 %v129, 4294901760
    %869 = vmatmul.f32.gmra.mxu0 %v868
    %v870 = vpop.f32.mrf.mxu0
    %v871 = vadd.f32 %v530, %v870
    %v872 = vand.u32 %v132, 4294901760
    %873 = vmatmul.f32.gmra.mxu0 %v872
    %v874 = vpop.f32.mrf.mxu0
    %v875 = vadd.f32 %v538, %v874
    %v876 = vand.u32 %v135, 4294901760
    %877 = vmatmul.f32.gmra.mxu0 %v876
    %v878 = vpop.f32.mrf.mxu0
    %v879 = vadd.f32 %v546, %v878
    %v880 = vand.u32 %v138, 4294901760
    %881 = vmatmul.f32.gmra.mxu0 %v880
    %v882 = vpop.f32.mrf.mxu0
    %v883 = vadd.f32 %v554, %v882
    %v884 = vand.u32 %v141, 4294901760
    %885 = vmatmul.f32.gmra.mxu0 %v884
    %v886 = vpop.f32.mrf.mxu0
    %v887 = vadd.f32 %v562, %v886
    %v888 = vand.u32 %v144, 4294901760
    %889 = vmatmul.f32.gmra.mxu0 %v888
    %v890 = vpop.f32.mrf.mxu0
    %v891 = vadd.f32 %v570, %v890
    %v892 = vand.u32 %v147, 4294901760
    %893 = vmatmul.f32.gmra.mxu0 %v892
    %v894 = vpop.f32.mrf.mxu0
    %v895 = vadd.f32 %v578, %v894
    %v896 = vand.u32 %v150, 4294901760
    %897 = vmatmul.f32.gmra.mxu0 %v896
    %v898 = vpop.f32.mrf.mxu0
    %v899 = vadd.f32 %v586, %v898
    %v900 = vand.u32 %v153, 4294901760
    %901 = vmatmul.f32.gmra.mxu0 %v900
    %v902 = vpop.f32.mrf.mxu0
    %v903 = vadd.f32 %v594, %v902
    %v904 = vand.u32 %v156, 4294901760
    %905 = vmatmul.f32.gmra.mxu0 %v904
    %v906 = vpop.f32.mrf.mxu0
    %v907 = vadd.f32 %v602, %v906
    %v908 = vand.u32 %v159, 4294901760
    %909 = vmatmul.f32.gmra.mxu0 %v908
    %v910 = vpop.f32.mrf.mxu0
    %v911 = vadd.f32 %v610, %v910
    %v912 = vand.u32 %v162, 4294901760
    %913 = vmatmul.f32.gmra.mxu0 %v912
    %v914 = vpop.f32.mrf.mxu0
    %v915 = vadd.f32 %v618, %v914
    %v916 = vand.u32 %v165, 4294901760
    %917 = vmatmul.f32.gmra.mxu0 %v916
    %v918 = vpop.f32.mrf.mxu0
    %v919 = vadd.f32 %v626, %v918
    %v920 = vand.u32 %v168, 4294901760
    %921 = vmatmul.f32.gmra.mxu0 %v920
    %v922 = vpop.f32.mrf.mxu0
    %v923 = vadd.f32 %v634, %v922
    %924 = vdwg.mxu0
    %v925 = vand.u32 %v186, 4294901760
    %v926 = vsub.f32 %v186, %v925
    %927 = vmatpush.msra.mxu0 %v926
    %v928 = vand.u32 %v185, 4294901760
    %v929 = vsub.f32 %v185, %v928
    %930 = vmatpush.msra.mxu0 %v929
    %v931 = vand.u32 %v184, 4294901760
    %v932 = vsub.f32 %v184, %v931
    %933 = vmatpush.msra.mxu0 %v932
    %v934 = vand.u32 %v183, 4294901760
    %v935 = vsub.f32 %v183, %v934
    %936 = vmatpush.msra.mxu0 %v935
    %v937 = vand.u32 %v182, 4294901760
    %v938 = vsub.f32 %v182, %v937
    %939 = vmatpush.msra.mxu0 %v938
    %v940 = vand.u32 %v181, 4294901760
    %v941 = vsub.f32 %v181, %v940
    %942 = vmatpush.msra.mxu0 %v941
    %v943 = vand.u32 %v180, 4294901760
    %v944 = vsub.f32 %v180, %v943
    %945 = vmatpush.msra.mxu0 %v944
    %v946 = vand.u32 %v179, 4294901760
    %v947 = vsub.f32 %v179, %v946
    %948 = vmatpush.msra.mxu0 %v947
    %v949 = vand.u32 %v178, 4294901760
    %v950 = vsub.f32 %v178, %v949
    %951 = vmatpush.msra.mxu0 %v950
    %v952 = vand.u32 %v177, 4294901760
    %v953 = vsub.f32 %v177, %v952
    %954 = vmatpush.msra.mxu0 %v953
    %v955 = vand.u32 %v176, 4294901760
    %v956 = vsub.f32 %v176, %v955
    %957 = vmatpush.msra.mxu0 %v956
    %v958 = vand.u32 %v175, 4294901760
    %v959 = vsub.f32 %v175, %v958
    %960 = vmatpush.msra.mxu0 %v959
    %v961 = vand.u32 %v174, 4294901760
    %v962 = vsub.f32 %v174, %v961
    %963 = vmatpush.msra.mxu0 %v962
    %v964 = vand.u32 %v173, 4294901760
    %v965 = vsub.f32 %v173, %v964
    %966 = vmatpush.msra.mxu0 %v965
    %v967 = vand.u32 %v172, 4294901760
    %v968 = vsub.f32 %v172, %v967
    %969 = vmatpush.msra.mxu0 %v968
    %v970 = vand.u32 %v171, 4294901760
    %v971 = vsub.f32 %v171, %v970
    %972 = vmatpush.msra.mxu0 %v971
    %v973 = vand.u32 %v27, 4294901760
    %v974 = vsub.f32 %v27, %v973
    %975 = vmatmul.f32.gmra.mxu0 %v974
    %v976 = vpop.f32.mrf.mxu0
    %v977 = vadd.f32 %v735, %v976
    %v978 = vand.u32 %v30, 4294901760
    %v979 = vsub.f32 %v30, %v978
    %980 = vmatmul.f32.gmra.mxu0 %v979
    %v981 = vpop.f32.mrf.mxu0
    %v982 = vadd.f32 %v739, %v981
    %v983 = vand.u32 %v33, 4294901760
    %v984 = vsub.f32 %v33, %v983
    %985 = vmatmul.f32.gmra.mxu0 %v984
    %v986 = vpop.f32.mrf.mxu0
    %v987 = vadd.f32 %v743, %v986
    %v988 = vand.u32 %v36, 4294901760
    %v989 = vsub.f32 %v36, %v988
    %990 = vmatmul.f32.gmra.mxu0 %v989
    %v991 = vpop.f32.mrf.mxu0
    %v992 = vadd.f32 %v747, %v991
    %v993 = vand.u32 %v39, 4294901760
    %v994 = vsub.f32 %v39, %v993
    %995 = vmatmul.f32.gmra.mxu0 %v994
    %v996 = vpop.f32.mrf.mxu0
    %v997 = vadd.f32 %v751, %v996
    %v998 = vand.u32 %v42, 4294901760
    %v999 = vsub.f32 %v42, %v998
    %1000 = vmatmul.f32.gmra.mxu0 %v999
    %v1001 = vpop.f32.mrf.mxu0
    %v1002 = vadd.f32 %v755, %v1001
    %v1003 = vand.u32 %v45, 4294901760
    %v1004 = vsub.f32 %v45, %v1003
    %1005 = vmatmul.f32.gmra.mxu0 %v1004
    %v1006 = vpop.f32.mrf.mxu0
    %v1007 = vadd.f32 %v759, %v1006
    %v1008 = vand.u32 %v48, 4294901760
    %v1009 = vsub.f32 %v48, %v1008
    %1010 = vmatmul.f32.gmra.mxu0 %v1009
    %v1011 = vpop.f32.mrf.mxu0
    %v1012 = vadd.f32 %v763, %v1011
    %v1013 = vand.u32 %v51, 4294901760
    %v1014 = vsub.f32 %v51, %v1013
    %1015 = vmatmul.f32.gmra.mxu0 %v1014
    %v1016 = vpop.f32.mrf.mxu0
    %v1017 = vadd.f32 %v767, %v1016
    %v1018 = vand.u32 %v54, 4294901760
    %v1019 = vsub.f32 %v54, %v1018
    %1020 = vmatmul.f32.gmra.mxu0 %v1019
    %v1021 = vpop.f32.mrf.mxu0
    %v1022 = vadd.f32 %v771, %v1021
    %v1023 = vand.u32 %v57, 4294901760
    %v1024 = vsub.f32 %v57, %v1023
    %1025 = vmatmul.f32.gmra.mxu0 %v1024
    %v1026 = vpop.f32.mrf.mxu0
    %v1027 = vadd.f32 %v775, %v1026
    %v1028 = vand.u32 %v60, 4294901760
    %v1029 = vsub.f32 %v60, %v1028
    %1030 = vmatmul.f32.gmra.mxu0 %v1029
    %v1031 = vpop.f32.mrf.mxu0
    %v1032 = vadd.f32 %v779, %v1031
    %v1033 = vand.u32 %v63, 4294901760
    %v1034 = vsub.f32 %v63, %v1033
    %1035 = vmatmul.f32.gmra.mxu0 %v1034
    %v1036 = vpop.f32.mrf.mxu0
    %v1037 = vadd.f32 %v783, %v1036
    %v1038 = vand.u32 %v66, 4294901760
    %v1039 = vsub.f32 %v66, %v1038
    %1040 = vmatmul.f32.gmra.mxu0 %v1039
    %v1041 = vpop.f32.mrf.mxu0
    %v1042 = vadd.f32 %v787, %v1041
    %v1043 = vand.u32 %v69, 4294901760
    %v1044 = vsub.f32 %v69, %v1043
    %1045 = vmatmul.f32.gmra.mxu0 %v1044
    %v1046 = vpop.f32.mrf.mxu0
    %v1047 = vadd.f32 %v791, %v1046
    %v1048 = vand.u32 %v72, 4294901760
    %v1049 = vsub.f32 %v72, %v1048
    %1050 = vmatmul.f32.gmra.mxu0 %v1049
    %v1051 = vpop.f32.mrf.mxu0
    %v1052 = vadd.f32 %v795, %v1051
    %v1053 = vand.u32 %v75, 4294901760
    %v1054 = vsub.f32 %v75, %v1053
    %1055 = vmatmul.f32.gmra.mxu0 %v1054
    %v1056 = vpop.f32.mrf.mxu0
    %v1057 = vadd.f32 %v799, %v1056
    %v1058 = vand.u32 %v78, 4294901760
    %v1059 = vsub.f32 %v78, %v1058
    %1060 = vmatmul.f32.gmra.mxu0 %v1059
    %v1061 = vpop.f32.mrf.mxu0
    %v1062 = vadd.f32 %v803, %v1061
    %v1063 = vand.u32 %v81, 4294901760
    %v1064 = vsub.f32 %v81, %v1063
    %1065 = vmatmul.f32.gmra.mxu0 %v1064
    %v1066 = vpop.f32.mrf.mxu0
    %v1067 = vadd.f32 %v807, %v1066
    %v1068 = vand.u32 %v84, 4294901760
    %v1069 = vsub.f32 %v84, %v1068
    %1070 = vmatmul.f32.gmra.mxu0 %v1069
    %v1071 = vpop.f32.mrf.mxu0
    %v1072 = vadd.f32 %v811, %v1071
    %v1073 = vand.u32 %v87, 4294901760
    %v1074 = vsub.f32 %v87, %v1073
    %1075 = vmatmul.f32.gmra.mxu0 %v1074
    %v1076 = vpop.f32.mrf.mxu0
    %v1077 = vadd.f32 %v815, %v1076
    %v1078 = vand.u32 %v90, 4294901760
    %v1079 = vsub.f32 %v90, %v1078
    %1080 = vmatmul.f32.gmra.mxu0 %v1079
    %v1081 = vpop.f32.mrf.mxu0
    %v1082 = vadd.f32 %v819, %v1081
    %v1083 = vand.u32 %v93, 4294901760
    %v1084 = vsub.f32 %v93, %v1083
    %1085 = vmatmul.f32.gmra.mxu0 %v1084
    %v1086 = vpop.f32.mrf.mxu0
    %v1087 = vadd.f32 %v823, %v1086
    %v1088 = vand.u32 %v96, 4294901760
    %v1089 = vsub.f32 %v96, %v1088
    %1090 = vmatmul.f32.gmra.mxu0 %v1089
    %v1091 = vpop.f32.mrf.mxu0
    %v1092 = vadd.f32 %v827, %v1091
    %v1093 = vand.u32 %v99, 4294901760
    %v1094 = vsub.f32 %v99, %v1093
    %1095 = vmatmul.f32.gmra.mxu0 %v1094
    %v1096 = vpop.f32.mrf.mxu0
    %v1097 = vadd.f32 %v831, %v1096
    %v1098 = vand.u32 %v102, 4294901760
    %v1099 = vsub.f32 %v102, %v1098
    %1100 = vmatmul.f32.gmra.mxu0 %v1099
    %v1101 = vpop.f32.mrf.mxu0
    %v1102 = vadd.f32 %v835, %v1101
    %v1103 = vand.u32 %v105, 4294901760
    %v1104 = vsub.f32 %v105, %v1103
    %1105 = vmatmul.f32.gmra.mxu0 %v1104
    %v1106 = vpop.f32.mrf.mxu0
    %v1107 = vadd.f32 %v839, %v1106
    %v1108 = vand.u32 %v108, 4294901760
    %v1109 = vsub.f32 %v108, %v1108
    %1110 = vmatmul.f32.gmra.mxu0 %v1109
    %v1111 = vpop.f32.mrf.mxu0
    %v1112 = vadd.f32 %v843, %v1111
    %v1113 = vand.u32 %v111, 4294901760
    %v1114 = vsub.f32 %v111, %v1113
    %1115 = vmatmul.f32.gmra.mxu0 %v1114
    %v1116 = vpop.f32.mrf.mxu0
    %v1117 = vadd.f32 %v847, %v1116
    %v1118 = vand.u32 %v114, 4294901760
    %v1119 = vsub.f32 %v114, %v1118
    %1120 = vmatmul.f32.gmra.mxu0 %v1119
    %v1121 = vpop.f32.mrf.mxu0
    %v1122 = vadd.f32 %v851, %v1121
    %v1123 = vand.u32 %v117, 4294901760
    %v1124 = vsub.f32 %v117, %v1123
    %1125 = vmatmul.f32.gmra.mxu0 %v1124
    %v1126 = vpop.f32.mrf.mxu0
    %v1127 = vadd.f32 %v855, %v1126
    %v1128 = vand.u32 %v120, 4294901760
    %v1129 = vsub.f32 %v120, %v1128
    %1130 = vmatmul.f32.gmra.mxu0 %v1129
    %v1131 = vpop.f32.mrf.mxu0
    %v1132 = vadd.f32 %v859, %v1131
    %v1133 = vand.u32 %v123, 4294901760
    %v1134 = vsub.f32 %v123, %v1133
    %1135 = vmatmul.f32.gmra.mxu0 %v1134
    %v1136 = vpop.f32.mrf.mxu0
    %v1137 = vadd.f32 %v863, %v1136
    %v1138 = vand.u32 %v126, 4294901760
    %v1139 = vsub.f32 %v126, %v1138
    %1140 = vmatmul.f32.gmra.mxu0 %v1139
    %v1141 = vpop.f32.mrf.mxu0
    %v1142 = vadd.f32 %v867, %v1141
    %v1143 = vand.u32 %v129, 4294901760
    %v1144 = vsub.f32 %v129, %v1143
    %1145 = vmatmul.f32.gmra.mxu0 %v1144
    %v1146 = vpop.f32.mrf.mxu0
    %v1147 = vadd.f32 %v871, %v1146
    %v1148 = vand.u32 %v132, 4294901760
    %v1149 = vsub.f32 %v132, %v1148
    %1150 = vmatmul.f32.gmra.mxu0 %v1149
    %v1151 = vpop.f32.mrf.mxu0
    %v1152 = vadd.f32 %v875, %v1151
    %v1153 = vand.u32 %v135, 4294901760
    %v1154 = vsub.f32 %v135, %v1153
    %1155 = vmatmul.f32.gmra.mxu0 %v1154
    %v1156 = vpop.f32.mrf.mxu0
    %v1157 = vadd.f32 %v879, %v1156
    %v1158 = vand.u32 %v138, 4294901760
    %v1159 = vsub.f32 %v138, %v1158
    %1160 = vmatmul.f32.gmra.mxu0 %v1159
    %v1161 = vpop.f32.mrf.mxu0
    %v1162 = vadd.f32 %v883, %v1161
    %v1163 = vand.u32 %v141, 4294901760
    %v1164 = vsub.f32 %v141, %v1163
    %1165 = vmatmul.f32.gmra.mxu0 %v1164
    %v1166 = vpop.f32.mrf.mxu0
    %v1167 = vadd.f32 %v887, %v1166
    %v1168 = vand.u32 %v144, 4294901760
    %v1169 = vsub.f32 %v144, %v1168
    %1170 = vmatmul.f32.gmra.mxu0 %v1169
    %v1171 = vpop.f32.mrf.mxu0
    %v1172 = vadd.f32 %v891, %v1171
    %v1173 = vand.u32 %v147, 4294901760
    %v1174 = vsub.f32 %v147, %v1173
    %1175 = vmatmul.f32.gmra.mxu0 %v1174
    %v1176 = vpop.f32.mrf.mxu0
    %v1177 = vadd.f32 %v895, %v1176
    %v1178 = vand.u32 %v150, 4294901760
    %v1179 = vsub.f32 %v150, %v1178
    %1180 = vmatmul.f32.gmra.mxu0 %v1179
    %v1181 = vpop.f32.mrf.mxu0
    %v1182 = vadd.f32 %v899, %v1181
    %v1183 = vand.u32 %v153, 4294901760
    %v1184 = vsub.f32 %v153, %v1183
    %1185 = vmatmul.f32.gmra.mxu0 %v1184
    %v1186 = vpop.f32.mrf.mxu0
    %v1187 = vadd.f32 %v903, %v1186
    %v1188 = vand.u32 %v156, 4294901760
    %v1189 = vsub.f32 %v156, %v1188
    %1190 = vmatmul.f32.gmra.mxu0 %v1189
    %v1191 = vpop.f32.mrf.mxu0
    %v1192 = vadd.f32 %v907, %v1191
    %v1193 = vand.u32 %v159, 4294901760
    %v1194 = vsub.f32 %v159, %v1193
    %1195 = vmatmul.f32.gmra.mxu0 %v1194
    %v1196 = vpop.f32.mrf.mxu0
    %v1197 = vadd.f32 %v911, %v1196
    %v1198 = vand.u32 %v162, 4294901760
    %v1199 = vsub.f32 %v162, %v1198
    %1200 = vmatmul.f32.gmra.mxu0 %v1199
    %v1201 = vpop.f32.mrf.mxu0
    %v1202 = vadd.f32 %v915, %v1201
    %v1203 = vand.u32 %v165, 4294901760
    %v1204 = vsub.f32 %v165, %v1203
    %1205 = vmatmul.f32.gmra.mxu0 %v1204
    %v1206 = vpop.f32.mrf.mxu0
    %v1207 = vadd.f32 %v919, %v1206
    %v1208 = vand.u32 %v168, 4294901760
    %v1209 = vsub.f32 %v168, %v1208
    %1210 = vmatmul.f32.gmra.mxu0 %v1209
    %v1211 = vpop.f32.mrf.mxu0
    %v1212 = vadd.f32 %v923, %v1211
    %1213 = vdwg.mxu0
    %v1214 = vand.u32 %v186, 4294901760
    %1215 = vmatpush.msra.mxu0 %v1214
    %v1216 = vand.u32 %v185, 4294901760
    %1217 = vmatpush.msra.mxu0 %v1216
    %v1218 = vand.u32 %v184, 4294901760
    %1219 = vmatpush.msra.mxu0 %v1218
    %v1220 = vand.u32 %v183, 4294901760
    %1221 = vmatpush.msra.mxu0 %v1220
    %v1222 = vand.u32 %v182, 4294901760
    %1223 = vmatpush.msra.mxu0 %v1222
    %v1224 = vand.u32 %v181, 4294901760
    %1225 = vmatpush.msra.mxu0 %v1224
    %v1226 = vand.u32 %v180, 4294901760
    %1227 = vmatpush.msra.mxu0 %v1226
    %v1228 = vand.u32 %v179, 4294901760
    %1229 = vmatpush.msra.mxu0 %v1228
    %v1230 = vand.u32 %v178, 4294901760
    %1231 = vmatpush.msra.mxu0 %v1230
    %v1232 = vand.u32 %v177, 4294901760
    %1233 = vmatpush.msra.mxu0 %v1232
    %v1234 = vand.u32 %v176, 4294901760
    %1235 = vmatpush.msra.mxu0 %v1234
    %v1236 = vand.u32 %v175, 4294901760
    %1237 = vmatpush.msra.mxu0 %v1236
    %v1238 = vand.u32 %v174, 4294901760
    %1239 = vmatpush.msra.mxu0 %v1238
    %v1240 = vand.u32 %v173, 4294901760
    %1241 = vmatpush.msra.mxu0 %v1240
    %v1242 = vand.u32 %v172, 4294901760
    %1243 = vmatpush.msra.mxu0 %v1242
    %v1244 = vand.u32 %v171, 4294901760
    %1245 = vmatpush.msra.mxu0 %v1244
    %v1246 = vand.u32 %v27, 4294901760
    %v1247 = vsub.f32 %v27, %v1246
    %v1248 = vand.u32 %v1247, 4294901760
    %1249 = vmatmul.f32.gmra.mxu0 %v1248
    %v1250 = vpop.f32.mrf.mxu0
    %v1251 = vadd.f32 %v977, %v1250
    %v1252 = vand.u32 %v30, 4294901760
    %v1253 = vsub.f32 %v30, %v1252
    %v1254 = vand.u32 %v1253, 4294901760
    %1255 = vmatmul.f32.gmra.mxu0 %v1254
    %v1256 = vpop.f32.mrf.mxu0
    %v1257 = vadd.f32 %v982, %v1256
    %v1258 = vand.u32 %v33, 4294901760
    %v1259 = vsub.f32 %v33, %v1258
    %v1260 = vand.u32 %v1259, 4294901760
    %1261 = vmatmul.f32.gmra.mxu0 %v1260
    %v1262 = vpop.f32.mrf.mxu0
    %v1263 = vadd.f32 %v987, %v1262
    %v1264 = vand.u32 %v36, 4294901760
    %v1265 = vsub.f32 %v36, %v1264
    %v1266 = vand.u32 %v1265, 4294901760
    %1267 = vmatmul.f32.gmra.mxu0 %v1266
    %v1268 = vpop.f32.mrf.mxu0
    %v1269 = vadd.f32 %v992, %v1268
    %v1270 = vand.u32 %v39, 4294901760
    %v1271 = vsub.f32 %v39, %v1270
    %v1272 = vand.u32 %v1271, 4294901760
    %1273 = vmatmul.f32.gmra.mxu0 %v1272
    %v1274 = vpop.f32.mrf.mxu0
    %v1275 = vadd.f32 %v997, %v1274
    %v1276 = vand.u32 %v42, 4294901760
    %v1277 = vsub.f32 %v42, %v1276
    %v1278 = vand.u32 %v1277, 4294901760
    %1279 = vmatmul.f32.gmra.mxu0 %v1278
    %v1280 = vpop.f32.mrf.mxu0
    %v1281 = vadd.f32 %v1002, %v1280
    %v1282 = vand.u32 %v45, 4294901760
    %v1283 = vsub.f32 %v45, %v1282
    %v1284 = vand.u32 %v1283, 4294901760
    %1285 = vmatmul.f32.gmra.mxu0 %v1284
    %v1286 = vpop.f32.mrf.mxu0
    %v1287 = vadd.f32 %v1007, %v1286
    %v1288 = vand.u32 %v48, 4294901760
    %v1289 = vsub.f32 %v48, %v1288
    %v1290 = vand.u32 %v1289, 4294901760
    %1291 = vmatmul.f32.gmra.mxu0 %v1290
    %v1292 = vpop.f32.mrf.mxu0
    %v1293 = vadd.f32 %v1012, %v1292
    %v1294 = vand.u32 %v51, 4294901760
    %v1295 = vsub.f32 %v51, %v1294
    %v1296 = vand.u32 %v1295, 4294901760
    %1297 = vmatmul.f32.gmra.mxu0 %v1296
    %v1298 = vpop.f32.mrf.mxu0
    %v1299 = vadd.f32 %v1017, %v1298
    %v1300 = vand.u32 %v54, 4294901760
    %v1301 = vsub.f32 %v54, %v1300
    %v1302 = vand.u32 %v1301, 4294901760
    %1303 = vmatmul.f32.gmra.mxu0 %v1302
    %v1304 = vpop.f32.mrf.mxu0
    %v1305 = vadd.f32 %v1022, %v1304
    %v1306 = vand.u32 %v57, 4294901760
    %v1307 = vsub.f32 %v57, %v1306
    %v1308 = vand.u32 %v1307, 4294901760
    %1309 = vmatmul.f32.gmra.mxu0 %v1308
    %v1310 = vpop.f32.mrf.mxu0
    %v1311 = vadd.f32 %v1027, %v1310
    %v1312 = vand.u32 %v60, 4294901760
    %v1313 = vsub.f32 %v60, %v1312
    %v1314 = vand.u32 %v1313, 4294901760
    %1315 = vmatmul.f32.gmra.mxu0 %v1314
    %v1316 = vpop.f32.mrf.mxu0
    %v1317 = vadd.f32 %v1032, %v1316
    %v1318 = vand.u32 %v63, 4294901760
    %v1319 = vsub.f32 %v63, %v1318
    %v1320 = vand.u32 %v1319, 4294901760
    %1321 = vmatmul.f32.gmra.mxu0 %v1320
    %v1322 = vpop.f32.mrf.mxu0
    %v1323 = vadd.f32 %v1037, %v1322
    %v1324 = vand.u32 %v66, 4294901760
    %v1325 = vsub.f32 %v66, %v1324
    %v1326 = vand.u32 %v1325, 4294901760
    %1327 = vmatmul.f32.gmra.mxu0 %v1326
    %v1328 = vpop.f32.mrf.mxu0
    %v1329 = vadd.f32 %v1042, %v1328
    %v1330 = vand.u32 %v69, 4294901760
    %v1331 = vsub.f32 %v69, %v1330
    %v1332 = vand.u32 %v1331, 4294901760
    %1333 = vmatmul.f32.gmra.mxu0 %v1332
    %v1334 = vpop.f32.mrf.mxu0
    %v1335 = vadd.f32 %v1047, %v1334
    %v1336 = vand.u32 %v72, 4294901760
    %v1337 = vsub.f32 %v72, %v1336
    %v1338 = vand.u32 %v1337, 4294901760
    %1339 = vmatmul.f32.gmra.mxu0 %v1338
    %v1340 = vpop.f32.mrf.mxu0
    %v1341 = vadd.f32 %v1052, %v1340
    %v1342 = vand.u32 %v75, 4294901760
    %v1343 = vsub.f32 %v75, %v1342
    %v1344 = vand.u32 %v1343, 4294901760
    %1345 = vmatmul.f32.gmra.mxu0 %v1344
    %v1346 = vpop.f32.mrf.mxu0
    %v1347 = vadd.f32 %v1057, %v1346
    %v1348 = vand.u32 %v78, 4294901760
    %v1349 = vsub.f32 %v78, %v1348
    %v1350 = vand.u32 %v1349, 4294901760
    %1351 = vmatmul.f32.gmra.mxu0 %v1350
    %v1352 = vpop.f32.mrf.mxu0
    %v1353 = vadd.f32 %v1062, %v1352
    %v1354 = vand.u32 %v81, 4294901760
    %v1355 = vsub.f32 %v81, %v1354
    %v1356 = vand.u32 %v1355, 4294901760
    %1357 = vmatmul.f32.gmra.mxu0 %v1356
    %v1358 = vpop.f32.mrf.mxu0
    %v1359 = vadd.f32 %v1067, %v1358
    %v1360 = vand.u32 %v84, 4294901760
    %v1361 = vsub.f32 %v84, %v1360
    %v1362 = vand.u32 %v1361, 4294901760
    %1363 = vmatmul.f32.gmra.mxu0 %v1362
    %v1364 = vpop.f32.mrf.mxu0
    %v1365 = vadd.f32 %v1072, %v1364
    %v1366 = vand.u32 %v87, 4294901760
    %v1367 = vsub.f32 %v87, %v1366
    %v1368 = vand.u32 %v1367, 4294901760
    %1369 = vmatmul.f32.gmra.mxu0 %v1368
    %v1370 = vpop.f32.mrf.mxu0
    %v1371 = vadd.f32 %v1077, %v1370
    %v1372 = vand.u32 %v90, 4294901760
    %v1373 = vsub.f32 %v90, %v1372
    %v1374 = vand.u32 %v1373, 4294901760
    %1375 = vmatmul.f32.gmra.mxu0 %v1374
    %v1376 = vpop.f32.mrf.mxu0
    %v1377 = vadd.f32 %v1082, %v1376
    %v1378 = vand.u32 %v93, 4294901760
    %v1379 = vsub.f32 %v93, %v1378
    %v1380 = vand.u32 %v1379, 4294901760
    %1381 = vmatmul.f32.gmra.mxu0 %v1380
    %v1382 = vpop.f32.mrf.mxu0
    %v1383 = vadd.f32 %v1087, %v1382
    %v1384 = vand.u32 %v96, 4294901760
    %v1385 = vsub.f32 %v96, %v1384
    %v1386 = vand.u32 %v1385, 4294901760
    %1387 = vmatmul.f32.gmra.mxu0 %v1386
    %v1388 = vpop.f32.mrf.mxu0
    %v1389 = vadd.f32 %v1092, %v1388
    %v1390 = vand.u32 %v99, 4294901760
    %v1391 = vsub.f32 %v99, %v1390
    %v1392 = vand.u32 %v1391, 4294901760
    %1393 = vmatmul.f32.gmra.mxu0 %v1392
    %v1394 = vpop.f32.mrf.mxu0
    %v1395 = vadd.f32 %v1097, %v1394
    %v1396 = vand.u32 %v102, 4294901760
    %v1397 = vsub.f32 %v102, %v1396
    %v1398 = vand.u32 %v1397, 4294901760
    %1399 = vmatmul.f32.gmra.mxu0 %v1398
    %v1400 = vpop.f32.mrf.mxu0
    %v1401 = vadd.f32 %v1102, %v1400
    %v1402 = vand.u32 %v105, 4294901760
    %v1403 = vsub.f32 %v105, %v1402
    %v1404 = vand.u32 %v1403, 4294901760
    %1405 = vmatmul.f32.gmra.mxu0 %v1404
    %v1406 = vpop.f32.mrf.mxu0
    %v1407 = vadd.f32 %v1107, %v1406
    %v1408 = vand.u32 %v108, 4294901760
    %v1409 = vsub.f32 %v108, %v1408
    %v1410 = vand.u32 %v1409, 4294901760
    %1411 = vmatmul.f32.gmra.mxu0 %v1410
    %v1412 = vpop.f32.mrf.mxu0
    %v1413 = vadd.f32 %v1112, %v1412
    %v1414 = vand.u32 %v111, 4294901760
    %v1415 = vsub.f32 %v111, %v1414
    %v1416 = vand.u32 %v1415, 4294901760
    %1417 = vmatmul.f32.gmra.mxu0 %v1416
    %v1418 = vpop.f32.mrf.mxu0
    %v1419 = vadd.f32 %v1117, %v1418
    %v1420 = vand.u32 %v114, 4294901760
    %v1421 = vsub.f32 %v114, %v1420
    %v1422 = vand.u32 %v1421, 4294901760
    %1423 = vmatmul.f32.gmra.mxu0 %v1422
    %v1424 = vpop.f32.mrf.mxu0
    %v1425 = vadd.f32 %v1122, %v1424
    %v1426 = vand.u32 %v117, 4294901760
    %v1427 = vsub.f32 %v117, %v1426
    %v1428 = vand.u32 %v1427, 4294901760
    %1429 = vmatmul.f32.gmra.mxu0 %v1428
    %v1430 = vpop.f32.mrf.mxu0
    %v1431 = vadd.f32 %v1127, %v1430
    %v1432 = vand.u32 %v120, 4294901760
    %v1433 = vsub.f32 %v120, %v1432
    %v1434 = vand.u32 %v1433, 4294901760
    %1435 = vmatmul.f32.gmra.mxu0 %v1434
    %v1436 = vpop.f32.mrf.mxu0
    %v1437 = vadd.f32 %v1132, %v1436
    %v1438 = vand.u32 %v123, 4294901760
    %v1439 = vsub.f32 %v123, %v1438
    %v1440 = vand.u32 %v1439, 4294901760
    %1441 = vmatmul.f32.gmra.mxu0 %v1440
    %v1442 = vpop.f32.mrf.mxu0
    %v1443 = vadd.f32 %v1137, %v1442
    %v1444 = vand.u32 %v126, 4294901760
    %v1445 = vsub.f32 %v126, %v1444
    %v1446 = vand.u32 %v1445, 4294901760
    %1447 = vmatmul.f32.gmra.mxu0 %v1446
    %v1448 = vpop.f32.mrf.mxu0
    %v1449 = vadd.f32 %v1142, %v1448
    %v1450 = vand.u32 %v129, 4294901760
    %v1451 = vsub.f32 %v129, %v1450
    %v1452 = vand.u32 %v1451, 4294901760
    %1453 = vmatmul.f32.gmra.mxu0 %v1452
    %v1454 = vpop.f32.mrf.mxu0
    %v1455 = vadd.f32 %v1147, %v1454
    %v1456 = vand.u32 %v132, 4294901760
    %v1457 = vsub.f32 %v132, %v1456
    %v1458 = vand.u32 %v1457, 4294901760
    %1459 = vmatmul.f32.gmra.mxu0 %v1458
    %v1460 = vpop.f32.mrf.mxu0
    %v1461 = vadd.f32 %v1152, %v1460
    %v1462 = vand.u32 %v135, 4294901760
    %v1463 = vsub.f32 %v135, %v1462
    %v1464 = vand.u32 %v1463, 4294901760
    %1465 = vmatmul.f32.gmra.mxu0 %v1464
    %v1466 = vpop.f32.mrf.mxu0
    %v1467 = vadd.f32 %v1157, %v1466
    %v1468 = vand.u32 %v138, 4294901760
    %v1469 = vsub.f32 %v138, %v1468
    %v1470 = vand.u32 %v1469, 4294901760
    %1471 = vmatmul.f32.gmra.mxu0 %v1470
    %v1472 = vpop.f32.mrf.mxu0
    %v1473 = vadd.f32 %v1162, %v1472
    %v1474 = vand.u32 %v141, 4294901760
    %v1475 = vsub.f32 %v141, %v1474
    %v1476 = vand.u32 %v1475, 4294901760
    %1477 = vmatmul.f32.gmra.mxu0 %v1476
    %v1478 = vpop.f32.mrf.mxu0
    %v1479 = vadd.f32 %v1167, %v1478
    %v1480 = vand.u32 %v144, 4294901760
    %v1481 = vsub.f32 %v144, %v1480
    %v1482 = vand.u32 %v1481, 4294901760
    %1483 = vmatmul.f32.gmra.mxu0 %v1482
    %v1484 = vpop.f32.mrf.mxu0
    %v1485 = vadd.f32 %v1172, %v1484
    %v1486 = vand.u32 %v147, 4294901760
    %v1487 = vsub.f32 %v147, %v1486
    %v1488 = vand.u32 %v1487, 4294901760
    %1489 = vmatmul.f32.gmra.mxu0 %v1488
    %v1490 = vpop.f32.mrf.mxu0
    %v1491 = vadd.f32 %v1177, %v1490
    %v1492 = vand.u32 %v150, 4294901760
    %v1493 = vsub.f32 %v150, %v1492
    %v1494 = vand.u32 %v1493, 4294901760
    %1495 = vmatmul.f32.gmra.mxu0 %v1494
    %v1496 = vpop.f32.mrf.mxu0
    %v1497 = vadd.f32 %v1182, %v1496
    %v1498 = vand.u32 %v153, 4294901760
    %v1499 = vsub.f32 %v153, %v1498
    %v1500 = vand.u32 %v1499, 4294901760
    %1501 = vmatmul.f32.gmra.mxu0 %v1500
    %v1502 = vpop.f32.mrf.mxu0
    %v1503 = vadd.f32 %v1187, %v1502
    %v1504 = vand.u32 %v156, 4294901760
    %v1505 = vsub.f32 %v156, %v1504
    %v1506 = vand.u32 %v1505, 4294901760
    %1507 = vmatmul.f32.gmra.mxu0 %v1506
    %v1508 = vpop.f32.mrf.mxu0
    %v1509 = vadd.f32 %v1192, %v1508
    %v1510 = vand.u32 %v159, 4294901760
    %v1511 = vsub.f32 %v159, %v1510
    %v1512 = vand.u32 %v1511, 4294901760
    %1513 = vmatmul.f32.gmra.mxu0 %v1512
    %v1514 = vpop.f32.mrf.mxu0
    %v1515 = vadd.f32 %v1197, %v1514
    %v1516 = vand.u32 %v162, 4294901760
    %v1517 = vsub.f32 %v162, %v1516
    %v1518 = vand.u32 %v1517, 4294901760
    %1519 = vmatmul.f32.gmra.mxu0 %v1518
    %v1520 = vpop.f32.mrf.mxu0
    %v1521 = vadd.f32 %v1202, %v1520
    %v1522 = vand.u32 %v165, 4294901760
    %v1523 = vsub.f32 %v165, %v1522
    %v1524 = vand.u32 %v1523, 4294901760
    %1525 = vmatmul.f32.gmra.mxu0 %v1524
    %v1526 = vpop.f32.mrf.mxu0
    %v1527 = vadd.f32 %v1207, %v1526
    %v1528 = vand.u32 %v168, 4294901760
    %v1529 = vsub.f32 %v168, %v1528
    %v1530 = vand.u32 %v1529, 4294901760
    %1531 = vmatmul.f32.gmra.mxu0 %v1530
    %v1532 = vpop.f32.mrf.mxu0
    %v1533 = vadd.f32 %v1212, %v1532
    %1534 = vdwg.mxu0
    %v1535 = vand.u32 %v186, 4294901760
    %v1536 = vsub.f32 %v186, %v1535
    %v1537 = vand.u32 %v1536, 4294901760
    %1538 = vmatpush.msra.mxu0 %v1537
    %v1539 = vand.u32 %v185, 4294901760
    %v1540 = vsub.f32 %v185, %v1539
    %v1541 = vand.u32 %v1540, 4294901760
    %1542 = vmatpush.msra.mxu0 %v1541
    %v1543 = vand.u32 %v184, 4294901760
    %v1544 = vsub.f32 %v184, %v1543
    %v1545 = vand.u32 %v1544, 4294901760
    %1546 = vmatpush.msra.mxu0 %v1545
    %v1547 = vand.u32 %v183, 4294901760
    %v1548 = vsub.f32 %v183, %v1547
    %v1549 = vand.u32 %v1548, 4294901760
    %1550 = vmatpush.msra.mxu0 %v1549
    %v1551 = vand.u32 %v182, 4294901760
    %v1552 = vsub.f32 %v182, %v1551
    %v1553 = vand.u32 %v1552, 4294901760
    %1554 = vmatpush.msra.mxu0 %v1553
    %v1555 = vand.u32 %v181, 4294901760
    %v1556 = vsub.f32 %v181, %v1555
    %v1557 = vand.u32 %v1556, 4294901760
    %1558 = vmatpush.msra.mxu0 %v1557
    %v1559 = vand.u32 %v180, 4294901760
    %v1560 = vsub.f32 %v180, %v1559
    %v1561 = vand.u32 %v1560, 4294901760
    %1562 = vmatpush.msra.mxu0 %v1561
    %v1563 = vand.u32 %v179, 4294901760
    %v1564 = vsub.f32 %v179, %v1563
    %v1565 = vand.u32 %v1564, 4294901760
    %1566 = vmatpush.msra.mxu0 %v1565
    %v1567 = vand.u32 %v178, 4294901760
    %v1568 = vsub.f32 %v178, %v1567
    %v1569 = vand.u32 %v1568, 4294901760
    %1570 = vmatpush.msra.mxu0 %v1569
    %v1571 = vand.u32 %v177, 4294901760
    %v1572 = vsub.f32 %v177, %v1571
    %v1573 = vand.u32 %v1572, 4294901760
    %1574 = vmatpush.msra.mxu0 %v1573
    %v1575 = vand.u32 %v176, 4294901760
    %v1576 = vsub.f32 %v176, %v1575
    %v1577 = vand.u32 %v1576, 4294901760
    %1578 = vmatpush.msra.mxu0 %v1577
    %v1579 = vand.u32 %v175, 4294901760
    %v1580 = vsub.f32 %v175, %v1579
    %v1581 = vand.u32 %v1580, 4294901760
    %1582 = vmatpush.msra.mxu0 %v1581
    %v1583 = vand.u32 %v174, 4294901760
    %v1584 = vsub.f32 %v174, %v1583
    %v1585 = vand.u32 %v1584, 4294901760
    %1586 = vmatpush.msra.mxu0 %v1585
    %v1587 = vand.u32 %v173, 4294901760
    %v1588 = vsub.f32 %v173, %v1587
    %v1589 = vand.u32 %v1588, 4294901760
    %1590 = vmatpush.msra.mxu0 %v1589
    %v1591 = vand.u32 %v172, 4294901760
    %v1592 = vsub.f32 %v172, %v1591
    %v1593 = vand.u32 %v1592, 4294901760
    %1594 = vmatpush.msra.mxu0 %v1593
    %v1595 = vand.u32 %v171, 4294901760
    %v1596 = vsub.f32 %v171, %v1595
    %v1597 = vand.u32 %v1596, 4294901760
    %1598 = vmatpush.msra.mxu0 %v1597
    %v1599 = vand.u32 %v27, 4294901760
    %1600 = vmatmul.f32.gmra.mxu0 %v1599
    %v1601 = vpop.f32.mrf.mxu0
    %v1602 = vadd.f32 %v1251, %v1601
    %v1603 = vand.u32 %v30, 4294901760
    %1604 = vmatmul.f32.gmra.mxu0 %v1603
    %v1605 = vpop.f32.mrf.mxu0
    %v1606 = vadd.f32 %v1257, %v1605
    %v1607 = vand.u32 %v33, 4294901760
    %1608 = vmatmul.f32.gmra.mxu0 %v1607
    %v1609 = vpop.f32.mrf.mxu0
    %v1610 = vadd.f32 %v1263, %v1609
    %v1611 = vand.u32 %v36, 4294901760
    %1612 = vmatmul.f32.gmra.mxu0 %v1611
    %v1613 = vpop.f32.mrf.mxu0
    %v1614 = vadd.f32 %v1269, %v1613
    %v1615 = vand.u32 %v39, 4294901760
    %1616 = vmatmul.f32.gmra.mxu0 %v1615
    %v1617 = vpop.f32.mrf.mxu0
    %v1618 = vadd.f32 %v1275, %v1617
    %v1619 = vand.u32 %v42, 4294901760
    %1620 = vmatmul.f32.gmra.mxu0 %v1619
    %v1621 = vpop.f32.mrf.mxu0
    %v1622 = vadd.f32 %v1281, %v1621
    %v1623 = vand.u32 %v45, 4294901760
    %1624 = vmatmul.f32.gmra.mxu0 %v1623
    %v1625 = vpop.f32.mrf.mxu0
    %v1626 = vadd.f32 %v1287, %v1625
    %v1627 = vand.u32 %v48, 4294901760
    %1628 = vmatmul.f32.gmra.mxu0 %v1627
    %v1629 = vpop.f32.mrf.mxu0
    %v1630 = vadd.f32 %v1293, %v1629
    %v1631 = vand.u32 %v51, 4294901760
    %1632 = vmatmul.f32.gmra.mxu0 %v1631
    %v1633 = vpop.f32.mrf.mxu0
    %v1634 = vadd.f32 %v1299, %v1633
    %v1635 = vand.u32 %v54, 4294901760
    %1636 = vmatmul.f32.gmra.mxu0 %v1635
    %v1637 = vpop.f32.mrf.mxu0
    %v1638 = vadd.f32 %v1305, %v1637
    %v1639 = vand.u32 %v57, 4294901760
    %1640 = vmatmul.f32.gmra.mxu0 %v1639
    %v1641 = vpop.f32.mrf.mxu0
    %v1642 = vadd.f32 %v1311, %v1641
    %v1643 = vand.u32 %v60, 4294901760
    %1644 = vmatmul.f32.gmra.mxu0 %v1643
    %v1645 = vpop.f32.mrf.mxu0
    %v1646 = vadd.f32 %v1317, %v1645
    %v1647 = vand.u32 %v63, 4294901760
    %1648 = vmatmul.f32.gmra.mxu0 %v1647
    %v1649 = vpop.f32.mrf.mxu0
    %v1650 = vadd.f32 %v1323, %v1649
    %v1651 = vand.u32 %v66, 4294901760
    %1652 = vmatmul.f32.gmra.mxu0 %v1651
    %v1653 = vpop.f32.mrf.mxu0
    %v1654 = vadd.f32 %v1329, %v1653
    %v1655 = vand.u32 %v69, 4294901760
    %1656 = vmatmul.f32.gmra.mxu0 %v1655
    %v1657 = vpop.f32.mrf.mxu0
    %v1658 = vadd.f32 %v1335, %v1657
    %v1659 = vand.u32 %v72, 4294901760
    %1660 = vmatmul.f32.gmra.mxu0 %v1659
    %v1661 = vpop.f32.mrf.mxu0
    %v1662 = vadd.f32 %v1341, %v1661
    %v1663 = vand.u32 %v75, 4294901760
    %1664 = vmatmul.f32.gmra.mxu0 %v1663
    %v1665 = vpop.f32.mrf.mxu0
    %v1666 = vadd.f32 %v1347, %v1665
    %v1667 = vand.u32 %v78, 4294901760
    %1668 = vmatmul.f32.gmra.mxu0 %v1667
    %v1669 = vpop.f32.mrf.mxu0
    %v1670 = vadd.f32 %v1353, %v1669
    %v1671 = vand.u32 %v81, 4294901760
    %1672 = vmatmul.f32.gmra.mxu0 %v1671
    %v1673 = vpop.f32.mrf.mxu0
    %v1674 = vadd.f32 %v1359, %v1673
    %v1675 = vand.u32 %v84, 4294901760
    %1676 = vmatmul.f32.gmra.mxu0 %v1675
    %v1677 = vpop.f32.mrf.mxu0
    %v1678 = vadd.f32 %v1365, %v1677
    %v1679 = vand.u32 %v87, 4294901760
    %1680 = vmatmul.f32.gmra.mxu0 %v1679
    %v1681 = vpop.f32.mrf.mxu0
    %v1682 = vadd.f32 %v1371, %v1681
    %v1683 = vand.u32 %v90, 4294901760
    %1684 = vmatmul.f32.gmra.mxu0 %v1683
    %v1685 = vpop.f32.mrf.mxu0
    %v1686 = vadd.f32 %v1377, %v1685
    %v1687 = vand.u32 %v93, 4294901760
    %1688 = vmatmul.f32.gmra.mxu0 %v1687
    %v1689 = vpop.f32.mrf.mxu0
    %v1690 = vadd.f32 %v1383, %v1689
    %v1691 = vand.u32 %v96, 4294901760
    %1692 = vmatmul.f32.gmra.mxu0 %v1691
    %v1693 = vpop.f32.mrf.mxu0
    %v1694 = vadd.f32 %v1389, %v1693
    %v1695 = vand.u32 %v99, 4294901760
    %1696 = vmatmul.f32.gmra.mxu0 %v1695
    %v1697 = vpop.f32.mrf.mxu0
    %v1698 = vadd.f32 %v1395, %v1697
    %v1699 = vand.u32 %v102, 4294901760
    %1700 = vmatmul.f32.gmra.mxu0 %v1699
    %v1701 = vpop.f32.mrf.mxu0
    %v1702 = vadd.f32 %v1401, %v1701
    %v1703 = vand.u32 %v105, 4294901760
    %1704 = vmatmul.f32.gmra.mxu0 %v1703
    %v1705 = vpop.f32.mrf.mxu0
    %v1706 = vadd.f32 %v1407, %v1705
    %v1707 = vand.u32 %v108, 4294901760
    %1708 = vmatmul.f32.gmra.mxu0 %v1707
    %v1709 = vpop.f32.mrf.mxu0
    %v1710 = vadd.f32 %v1413, %v1709
    %v1711 = vand.u32 %v111, 4294901760
    %1712 = vmatmul.f32.gmra.mxu0 %v1711
    %v1713 = vpop.f32.mrf.mxu0
    %v1714 = vadd.f32 %v1419, %v1713
    %v1715 = vand.u32 %v114, 4294901760
    %1716 = vmatmul.f32.gmra.mxu0 %v1715
    %v1717 = vpop.f32.mrf.mxu0
    %v1718 = vadd.f32 %v1425, %v1717
    %v1719 = vand.u32 %v117, 4294901760
    %1720 = vmatmul.f32.gmra.mxu0 %v1719
    %v1721 = vpop.f32.mrf.mxu0
    %v1722 = vadd.f32 %v1431, %v1721
    %v1723 = vand.u32 %v120, 4294901760
    %1724 = vmatmul.f32.gmra.mxu0 %v1723
    %v1725 = vpop.f32.mrf.mxu0
    %v1726 = vadd.f32 %v1437, %v1725
    %v1727 = vand.u32 %v123, 4294901760
    %1728 = vmatmul.f32.gmra.mxu0 %v1727
    %v1729 = vpop.f32.mrf.mxu0
    %v1730 = vadd.f32 %v1443, %v1729
    %v1731 = vand.u32 %v126, 4294901760
    %1732 = vmatmul.f32.gmra.mxu0 %v1731
    %v1733 = vpop.f32.mrf.mxu0
    %v1734 = vadd.f32 %v1449, %v1733
    %v1735 = vand.u32 %v129, 4294901760
    %1736 = vmatmul.f32.gmra.mxu0 %v1735
    %v1737 = vpop.f32.mrf.mxu0
    %v1738 = vadd.f32 %v1455, %v1737
    %v1739 = vand.u32 %v132, 4294901760
    %1740 = vmatmul.f32.gmra.mxu0 %v1739
    %v1741 = vpop.f32.mrf.mxu0
    %v1742 = vadd.f32 %v1461, %v1741
    %v1743 = vand.u32 %v135, 4294901760
    %1744 = vmatmul.f32.gmra.mxu0 %v1743
    %v1745 = vpop.f32.mrf.mxu0
    %v1746 = vadd.f32 %v1467, %v1745
    %v1747 = vand.u32 %v138, 4294901760
    %1748 = vmatmul.f32.gmra.mxu0 %v1747
    %v1749 = vpop.f32.mrf.mxu0
    %v1750 = vadd.f32 %v1473, %v1749
    %v1751 = vand.u32 %v141, 4294901760
    %1752 = vmatmul.f32.gmra.mxu0 %v1751
    %v1753 = vpop.f32.mrf.mxu0
    %v1754 = vadd.f32 %v1479, %v1753
    %v1755 = vand.u32 %v144, 4294901760
    %1756 = vmatmul.f32.gmra.mxu0 %v1755
    %v1757 = vpop.f32.mrf.mxu0
    %v1758 = vadd.f32 %v1485, %v1757
    %v1759 = vand.u32 %v147, 4294901760
    %1760 = vmatmul.f32.gmra.mxu0 %v1759
    %v1761 = vpop.f32.mrf.mxu0
    %v1762 = vadd.f32 %v1491, %v1761
    %v1763 = vand.u32 %v150, 4294901760
    %1764 = vmatmul.f32.gmra.mxu0 %v1763
    %v1765 = vpop.f32.mrf.mxu0
    %v1766 = vadd.f32 %v1497, %v1765
    %v1767 = vand.u32 %v153, 4294901760
    %1768 = vmatmul.f32.gmra.mxu0 %v1767
    %v1769 = vpop.f32.mrf.mxu0
    %v1770 = vadd.f32 %v1503, %v1769
    %v1771 = vand.u32 %v156, 4294901760
    %1772 = vmatmul.f32.gmra.mxu0 %v1771
    %v1773 = vpop.f32.mrf.mxu0
    %v1774 = vadd.f32 %v1509, %v1773
    %v1775 = vand.u32 %v159, 4294901760
    %1776 = vmatmul.f32.gmra.mxu0 %v1775
    %v1777 = vpop.f32.mrf.mxu0
    %v1778 = vadd.f32 %v1515, %v1777
    %v1779 = vand.u32 %v162, 4294901760
    %1780 = vmatmul.f32.gmra.mxu0 %v1779
    %v1781 = vpop.f32.mrf.mxu0
    %v1782 = vadd.f32 %v1521, %v1781
    %v1783 = vand.u32 %v165, 4294901760
    %1784 = vmatmul.f32.gmra.mxu0 %v1783
    %v1785 = vpop.f32.mrf.mxu0
    %v1786 = vadd.f32 %v1527, %v1785
    %v1787 = vand.u32 %v168, 4294901760
    %1788 = vmatmul.f32.gmra.mxu0 %v1787
    %v1789 = vpop.f32.mrf.mxu0
    %v1790 = vadd.f32 %v1533, %v1789
    %1791 = vdwg.mxu0
    %v1792 = vand.u32 %v186, 4294901760
    %1793 = vmatpush.msra.mxu0 %v1792
    %v1794 = vand.u32 %v185, 4294901760
    %1795 = vmatpush.msra.mxu0 %v1794
    %v1796 = vand.u32 %v184, 4294901760
    %1797 = vmatpush.msra.mxu0 %v1796
    %v1798 = vand.u32 %v183, 4294901760
    %1799 = vmatpush.msra.mxu0 %v1798
    %v1800 = vand.u32 %v182, 4294901760
    %1801 = vmatpush.msra.mxu0 %v1800
    %v1802 = vand.u32 %v181, 4294901760
    %1803 = vmatpush.msra.mxu0 %v1802
    %v1804 = vand.u32 %v180, 4294901760
    %1805 = vmatpush.msra.mxu0 %v1804
    %v1806 = vand.u32 %v179, 4294901760
    %1807 = vmatpush.msra.mxu0 %v1806
    %v1808 = vand.u32 %v178, 4294901760
    %1809 = vmatpush.msra.mxu0 %v1808
    %v1810 = vand.u32 %v177, 4294901760
    %1811 = vmatpush.msra.mxu0 %v1810
    %v1812 = vand.u32 %v176, 4294901760
    %1813 = vmatpush.msra.mxu0 %v1812
    %v1814 = vand.u32 %v175, 4294901760
    %1815 = vmatpush.msra.mxu0 %v1814
    %v1816 = vand.u32 %v174, 4294901760
    %1817 = vmatpush.msra.mxu0 %v1816
    %v1818 = vand.u32 %v173, 4294901760
    %1819 = vmatpush.msra.mxu0 %v1818
    %v1820 = vand.u32 %v172, 4294901760
    %1821 = vmatpush.msra.mxu0 %v1820
    %v1822 = vand.u32 %v171, 4294901760
    %1823 = vmatpush.msra.mxu0 %v1822
    %v1824 = vand.u32 %v27, 4294901760
    %1825 = vmatmul.f32.gmra.mxu0 %v1824
    %v1826 = vpop.f32.mrf.mxu0
    %v1827 = vadd.f32 %v1602, %v1826
    %v1828 = vand.u32 %v30, 4294901760
    %1829 = vmatmul.f32.gmra.mxu0 %v1828
    %v1830 = vpop.f32.mrf.mxu0
    %v1831 = vadd.f32 %v1606, %v1830
    %v1832 = vand.u32 %v33, 4294901760
    %1833 = vmatmul.f32.gmra.mxu0 %v1832
    %v1834 = vpop.f32.mrf.mxu0
    %v1835 = vadd.f32 %v1610, %v1834
    %v1836 = vand.u32 %v36, 4294901760
    %1837 = vmatmul.f32.gmra.mxu0 %v1836
    %v1838 = vpop.f32.mrf.mxu0
    %v1839 = vadd.f32 %v1614, %v1838
    %v1840 = vand.u32 %v39, 4294901760
    %1841 = vmatmul.f32.gmra.mxu0 %v1840
    %v1842 = vpop.f32.mrf.mxu0
    %v1843 = vadd.f32 %v1618, %v1842
    %v1844 = vand.u32 %v42, 4294901760
    %1845 = vmatmul.f32.gmra.mxu0 %v1844
    %v1846 = vpop.f32.mrf.mxu0
    %v1847 = vadd.f32 %v1622, %v1846
    %v1848 = vand.u32 %v45, 4294901760
    %1849 = vmatmul.f32.gmra.mxu0 %v1848
    %v1850 = vpop.f32.mrf.mxu0
    %v1851 = vadd.f32 %v1626, %v1850
    %v1852 = vand.u32 %v48, 4294901760
    %1853 = vmatmul.f32.gmra.mxu0 %v1852
    %v1854 = vpop.f32.mrf.mxu0
    %v1855 = vadd.f32 %v1630, %v1854
    %v1856 = vand.u32 %v51, 4294901760
    %1857 = vmatmul.f32.gmra.mxu0 %v1856
    %v1858 = vpop.f32.mrf.mxu0
    %v1859 = vadd.f32 %v1634, %v1858
    %v1860 = vand.u32 %v54, 4294901760
    %1861 = vmatmul.f32.gmra.mxu0 %v1860
    %v1862 = vpop.f32.mrf.mxu0
    %v1863 = vadd.f32 %v1638, %v1862
    %v1864 = vand.u32 %v57, 4294901760
    %1865 = vmatmul.f32.gmra.mxu0 %v1864
    %v1866 = vpop.f32.mrf.mxu0
    %v1867 = vadd.f32 %v1642, %v1866
    %v1868 = vand.u32 %v60, 4294901760
    %1869 = vmatmul.f32.gmra.mxu0 %v1868
    %v1870 = vpop.f32.mrf.mxu0
    %v1871 = vadd.f32 %v1646, %v1870
    %v1872 = vand.u32 %v63, 4294901760
    %1873 = vmatmul.f32.gmra.mxu0 %v1872
    %v1874 = vpop.f32.mrf.mxu0
    %v1875 = vadd.f32 %v1650, %v1874
    %v1876 = vand.u32 %v66, 4294901760
    %1877 = vmatmul.f32.gmra.mxu0 %v1876
    %v1878 = vpop.f32.mrf.mxu0
    %v1879 = vadd.f32 %v1654, %v1878
    %v1880 = vand.u32 %v69, 4294901760
    %1881 = vmatmul.f32.gmra.mxu0 %v1880
    %v1882 = vpop.f32.mrf.mxu0
    %v1883 = vadd.f32 %v1658, %v1882
    %v1884 = vand.u32 %v72, 4294901760
    %1885 = vmatmul.f32.gmra.mxu0 %v1884
    %v1886 = vpop.f32.mrf.mxu0
    %v1887 = vadd.f32 %v1662, %v1886
    %v1888 = vand.u32 %v75, 4294901760
    %1889 = vmatmul.f32.gmra.mxu0 %v1888
    %v1890 = vpop.f32.mrf.mxu0
    %v1891 = vadd.f32 %v1666, %v1890
    %v1892 = vand.u32 %v78, 4294901760
    %1893 = vmatmul.f32.gmra.mxu0 %v1892
    %v1894 = vpop.f32.mrf.mxu0
    %v1895 = vadd.f32 %v1670, %v1894
    %v1896 = vand.u32 %v81, 4294901760
    %1897 = vmatmul.f32.gmra.mxu0 %v1896
    %v1898 = vpop.f32.mrf.mxu0
    %v1899 = vadd.f32 %v1674, %v1898
    %v1900 = vand.u32 %v84, 4294901760
    %1901 = vmatmul.f32.gmra.mxu0 %v1900
    %v1902 = vpop.f32.mrf.mxu0
    %v1903 = vadd.f32 %v1678, %v1902
    %v1904 = vand.u32 %v87, 4294901760
    %1905 = vmatmul.f32.gmra.mxu0 %v1904
    %v1906 = vpop.f32.mrf.mxu0
    %v1907 = vadd.f32 %v1682, %v1906
    %v1908 = vand.u32 %v90, 4294901760
    %1909 = vmatmul.f32.gmra.mxu0 %v1908
    %v1910 = vpop.f32.mrf.mxu0
    %v1911 = vadd.f32 %v1686, %v1910
    %v1912 = vand.u32 %v93, 4294901760
    %1913 = vmatmul.f32.gmra.mxu0 %v1912
    %v1914 = vpop.f32.mrf.mxu0
    %v1915 = vadd.f32 %v1690, %v1914
    %v1916 = vand.u32 %v96, 4294901760
    %1917 = vmatmul.f32.gmra.mxu0 %v1916
    %v1918 = vpop.f32.mrf.mxu0
    %v1919 = vadd.f32 %v1694, %v1918
    %v1920 = vand.u32 %v99, 4294901760
    %1921 = vmatmul.f32.gmra.mxu0 %v1920
    %v1922 = vpop.f32.mrf.mxu0
    %v1923 = vadd.f32 %v1698, %v1922
    %v1924 = vand.u32 %v102, 4294901760
    %1925 = vmatmul.f32.gmra.mxu0 %v1924
    %v1926 = vpop.f32.mrf.mxu0
    %v1927 = vadd.f32 %v1702, %v1926
    %v1928 = vand.u32 %v105, 4294901760
    %1929 = vmatmul.f32.gmra.mxu0 %v1928
    %v1930 = vpop.f32.mrf.mxu0
    %v1931 = vadd.f32 %v1706, %v1930
    %v1932 = vand.u32 %v108, 4294901760
    %1933 = vmatmul.f32.gmra.mxu0 %v1932
    %v1934 = vpop.f32.mrf.mxu0
    %v1935 = vadd.f32 %v1710, %v1934
    %v1936 = vand.u32 %v111, 4294901760
    %1937 = vmatmul.f32.gmra.mxu0 %v1936
    %v1938 = vpop.f32.mrf.mxu0
    %v1939 = vadd.f32 %v1714, %v1938
    %v1940 = vand.u32 %v114, 4294901760
    %1941 = vmatmul.f32.gmra.mxu0 %v1940
    %v1942 = vpop.f32.mrf.mxu0
    %v1943 = vadd.f32 %v1718, %v1942
    %v1944 = vand.u32 %v117, 4294901760
    %1945 = vmatmul.f32.gmra.mxu0 %v1944
    %v1946 = vpop.f32.mrf.mxu0
    %v1947 = vadd.f32 %v1722, %v1946
    %v1948 = vand.u32 %v120, 4294901760
    %1949 = vmatmul.f32.gmra.mxu0 %v1948
    %v1950 = vpop.f32.mrf.mxu0
    %v1951 = vadd.f32 %v1726, %v1950
    %v1952 = vand.u32 %v123, 4294901760
    %1953 = vmatmul.f32.gmra.mxu0 %v1952
    %v1954 = vpop.f32.mrf.mxu0
    %v1955 = vadd.f32 %v1730, %v1954
    %v1956 = vand.u32 %v126, 4294901760
    %1957 = vmatmul.f32.gmra.mxu0 %v1956
    %v1958 = vpop.f32.mrf.mxu0
    %v1959 = vadd.f32 %v1734, %v1958
    %v1960 = vand.u32 %v129, 4294901760
    %1961 = vmatmul.f32.gmra.mxu0 %v1960
    %v1962 = vpop.f32.mrf.mxu0
    %v1963 = vadd.f32 %v1738, %v1962
    %v1964 = vand.u32 %v132, 4294901760
    %1965 = vmatmul.f32.gmra.mxu0 %v1964
    %v1966 = vpop.f32.mrf.mxu0
    %v1967 = vadd.f32 %v1742, %v1966
    %v1968 = vand.u32 %v135, 4294901760
    %1969 = vmatmul.f32.gmra.mxu0 %v1968
    %v1970 = vpop.f32.mrf.mxu0
    %v1971 = vadd.f32 %v1746, %v1970
    %v1972 = vand.u32 %v138, 4294901760
    %1973 = vmatmul.f32.gmra.mxu0 %v1972
    %v1974 = vpop.f32.mrf.mxu0
    %v1975 = vadd.f32 %v1750, %v1974
    %v1976 = vand.u32 %v141, 4294901760
    %1977 = vmatmul.f32.gmra.mxu0 %v1976
    %v1978 = vpop.f32.mrf.mxu0
    %v1979 = vadd.f32 %v1754, %v1978
    %v1980 = vand.u32 %v144, 4294901760
    %1981 = vmatmul.f32.gmra.mxu0 %v1980
    %v1982 = vpop.f32.mrf.mxu0
    %v1983 = vadd.f32 %v1758, %v1982
    %v1984 = vand.u32 %v147, 4294901760
    %1985 = vmatmul.f32.gmra.mxu0 %v1984
    %v1986 = vpop.f32.mrf.mxu0
    %v1987 = vadd.f32 %v1762, %v1986
    %v1988 = vand.u32 %v150, 4294901760
    %1989 = vmatmul.f32.gmra.mxu0 %v1988
    %v1990 = vpop.f32.mrf.mxu0
    %v1991 = vadd.f32 %v1766, %v1990
    %v1992 = vand.u32 %v153, 4294901760
    %1993 = vmatmul.f32.gmra.mxu0 %v1992
    %v1994 = vpop.f32.mrf.mxu0
    %v1995 = vadd.f32 %v1770, %v1994
    %v1996 = vand.u32 %v156, 4294901760
    %1997 = vmatmul.f32.gmra.mxu0 %v1996
    %v1998 = vpop.f32.mrf.mxu0
    %v1999 = vadd.f32 %v1774, %v1998
    %v2000 = vand.u32 %v159, 4294901760
    %2001 = vmatmul.f32.gmra.mxu0 %v2000
    %v2002 = vpop.f32.mrf.mxu0
    %v2003 = vadd.f32 %v1778, %v2002
    %v2004 = vand.u32 %v162, 4294901760
    %2005 = vmatmul.f32.gmra.mxu0 %v2004
    %v2006 = vpop.f32.mrf.mxu0
    %v2007 = vadd.f32 %v1782, %v2006
    %v2008 = vand.u32 %v165, 4294901760
    %2009 = vmatmul.f32.gmra.mxu0 %v2008
    %v2010 = vpop.f32.mrf.mxu0
    %v2011 = vadd.f32 %v1786, %v2010
    %v2012 = vand.u32 %v168, 4294901760
    %2013 = vmatmul.f32.gmra.mxu0 %v2012
    %v2014 = vpop.f32.mrf.mxu0
    %v2015 = vadd.f32 %v1790, %v2014
    %2016 = vdwg.mxu0
    %v2017 = vand.u32 %v202, 4294901760
    %2018 = vmatpush.msra.mxu0 %v2017
    %v2019 = vand.u32 %v201, 4294901760
    %2020 = vmatpush.msra.mxu0 %v2019
    %v2021 = vand.u32 %v200, 4294901760
    %2022 = vmatpush.msra.mxu0 %v2021
    %v2023 = vand.u32 %v199, 4294901760
    %2024 = vmatpush.msra.mxu0 %v2023
    %v2025 = vand.u32 %v198, 4294901760
    %2026 = vmatpush.msra.mxu0 %v2025
    %v2027 = vand.u32 %v197, 4294901760
    %2028 = vmatpush.msra.mxu0 %v2027
    %v2029 = vand.u32 %v196, 4294901760
    %2030 = vmatpush.msra.mxu0 %v2029
    %v2031 = vand.u32 %v195, 4294901760
    %2032 = vmatpush.msra.mxu0 %v2031
    %v2033 = vand.u32 %v194, 4294901760
    %2034 = vmatpush.msra.mxu0 %v2033
    %v2035 = vand.u32 %v193, 4294901760
    %2036 = vmatpush.msra.mxu0 %v2035
    %v2037 = vand.u32 %v192, 4294901760
    %2038 = vmatpush.msra.mxu0 %v2037
    %v2039 = vand.u32 %v191, 4294901760
    %2040 = vmatpush.msra.mxu0 %v2039
    %v2041 = vand.u32 %v190, 4294901760
    %2042 = vmatpush.msra.mxu0 %v2041
    %v2043 = vand.u32 %v189, 4294901760
    %2044 = vmatpush.msra.mxu0 %v2043
    %v2045 = vand.u32 %v188, 4294901760
    %2046 = vmatpush.msra.mxu0 %v2045
    %v2047 = vand.u32 %v187, 4294901760
    %2048 = vmatpush.msra.mxu0 %v2047
    %v2049 = vand.u32 %v28, 4294901760
    %v2050 = vsub.f32 %v28, %v2049
    %v2051 = vand.u32 %v2050, 4294901760
    %v2052 = vsub.f32 %v2050, %v2051
    %v2053 = vand.u32 %v2052, 4294901760
    %2054 = vmatmul.f32.gmra.mxu0 %v2053
    %v2055 = vpop.f32.mrf.mxu0
    %v2056 = vadd.f32 %v1827, %v2055
    %v2057 = vand.u32 %v31, 4294901760
    %v2058 = vsub.f32 %v31, %v2057
    %v2059 = vand.u32 %v2058, 4294901760
    %v2060 = vsub.f32 %v2058, %v2059
    %v2061 = vand.u32 %v2060, 4294901760
    %2062 = vmatmul.f32.gmra.mxu0 %v2061
    %v2063 = vpop.f32.mrf.mxu0
    %v2064 = vadd.f32 %v1831, %v2063
    %v2065 = vand.u32 %v34, 4294901760
    %v2066 = vsub.f32 %v34, %v2065
    %v2067 = vand.u32 %v2066, 4294901760
    %v2068 = vsub.f32 %v2066, %v2067
    %v2069 = vand.u32 %v2068, 4294901760
    %2070 = vmatmul.f32.gmra.mxu0 %v2069
    %v2071 = vpop.f32.mrf.mxu0
    %v2072 = vadd.f32 %v1835, %v2071
    %v2073 = vand.u32 %v37, 4294901760
    %v2074 = vsub.f32 %v37, %v2073
    %v2075 = vand.u32 %v2074, 4294901760
    %v2076 = vsub.f32 %v2074, %v2075
    %v2077 = vand.u32 %v2076, 4294901760
    %2078 = vmatmul.f32.gmra.mxu0 %v2077
    %v2079 = vpop.f32.mrf.mxu0
    %v2080 = vadd.f32 %v1839, %v2079
    %v2081 = vand.u32 %v40, 4294901760
    %v2082 = vsub.f32 %v40, %v2081
    %v2083 = vand.u32 %v2082, 4294901760
    %v2084 = vsub.f32 %v2082, %v2083
    %v2085 = vand.u32 %v2084, 4294901760
    %2086 = vmatmul.f32.gmra.mxu0 %v2085
    %v2087 = vpop.f32.mrf.mxu0
    %v2088 = vadd.f32 %v1843, %v2087
    %v2089 = vand.u32 %v43, 4294901760
    %v2090 = vsub.f32 %v43, %v2089
    %v2091 = vand.u32 %v2090, 4294901760
    %v2092 = vsub.f32 %v2090, %v2091
    %v2093 = vand.u32 %v2092, 4294901760
    %2094 = vmatmul.f32.gmra.mxu0 %v2093
    %v2095 = vpop.f32.mrf.mxu0
    %v2096 = vadd.f32 %v1847, %v2095
    %v2097 = vand.u32 %v46, 4294901760
    %v2098 = vsub.f32 %v46, %v2097
    %v2099 = vand.u32 %v2098, 4294901760
    %v2100 = vsub.f32 %v2098, %v2099
    %v2101 = vand.u32 %v2100, 4294901760
    %2102 = vmatmul.f32.gmra.mxu0 %v2101
    %v2103 = vpop.f32.mrf.mxu0
    %v2104 = vadd.f32 %v1851, %v2103
    %v2105 = vand.u32 %v49, 4294901760
    %v2106 = vsub.f32 %v49, %v2105
    %v2107 = vand.u32 %v2106, 4294901760
    %v2108 = vsub.f32 %v2106, %v2107
    %v2109 = vand.u32 %v2108, 4294901760
    %2110 = vmatmul.f32.gmra.mxu0 %v2109
    %v2111 = vpop.f32.mrf.mxu0
    %v2112 = vadd.f32 %v1855, %v2111
    %v2113 = vand.u32 %v52, 4294901760
    %v2114 = vsub.f32 %v52, %v2113
    %v2115 = vand.u32 %v2114, 4294901760
    %v2116 = vsub.f32 %v2114, %v2115
    %v2117 = vand.u32 %v2116, 4294901760
    %2118 = vmatmul.f32.gmra.mxu0 %v2117
    %v2119 = vpop.f32.mrf.mxu0
    %v2120 = vadd.f32 %v1859, %v2119
    %v2121 = vand.u32 %v55, 4294901760
    %v2122 = vsub.f32 %v55, %v2121
    %v2123 = vand.u32 %v2122, 4294901760
    %v2124 = vsub.f32 %v2122, %v2123
    %v2125 = vand.u32 %v2124, 4294901760
    %2126 = vmatmul.f32.gmra.mxu0 %v2125
    %v2127 = vpop.f32.mrf.mxu0
    %v2128 = vadd.f32 %v1863, %v2127
    %v2129 = vand.u32 %v58, 4294901760
    %v2130 = vsub.f32 %v58, %v2129
    %v2131 = vand.u32 %v2130, 4294901760
    %v2132 = vsub.f32 %v2130, %v2131
    %v2133 = vand.u32 %v2132, 4294901760
    %2134 = vmatmul.f32.gmra.mxu0 %v2133
    %v2135 = vpop.f32.mrf.mxu0
    %v2136 = vadd.f32 %v1867, %v2135
    %v2137 = vand.u32 %v61, 4294901760
    %v2138 = vsub.f32 %v61, %v2137
    %v2139 = vand.u32 %v2138, 4294901760
    %v2140 = vsub.f32 %v2138, %v2139
    %v2141 = vand.u32 %v2140, 4294901760
    %2142 = vmatmul.f32.gmra.mxu0 %v2141
    %v2143 = vpop.f32.mrf.mxu0
    %v2144 = vadd.f32 %v1871, %v2143
    %v2145 = vand.u32 %v64, 4294901760
    %v2146 = vsub.f32 %v64, %v2145
    %v2147 = vand.u32 %v2146, 4294901760
    %v2148 = vsub.f32 %v2146, %v2147
    %v2149 = vand.u32 %v2148, 4294901760
    %2150 = vmatmul.f32.gmra.mxu0 %v2149
    %v2151 = vpop.f32.mrf.mxu0
    %v2152 = vadd.f32 %v1875, %v2151
    %v2153 = vand.u32 %v67, 4294901760
    %v2154 = vsub.f32 %v67, %v2153
    %v2155 = vand.u32 %v2154, 4294901760
    %v2156 = vsub.f32 %v2154, %v2155
    %v2157 = vand.u32 %v2156, 4294901760
    %2158 = vmatmul.f32.gmra.mxu0 %v2157
    %v2159 = vpop.f32.mrf.mxu0
    %v2160 = vadd.f32 %v1879, %v2159
    %v2161 = vand.u32 %v70, 4294901760
    %v2162 = vsub.f32 %v70, %v2161
    %v2163 = vand.u32 %v2162, 4294901760
    %v2164 = vsub.f32 %v2162, %v2163
    %v2165 = vand.u32 %v2164, 4294901760
    %2166 = vmatmul.f32.gmra.mxu0 %v2165
    %v2167 = vpop.f32.mrf.mxu0
    %v2168 = vadd.f32 %v1883, %v2167
    %v2169 = vand.u32 %v73, 4294901760
    %v2170 = vsub.f32 %v73, %v2169
    %v2171 = vand.u32 %v2170, 4294901760
    %v2172 = vsub.f32 %v2170, %v2171
    %v2173 = vand.u32 %v2172, 4294901760
    %2174 = vmatmul.f32.gmra.mxu0 %v2173
    %v2175 = vpop.f32.mrf.mxu0
    %v2176 = vadd.f32 %v1887, %v2175
    %v2177 = vand.u32 %v76, 4294901760
    %v2178 = vsub.f32 %v76, %v2177
    %v2179 = vand.u32 %v2178, 4294901760
    %v2180 = vsub.f32 %v2178, %v2179
    %v2181 = vand.u32 %v2180, 4294901760
    %2182 = vmatmul.f32.gmra.mxu0 %v2181
    %v2183 = vpop.f32.mrf.mxu0
    %v2184 = vadd.f32 %v1891, %v2183
    %v2185 = vand.u32 %v79, 4294901760
    %v2186 = vsub.f32 %v79, %v2185
    %v2187 = vand.u32 %v2186, 4294901760
    %v2188 = vsub.f32 %v2186, %v2187
    %v2189 = vand.u32 %v2188, 4294901760
    %2190 = vmatmul.f32.gmra.mxu0 %v2189
    %v2191 = vpop.f32.mrf.mxu0
    %v2192 = vadd.f32 %v1895, %v2191
    %v2193 = vand.u32 %v82, 4294901760
    %v2194 = vsub.f32 %v82, %v2193
    %v2195 = vand.u32 %v2194, 4294901760
    %v2196 = vsub.f32 %v2194, %v2195
    %v2197 = vand.u32 %v2196, 4294901760
    %2198 = vmatmul.f32.gmra.mxu0 %v2197
    %v2199 = vpop.f32.mrf.mxu0
    %v2200 = vadd.f32 %v1899, %v2199
    %v2201 = vand.u32 %v85, 4294901760
    %v2202 = vsub.f32 %v85, %v2201
    %v2203 = vand.u32 %v2202, 4294901760
    %v2204 = vsub.f32 %v2202, %v2203
    %v2205 = vand.u32 %v2204, 4294901760
    %2206 = vmatmul.f32.gmra.mxu0 %v2205
    %v2207 = vpop.f32.mrf.mxu0
    %v2208 = vadd.f32 %v1903, %v2207
    %v2209 = vand.u32 %v88, 4294901760
    %v2210 = vsub.f32 %v88, %v2209
    %v2211 = vand.u32 %v2210, 4294901760
    %v2212 = vsub.f32 %v2210, %v2211
    %v2213 = vand.u32 %v2212, 4294901760
    %2214 = vmatmul.f32.gmra.mxu0 %v2213
    %v2215 = vpop.f32.mrf.mxu0
    %v2216 = vadd.f32 %v1907, %v2215
    %v2217 = vand.u32 %v91, 4294901760
    %v2218 = vsub.f32 %v91, %v2217
    %v2219 = vand.u32 %v2218, 4294901760
    %v2220 = vsub.f32 %v2218, %v2219
    %v2221 = vand.u32 %v2220, 4294901760
    %2222 = vmatmul.f32.gmra.mxu0 %v2221
    %v2223 = vpop.f32.mrf.mxu0
    %v2224 = vadd.f32 %v1911, %v2223
    %v2225 = vand.u32 %v94, 4294901760
    %v2226 = vsub.f32 %v94, %v2225
    %v2227 = vand.u32 %v2226, 4294901760
    %v2228 = vsub.f32 %v2226, %v2227
    %v2229 = vand.u32 %v2228, 4294901760
    %2230 = vmatmul.f32.gmra.mxu0 %v2229
    %v2231 = vpop.f32.mrf.mxu0
    %v2232 = vadd.f32 %v1915, %v2231
    %v2233 = vand.u32 %v97, 4294901760
    %v2234 = vsub.f32 %v97, %v2233
    %v2235 = vand.u32 %v2234, 4294901760
    %v2236 = vsub.f32 %v2234, %v2235
    %v2237 = vand.u32 %v2236, 4294901760
    %2238 = vmatmul.f32.gmra.mxu0 %v2237
    %v2239 = vpop.f32.mrf.mxu0
    %v2240 = vadd.f32 %v1919, %v2239
    %v2241 = vand.u32 %v100, 4294901760
    %v2242 = vsub.f32 %v100, %v2241
    %v2243 = vand.u32 %v2242, 4294901760
    %v2244 = vsub.f32 %v2242, %v2243
    %v2245 = vand.u32 %v2244, 4294901760
    %2246 = vmatmul.f32.gmra.mxu0 %v2245
    %v2247 = vpop.f32.mrf.mxu0
    %v2248 = vadd.f32 %v1923, %v2247
    %v2249 = vand.u32 %v103, 4294901760
    %v2250 = vsub.f32 %v103, %v2249
    %v2251 = vand.u32 %v2250, 4294901760
    %v2252 = vsub.f32 %v2250, %v2251
    %v2253 = vand.u32 %v2252, 4294901760
    %2254 = vmatmul.f32.gmra.mxu0 %v2253
    %v2255 = vpop.f32.mrf.mxu0
    %v2256 = vadd.f32 %v1927, %v2255
    %v2257 = vand.u32 %v106, 4294901760
    %v2258 = vsub.f32 %v106, %v2257
    %v2259 = vand.u32 %v2258, 4294901760
    %v2260 = vsub.f32 %v2258, %v2259
    %v2261 = vand.u32 %v2260, 4294901760
    %2262 = vmatmul.f32.gmra.mxu0 %v2261
    %v2263 = vpop.f32.mrf.mxu0
    %v2264 = vadd.f32 %v1931, %v2263
    %v2265 = vand.u32 %v109, 4294901760
    %v2266 = vsub.f32 %v109, %v2265
    %v2267 = vand.u32 %v2266, 4294901760
    %v2268 = vsub.f32 %v2266, %v2267
    %v2269 = vand.u32 %v2268, 4294901760
    %2270 = vmatmul.f32.gmra.mxu0 %v2269
    %v2271 = vpop.f32.mrf.mxu0
    %v2272 = vadd.f32 %v1935, %v2271
    %v2273 = vand.u32 %v112, 4294901760
    %v2274 = vsub.f32 %v112, %v2273
    %v2275 = vand.u32 %v2274, 4294901760
    %v2276 = vsub.f32 %v2274, %v2275
    %v2277 = vand.u32 %v2276, 4294901760
    %2278 = vmatmul.f32.gmra.mxu0 %v2277
    %v2279 = vpop.f32.mrf.mxu0
    %v2280 = vadd.f32 %v1939, %v2279
    %v2281 = vand.u32 %v115, 4294901760
    %v2282 = vsub.f32 %v115, %v2281
    %v2283 = vand.u32 %v2282, 4294901760
    %v2284 = vsub.f32 %v2282, %v2283
    %v2285 = vand.u32 %v2284, 4294901760
    %2286 = vmatmul.f32.gmra.mxu0 %v2285
    %v2287 = vpop.f32.mrf.mxu0
    %v2288 = vadd.f32 %v1943, %v2287
    %v2289 = vand.u32 %v118, 4294901760
    %v2290 = vsub.f32 %v118, %v2289
    %v2291 = vand.u32 %v2290, 4294901760
    %v2292 = vsub.f32 %v2290, %v2291
    %v2293 = vand.u32 %v2292, 4294901760
    %2294 = vmatmul.f32.gmra.mxu0 %v2293
    %v2295 = vpop.f32.mrf.mxu0
    %v2296 = vadd.f32 %v1947, %v2295
    %v2297 = vand.u32 %v121, 4294901760
    %v2298 = vsub.f32 %v121, %v2297
    %v2299 = vand.u32 %v2298, 4294901760
    %v2300 = vsub.f32 %v2298, %v2299
    %v2301 = vand.u32 %v2300, 4294901760
    %2302 = vmatmul.f32.gmra.mxu0 %v2301
    %v2303 = vpop.f32.mrf.mxu0
    %v2304 = vadd.f32 %v1951, %v2303
    %v2305 = vand.u32 %v124, 4294901760
    %v2306 = vsub.f32 %v124, %v2305
    %v2307 = vand.u32 %v2306, 4294901760
    %v2308 = vsub.f32 %v2306, %v2307
    %v2309 = vand.u32 %v2308, 4294901760
    %2310 = vmatmul.f32.gmra.mxu0 %v2309
    %v2311 = vpop.f32.mrf.mxu0
    %v2312 = vadd.f32 %v1955, %v2311
    %v2313 = vand.u32 %v127, 4294901760
    %v2314 = vsub.f32 %v127, %v2313
    %v2315 = vand.u32 %v2314, 4294901760
    %v2316 = vsub.f32 %v2314, %v2315
    %v2317 = vand.u32 %v2316, 4294901760
    %2318 = vmatmul.f32.gmra.mxu0 %v2317
    %v2319 = vpop.f32.mrf.mxu0
    %v2320 = vadd.f32 %v1959, %v2319
    %v2321 = vand.u32 %v130, 4294901760
    %v2322 = vsub.f32 %v130, %v2321
    %v2323 = vand.u32 %v2322, 4294901760
    %v2324 = vsub.f32 %v2322, %v2323
    %v2325 = vand.u32 %v2324, 4294901760
    %2326 = vmatmul.f32.gmra.mxu0 %v2325
    %v2327 = vpop.f32.mrf.mxu0
    %v2328 = vadd.f32 %v1963, %v2327
    %v2329 = vand.u32 %v133, 4294901760
    %v2330 = vsub.f32 %v133, %v2329
    %v2331 = vand.u32 %v2330, 4294901760
    %v2332 = vsub.f32 %v2330, %v2331
    %v2333 = vand.u32 %v2332, 4294901760
    %2334 = vmatmul.f32.gmra.mxu0 %v2333
    %v2335 = vpop.f32.mrf.mxu0
    %v2336 = vadd.f32 %v1967, %v2335
    %v2337 = vand.u32 %v136, 4294901760
    %v2338 = vsub.f32 %v136, %v2337
    %v2339 = vand.u32 %v2338, 4294901760
    %v2340 = vsub.f32 %v2338, %v2339
    %v2341 = vand.u32 %v2340, 4294901760
    %2342 = vmatmul.f32.gmra.mxu0 %v2341
    %v2343 = vpop.f32.mrf.mxu0
    %v2344 = vadd.f32 %v1971, %v2343
    %v2345 = vand.u32 %v139, 4294901760
    %v2346 = vsub.f32 %v139, %v2345
    %v2347 = vand.u32 %v2346, 4294901760
    %v2348 = vsub.f32 %v2346, %v2347
    %v2349 = vand.u32 %v2348, 4294901760
    %2350 = vmatmul.f32.gmra.mxu0 %v2349
    %v2351 = vpop.f32.mrf.mxu0
    %v2352 = vadd.f32 %v1975, %v2351
    %v2353 = vand.u32 %v142, 4294901760
    %v2354 = vsub.f32 %v142, %v2353
    %v2355 = vand.u32 %v2354, 4294901760
    %v2356 = vsub.f32 %v2354, %v2355
    %v2357 = vand.u32 %v2356, 4294901760
    %2358 = vmatmul.f32.gmra.mxu0 %v2357
    %v2359 = vpop.f32.mrf.mxu0
    %v2360 = vadd.f32 %v1979, %v2359
    %v2361 = vand.u32 %v145, 4294901760
    %v2362 = vsub.f32 %v145, %v2361
    %v2363 = vand.u32 %v2362, 4294901760
    %v2364 = vsub.f32 %v2362, %v2363
    %v2365 = vand.u32 %v2364, 4294901760
    %2366 = vmatmul.f32.gmra.mxu0 %v2365
    %v2367 = vpop.f32.mrf.mxu0
    %v2368 = vadd.f32 %v1983, %v2367
    %v2369 = vand.u32 %v148, 4294901760
    %v2370 = vsub.f32 %v148, %v2369
    %v2371 = vand.u32 %v2370, 4294901760
    %v2372 = vsub.f32 %v2370, %v2371
    %v2373 = vand.u32 %v2372, 4294901760
    %2374 = vmatmul.f32.gmra.mxu0 %v2373
    %v2375 = vpop.f32.mrf.mxu0
    %v2376 = vadd.f32 %v1987, %v2375
    %v2377 = vand.u32 %v151, 4294901760
    %v2378 = vsub.f32 %v151, %v2377
    %v2379 = vand.u32 %v2378, 4294901760
    %v2380 = vsub.f32 %v2378, %v2379
    %v2381 = vand.u32 %v2380, 4294901760
    %2382 = vmatmul.f32.gmra.mxu0 %v2381
    %v2383 = vpop.f32.mrf.mxu0
    %v2384 = vadd.f32 %v1991, %v2383
    %v2385 = vand.u32 %v154, 4294901760
    %v2386 = vsub.f32 %v154, %v2385
    %v2387 = vand.u32 %v2386, 4294901760
    %v2388 = vsub.f32 %v2386, %v2387
    %v2389 = vand.u32 %v2388, 4294901760
    %2390 = vmatmul.f32.gmra.mxu0 %v2389
    %v2391 = vpop.f32.mrf.mxu0
    %v2392 = vadd.f32 %v1995, %v2391
    %v2393 = vand.u32 %v157, 4294901760
    %v2394 = vsub.f32 %v157, %v2393
    %v2395 = vand.u32 %v2394, 4294901760
    %v2396 = vsub.f32 %v2394, %v2395
    %v2397 = vand.u32 %v2396, 4294901760
    %2398 = vmatmul.f32.gmra.mxu0 %v2397
    %v2399 = vpop.f32.mrf.mxu0
    %v2400 = vadd.f32 %v1999, %v2399
    %v2401 = vand.u32 %v160, 4294901760
    %v2402 = vsub.f32 %v160, %v2401
    %v2403 = vand.u32 %v2402, 4294901760
    %v2404 = vsub.f32 %v2402, %v2403
    %v2405 = vand.u32 %v2404, 4294901760
    %2406 = vmatmul.f32.gmra.mxu0 %v2405
    %v2407 = vpop.f32.mrf.mxu0
    %v2408 = vadd.f32 %v2003, %v2407
    %v2409 = vand.u32 %v163, 4294901760
    %v2410 = vsub.f32 %v163, %v2409
    %v2411 = vand.u32 %v2410, 4294901760
    %v2412 = vsub.f32 %v2410, %v2411
    %v2413 = vand.u32 %v2412, 4294901760
    %2414 = vmatmul.f32.gmra.mxu0 %v2413
    %v2415 = vpop.f32.mrf.mxu0
    %v2416 = vadd.f32 %v2007, %v2415
    %v2417 = vand.u32 %v166, 4294901760
    %v2418 = vsub.f32 %v166, %v2417
    %v2419 = vand.u32 %v2418, 4294901760
    %v2420 = vsub.f32 %v2418, %v2419
    %v2421 = vand.u32 %v2420, 4294901760
    %2422 = vmatmul.f32.gmra.mxu0 %v2421
    %v2423 = vpop.f32.mrf.mxu0
    %v2424 = vadd.f32 %v2011, %v2423
    %v2425 = vand.u32 %v169, 4294901760
    %v2426 = vsub.f32 %v169, %v2425
    %v2427 = vand.u32 %v2426, 4294901760
    %v2428 = vsub.f32 %v2426, %v2427
    %v2429 = vand.u32 %v2428, 4294901760
    %2430 = vmatmul.f32.gmra.mxu0 %v2429
    %v2431 = vpop.f32.mrf.mxu0
    %v2432 = vadd.f32 %v2015, %v2431
    %2433 = vdwg.mxu0
    %v2434 = vand.u32 %v202, 4294901760
    %v2435 = vsub.f32 %v202, %v2434
    %v2436 = vand.u32 %v2435, 4294901760
    %v2437 = vsub.f32 %v2435, %v2436
    %v2438 = vand.u32 %v2437, 4294901760
    %2439 = vmatpush.msra.mxu0 %v2438
    %v2440 = vand.u32 %v201, 4294901760
    %v2441 = vsub.f32 %v201, %v2440
    %v2442 = vand.u32 %v2441, 4294901760
    %v2443 = vsub.f32 %v2441, %v2442
    %v2444 = vand.u32 %v2443, 4294901760
    %2445 = vmatpush.msra.mxu0 %v2444
    %v2446 = vand.u32 %v200, 4294901760
    %v2447 = vsub.f32 %v200, %v2446
    %v2448 = vand.u32 %v2447, 4294901760
    %v2449 = vsub.f32 %v2447, %v2448
    %v2450 = vand.u32 %v2449, 4294901760
    %2451 = vmatpush.msra.mxu0 %v2450
    %v2452 = vand.u32 %v199, 4294901760
    %v2453 = vsub.f32 %v199, %v2452
    %v2454 = vand.u32 %v2453, 4294901760
    %v2455 = vsub.f32 %v2453, %v2454
    %v2456 = vand.u32 %v2455, 4294901760
    %2457 = vmatpush.msra.mxu0 %v2456
    %v2458 = vand.u32 %v198, 4294901760
    %v2459 = vsub.f32 %v198, %v2458
    %v2460 = vand.u32 %v2459, 4294901760
    %v2461 = vsub.f32 %v2459, %v2460
    %v2462 = vand.u32 %v2461, 4294901760
    %2463 = vmatpush.msra.mxu0 %v2462
    %v2464 = vand.u32 %v197, 4294901760
    %v2465 = vsub.f32 %v197, %v2464
    %v2466 = vand.u32 %v2465, 4294901760
    %v2467 = vsub.f32 %v2465, %v2466
    %v2468 = vand.u32 %v2467, 4294901760
    %2469 = vmatpush.msra.mxu0 %v2468
    %v2470 = vand.u32 %v196, 4294901760
    %v2471 = vsub.f32 %v196, %v2470
    %v2472 = vand.u32 %v2471, 4294901760
    %v2473 = vsub.f32 %v2471, %v2472
    %v2474 = vand.u32 %v2473, 4294901760
    %2475 = vmatpush.msra.mxu0 %v2474
    %v2476 = vand.u32 %v195, 4294901760
    %v2477 = vsub.f32 %v195, %v2476
    %v2478 = vand.u32 %v2477, 4294901760
    %v2479 = vsub.f32 %v2477, %v2478
    %v2480 = vand.u32 %v2479, 4294901760
    %2481 = vmatpush.msra.mxu0 %v2480
    %v2482 = vand.u32 %v194, 4294901760
    %v2483 = vsub.f32 %v194, %v2482
    %v2484 = vand.u32 %v2483, 4294901760
    %v2485 = vsub.f32 %v2483, %v2484
    %v2486 = vand.u32 %v2485, 4294901760
    %2487 = vmatpush.msra.mxu0 %v2486
    %v2488 = vand.u32 %v193, 4294901760
    %v2489 = vsub.f32 %v193, %v2488
    %v2490 = vand.u32 %v2489, 4294901760
    %v2491 = vsub.f32 %v2489, %v2490
    %v2492 = vand.u32 %v2491, 4294901760
    %2493 = vmatpush.msra.mxu0 %v2492
    %v2494 = vand.u32 %v192, 4294901760
    %v2495 = vsub.f32 %v192, %v2494
    %v2496 = vand.u32 %v2495, 4294901760
    %v2497 = vsub.f32 %v2495, %v2496
    %v2498 = vand.u32 %v2497, 4294901760
    %2499 = vmatpush.msra.mxu0 %v2498
    %v2500 = vand.u32 %v191, 4294901760
    %v2501 = vsub.f32 %v191, %v2500
    %v2502 = vand.u32 %v2501, 4294901760
    %v2503 = vsub.f32 %v2501, %v2502
    %v2504 = vand.u32 %v2503, 4294901760
    %2505 = vmatpush.msra.mxu0 %v2504
    %v2506 = vand.u32 %v190, 4294901760
    %v2507 = vsub.f32 %v190, %v2506
    %v2508 = vand.u32 %v2507, 4294901760
    %v2509 = vsub.f32 %v2507, %v2508
    %v2510 = vand.u32 %v2509, 4294901760
    %2511 = vmatpush.msra.mxu0 %v2510
    %v2512 = vand.u32 %v189, 4294901760
    %v2513 = vsub.f32 %v189, %v2512
    %v2514 = vand.u32 %v2513, 4294901760
    %v2515 = vsub.f32 %v2513, %v2514
    %v2516 = vand.u32 %v2515, 4294901760
    %2517 = vmatpush.msra.mxu0 %v2516
    %v2518 = vand.u32 %v188, 4294901760
    %v2519 = vsub.f32 %v188, %v2518
    %v2520 = vand.u32 %v2519, 4294901760
    %v2521 = vsub.f32 %v2519, %v2520
    %v2522 = vand.u32 %v2521, 4294901760
    %2523 = vmatpush.msra.mxu0 %v2522
    %v2524 = vand.u32 %v187, 4294901760
    %v2525 = vsub.f32 %v187, %v2524
    %v2526 = vand.u32 %v2525, 4294901760
    %v2527 = vsub.f32 %v2525, %v2526
    %v2528 = vand.u32 %v2527, 4294901760
    %2529 = vmatpush.msra.mxu0 %v2528
    %v2530 = vand.u32 %v28, 4294901760
    %2531 = vmatmul.f32.gmra.mxu0 %v2530
    %v2532 = vpop.f32.mrf.mxu0
    %v2533 = vadd.f32 %v2056, %v2532
    %v2534 = vand.u32 %v31, 4294901760
    %2535 = vmatmul.f32.gmra.mxu0 %v2534
    %v2536 = vpop.f32.mrf.mxu0
    %v2537 = vadd.f32 %v2064, %v2536
    %v2538 = vand.u32 %v34, 4294901760
    %2539 = vmatmul.f32.gmra.mxu0 %v2538
    %v2540 = vpop.f32.mrf.mxu0
    %v2541 = vadd.f32 %v2072, %v2540
    %v2542 = vand.u32 %v37, 4294901760
    %2543 = vmatmul.f32.gmra.mxu0 %v2542
    %v2544 = vpop.f32.mrf.mxu0
    %v2545 = vadd.f32 %v2080, %v2544
    %v2546 = vand.u32 %v40, 4294901760
    %2547 = vmatmul.f32.gmra.mxu0 %v2546
    %v2548 = vpop.f32.mrf.mxu0
    %v2549 = vadd.f32 %v2088, %v2548
    %v2550 = vand.u32 %v43, 4294901760
    %2551 = vmatmul.f32.gmra.mxu0 %v2550
    %v2552 = vpop.f32.mrf.mxu0
    %v2553 = vadd.f32 %v2096, %v2552
    %v2554 = vand.u32 %v46, 4294901760
    %2555 = vmatmul.f32.gmra.mxu0 %v2554
    %v2556 = vpop.f32.mrf.mxu0
    %v2557 = vadd.f32 %v2104, %v2556
    %v2558 = vand.u32 %v49, 4294901760
    %2559 = vmatmul.f32.gmra.mxu0 %v2558
    %v2560 = vpop.f32.mrf.mxu0
    %v2561 = vadd.f32 %v2112, %v2560
    %v2562 = vand.u32 %v52, 4294901760
    %2563 = vmatmul.f32.gmra.mxu0 %v2562
    %v2564 = vpop.f32.mrf.mxu0
    %v2565 = vadd.f32 %v2120, %v2564
    %v2566 = vand.u32 %v55, 4294901760
    %2567 = vmatmul.f32.gmra.mxu0 %v2566
    %v2568 = vpop.f32.mrf.mxu0
    %v2569 = vadd.f32 %v2128, %v2568
    %v2570 = vand.u32 %v58, 4294901760
    %2571 = vmatmul.f32.gmra.mxu0 %v2570
    %v2572 = vpop.f32.mrf.mxu0
    %v2573 = vadd.f32 %v2136, %v2572
    %v2574 = vand.u32 %v61, 4294901760
    %2575 = vmatmul.f32.gmra.mxu0 %v2574
    %v2576 = vpop.f32.mrf.mxu0
    %v2577 = vadd.f32 %v2144, %v2576
    %v2578 = vand.u32 %v64, 4294901760
    %2579 = vmatmul.f32.gmra.mxu0 %v2578
    %v2580 = vpop.f32.mrf.mxu0
    %v2581 = vadd.f32 %v2152, %v2580
    %v2582 = vand.u32 %v67, 4294901760
    %2583 = vmatmul.f32.gmra.mxu0 %v2582
    %v2584 = vpop.f32.mrf.mxu0
    %v2585 = vadd.f32 %v2160, %v2584
    %v2586 = vand.u32 %v70, 4294901760
    %2587 = vmatmul.f32.gmra.mxu0 %v2586
    %v2588 = vpop.f32.mrf.mxu0
    %v2589 = vadd.f32 %v2168, %v2588
    %v2590 = vand.u32 %v73, 4294901760
    %2591 = vmatmul.f32.gmra.mxu0 %v2590
    %v2592 = vpop.f32.mrf.mxu0
    %v2593 = vadd.f32 %v2176, %v2592
    %v2594 = vand.u32 %v76, 4294901760
    %2595 = vmatmul.f32.gmra.mxu0 %v2594
    %v2596 = vpop.f32.mrf.mxu0
    %v2597 = vadd.f32 %v2184, %v2596
    %v2598 = vand.u32 %v79, 4294901760
    %2599 = vmatmul.f32.gmra.mxu0 %v2598
    %v2600 = vpop.f32.mrf.mxu0
    %v2601 = vadd.f32 %v2192, %v2600
    %v2602 = vand.u32 %v82, 4294901760
    %2603 = vmatmul.f32.gmra.mxu0 %v2602
    %v2604 = vpop.f32.mrf.mxu0
    %v2605 = vadd.f32 %v2200, %v2604
    %v2606 = vand.u32 %v85, 4294901760
    %2607 = vmatmul.f32.gmra.mxu0 %v2606
    %v2608 = vpop.f32.mrf.mxu0
    %v2609 = vadd.f32 %v2208, %v2608
    %v2610 = vand.u32 %v88, 4294901760
    %2611 = vmatmul.f32.gmra.mxu0 %v2610
    %v2612 = vpop.f32.mrf.mxu0
    %v2613 = vadd.f32 %v2216, %v2612
    %v2614 = vand.u32 %v91, 4294901760
    %2615 = vmatmul.f32.gmra.mxu0 %v2614
    %v2616 = vpop.f32.mrf.mxu0
    %v2617 = vadd.f32 %v2224, %v2616
    %v2618 = vand.u32 %v94, 4294901760
    %2619 = vmatmul.f32.gmra.mxu0 %v2618
    %v2620 = vpop.f32.mrf.mxu0
    %v2621 = vadd.f32 %v2232, %v2620
    %v2622 = vand.u32 %v97, 4294901760
    %2623 = vmatmul.f32.gmra.mxu0 %v2622
    %v2624 = vpop.f32.mrf.mxu0
    %v2625 = vadd.f32 %v2240, %v2624
    %v2626 = vand.u32 %v100, 4294901760
    %2627 = vmatmul.f32.gmra.mxu0 %v2626
    %v2628 = vpop.f32.mrf.mxu0
    %v2629 = vadd.f32 %v2248, %v2628
    %v2630 = vand.u32 %v103, 4294901760
    %2631 = vmatmul.f32.gmra.mxu0 %v2630
    %v2632 = vpop.f32.mrf.mxu0
    %v2633 = vadd.f32 %v2256, %v2632
    %v2634 = vand.u32 %v106, 4294901760
    %2635 = vmatmul.f32.gmra.mxu0 %v2634
    %v2636 = vpop.f32.mrf.mxu0
    %v2637 = vadd.f32 %v2264, %v2636
    %v2638 = vand.u32 %v109, 4294901760
    %2639 = vmatmul.f32.gmra.mxu0 %v2638
    %v2640 = vpop.f32.mrf.mxu0
    %v2641 = vadd.f32 %v2272, %v2640
    %v2642 = vand.u32 %v112, 4294901760
    %2643 = vmatmul.f32.gmra.mxu0 %v2642
    %v2644 = vpop.f32.mrf.mxu0
    %v2645 = vadd.f32 %v2280, %v2644
    %v2646 = vand.u32 %v115, 4294901760
    %2647 = vmatmul.f32.gmra.mxu0 %v2646
    %v2648 = vpop.f32.mrf.mxu0
    %v2649 = vadd.f32 %v2288, %v2648
    %v2650 = vand.u32 %v118, 4294901760
    %2651 = vmatmul.f32.gmra.mxu0 %v2650
    %v2652 = vpop.f32.mrf.mxu0
    %v2653 = vadd.f32 %v2296, %v2652
    %v2654 = vand.u32 %v121, 4294901760
    %2655 = vmatmul.f32.gmra.mxu0 %v2654
    %v2656 = vpop.f32.mrf.mxu0
    %v2657 = vadd.f32 %v2304, %v2656
    %v2658 = vand.u32 %v124, 4294901760
    %2659 = vmatmul.f32.gmra.mxu0 %v2658
    %v2660 = vpop.f32.mrf.mxu0
    %v2661 = vadd.f32 %v2312, %v2660
    %v2662 = vand.u32 %v127, 4294901760
    %2663 = vmatmul.f32.gmra.mxu0 %v2662
    %v2664 = vpop.f32.mrf.mxu0
    %v2665 = vadd.f32 %v2320, %v2664
    %v2666 = vand.u32 %v130, 4294901760
    %2667 = vmatmul.f32.gmra.mxu0 %v2666
    %v2668 = vpop.f32.mrf.mxu0
    %v2669 = vadd.f32 %v2328, %v2668
    %v2670 = vand.u32 %v133, 4294901760
    %2671 = vmatmul.f32.gmra.mxu0 %v2670
    %v2672 = vpop.f32.mrf.mxu0
    %v2673 = vadd.f32 %v2336, %v2672
    %v2674 = vand.u32 %v136, 4294901760
    %2675 = vmatmul.f32.gmra.mxu0 %v2674
    %v2676 = vpop.f32.mrf.mxu0
    %v2677 = vadd.f32 %v2344, %v2676
    %v2678 = vand.u32 %v139, 4294901760
    %2679 = vmatmul.f32.gmra.mxu0 %v2678
    %v2680 = vpop.f32.mrf.mxu0
    %v2681 = vadd.f32 %v2352, %v2680
    %v2682 = vand.u32 %v142, 4294901760
    %2683 = vmatmul.f32.gmra.mxu0 %v2682
    %v2684 = vpop.f32.mrf.mxu0
    %v2685 = vadd.f32 %v2360, %v2684
    %v2686 = vand.u32 %v145, 4294901760
    %2687 = vmatmul.f32.gmra.mxu0 %v2686
    %v2688 = vpop.f32.mrf.mxu0
    %v2689 = vadd.f32 %v2368, %v2688
    %v2690 = vand.u32 %v148, 4294901760
    %2691 = vmatmul.f32.gmra.mxu0 %v2690
    %v2692 = vpop.f32.mrf.mxu0
    %v2693 = vadd.f32 %v2376, %v2692
    %v2694 = vand.u32 %v151, 4294901760
    %2695 = vmatmul.f32.gmra.mxu0 %v2694
    %v2696 = vpop.f32.mrf.mxu0
    %v2697 = vadd.f32 %v2384, %v2696
    %v2698 = vand.u32 %v154, 4294901760
    %2699 = vmatmul.f32.gmra.mxu0 %v2698
    %v2700 = vpop.f32.mrf.mxu0
    %v2701 = vadd.f32 %v2392, %v2700
    %v2702 = vand.u32 %v157, 4294901760
    %2703 = vmatmul.f32.gmra.mxu0 %v2702
    %v2704 = vpop.f32.mrf.mxu0
    %v2705 = vadd.f32 %v2400, %v2704
    %v2706 = vand.u32 %v160, 4294901760
    %2707 = vmatmul.f32.gmra.mxu0 %v2706
    %v2708 = vpop.f32.mrf.mxu0
    %v2709 = vadd.f32 %v2408, %v2708
    %v2710 = vand.u32 %v163, 4294901760
    %2711 = vmatmul.f32.gmra.mxu0 %v2710
    %v2712 = vpop.f32.mrf.mxu0
    %v2713 = vadd.f32 %v2416, %v2712
    %v2714 = vand.u32 %v166, 4294901760
    %2715 = vmatmul.f32.gmra.mxu0 %v2714
    %v2716 = vpop.f32.mrf.mxu0
    %v2717 = vadd.f32 %v2424, %v2716
    %v2718 = vand.u32 %v169, 4294901760
    %2719 = vmatmul.f32.gmra.mxu0 %v2718
    %v2720 = vpop.f32.mrf.mxu0
    %v2721 = vadd.f32 %v2432, %v2720
    %2722 = vdwg.mxu0
    %v2723 = vand.u32 %v202, 4294901760
    %v2724 = vsub.f32 %v202, %v2723
    %2725 = vmatpush.msra.mxu0 %v2724
    %v2726 = vand.u32 %v201, 4294901760
    %v2727 = vsub.f32 %v201, %v2726
    %2728 = vmatpush.msra.mxu0 %v2727
    %v2729 = vand.u32 %v200, 4294901760
    %v2730 = vsub.f32 %v200, %v2729
    %2731 = vmatpush.msra.mxu0 %v2730
    %v2732 = vand.u32 %v199, 4294901760
    %v2733 = vsub.f32 %v199, %v2732
    %2734 = vmatpush.msra.mxu0 %v2733
    %v2735 = vand.u32 %v198, 4294901760
    %v2736 = vsub.f32 %v198, %v2735
    %2737 = vmatpush.msra.mxu0 %v2736
    %v2738 = vand.u32 %v197, 4294901760
    %v2739 = vsub.f32 %v197, %v2738
    %2740 = vmatpush.msra.mxu0 %v2739
    %v2741 = vand.u32 %v196, 4294901760
    %v2742 = vsub.f32 %v196, %v2741
    %2743 = vmatpush.msra.mxu0 %v2742
    %v2744 = vand.u32 %v195, 4294901760
    %v2745 = vsub.f32 %v195, %v2744
    %2746 = vmatpush.msra.mxu0 %v2745
    %v2747 = vand.u32 %v194, 4294901760
    %v2748 = vsub.f32 %v194, %v2747
    %2749 = vmatpush.msra.mxu0 %v2748
    %v2750 = vand.u32 %v193, 4294901760
    %v2751 = vsub.f32 %v193, %v2750
    %2752 = vmatpush.msra.mxu0 %v2751
    %v2753 = vand.u32 %v192, 4294901760
    %v2754 = vsub.f32 %v192, %v2753
    %2755 = vmatpush.msra.mxu0 %v2754
    %v2756 = vand.u32 %v191, 4294901760
    %v2757 = vsub.f32 %v191, %v2756
    %2758 = vmatpush.msra.mxu0 %v2757
    %v2759 = vand.u32 %v190, 4294901760
    %v2760 = vsub.f32 %v190, %v2759
    %2761 = vmatpush.msra.mxu0 %v2760
    %v2762 = vand.u32 %v189, 4294901760
    %v2763 = vsub.f32 %v189, %v2762
    %2764 = vmatpush.msra.mxu0 %v2763
    %v2765 = vand.u32 %v188, 4294901760
    %v2766 = vsub.f32 %v188, %v2765
    %2767 = vmatpush.msra.mxu0 %v2766
    %v2768 = vand.u32 %v187, 4294901760
    %v2769 = vsub.f32 %v187, %v2768
    %2770 = vmatpush.msra.mxu0 %v2769
    %v2771 = vand.u32 %v28, 4294901760
    %v2772 = vsub.f32 %v28, %v2771
    %2773 = vmatmul.f32.gmra.mxu0 %v2772
    %v2774 = vpop.f32.mrf.mxu0
    %v2775 = vadd.f32 %v2533, %v2774
    %v2776 = vand.u32 %v31, 4294901760
    %v2777 = vsub.f32 %v31, %v2776
    %2778 = vmatmul.f32.gmra.mxu0 %v2777
    %v2779 = vpop.f32.mrf.mxu0
    %v2780 = vadd.f32 %v2537, %v2779
    %v2781 = vand.u32 %v34, 4294901760
    %v2782 = vsub.f32 %v34, %v2781
    %2783 = vmatmul.f32.gmra.mxu0 %v2782
    %v2784 = vpop.f32.mrf.mxu0
    %v2785 = vadd.f32 %v2541, %v2784
    %v2786 = vand.u32 %v37, 4294901760
    %v2787 = vsub.f32 %v37, %v2786
    %2788 = vmatmul.f32.gmra.mxu0 %v2787
    %v2789 = vpop.f32.mrf.mxu0
    %v2790 = vadd.f32 %v2545, %v2789
    %v2791 = vand.u32 %v40, 4294901760
    %v2792 = vsub.f32 %v40, %v2791
    %2793 = vmatmul.f32.gmra.mxu0 %v2792
    %v2794 = vpop.f32.mrf.mxu0
    %v2795 = vadd.f32 %v2549, %v2794
    %v2796 = vand.u32 %v43, 4294901760
    %v2797 = vsub.f32 %v43, %v2796
    %2798 = vmatmul.f32.gmra.mxu0 %v2797
    %v2799 = vpop.f32.mrf.mxu0
    %v2800 = vadd.f32 %v2553, %v2799
    %v2801 = vand.u32 %v46, 4294901760
    %v2802 = vsub.f32 %v46, %v2801
    %2803 = vmatmul.f32.gmra.mxu0 %v2802
    %v2804 = vpop.f32.mrf.mxu0
    %v2805 = vadd.f32 %v2557, %v2804
    %v2806 = vand.u32 %v49, 4294901760
    %v2807 = vsub.f32 %v49, %v2806
    %2808 = vmatmul.f32.gmra.mxu0 %v2807
    %v2809 = vpop.f32.mrf.mxu0
    %v2810 = vadd.f32 %v2561, %v2809
    %v2811 = vand.u32 %v52, 4294901760
    %v2812 = vsub.f32 %v52, %v2811
    %2813 = vmatmul.f32.gmra.mxu0 %v2812
    %v2814 = vpop.f32.mrf.mxu0
    %v2815 = vadd.f32 %v2565, %v2814
    %v2816 = vand.u32 %v55, 4294901760
    %v2817 = vsub.f32 %v55, %v2816
    %2818 = vmatmul.f32.gmra.mxu0 %v2817
    %v2819 = vpop.f32.mrf.mxu0
    %v2820 = vadd.f32 %v2569, %v2819
    %v2821 = vand.u32 %v58, 4294901760
    %v2822 = vsub.f32 %v58, %v2821
    %2823 = vmatmul.f32.gmra.mxu0 %v2822
    %v2824 = vpop.f32.mrf.mxu0
    %v2825 = vadd.f32 %v2573, %v2824
    %v2826 = vand.u32 %v61, 4294901760
    %v2827 = vsub.f32 %v61, %v2826
    %2828 = vmatmul.f32.gmra.mxu0 %v2827
    %v2829 = vpop.f32.mrf.mxu0
    %v2830 = vadd.f32 %v2577, %v2829
    %v2831 = vand.u32 %v64, 4294901760
    %v2832 = vsub.f32 %v64, %v2831
    %2833 = vmatmul.f32.gmra.mxu0 %v2832
    %v2834 = vpop.f32.mrf.mxu0
    %v2835 = vadd.f32 %v2581, %v2834
    %v2836 = vand.u32 %v67, 4294901760
    %v2837 = vsub.f32 %v67, %v2836
    %2838 = vmatmul.f32.gmra.mxu0 %v2837
    %v2839 = vpop.f32.mrf.mxu0
    %v2840 = vadd.f32 %v2585, %v2839
    %v2841 = vand.u32 %v70, 4294901760
    %v2842 = vsub.f32 %v70, %v2841
    %2843 = vmatmul.f32.gmra.mxu0 %v2842
    %v2844 = vpop.f32.mrf.mxu0
    %v2845 = vadd.f32 %v2589, %v2844
    %v2846 = vand.u32 %v73, 4294901760
    %v2847 = vsub.f32 %v73, %v2846
    %2848 = vmatmul.f32.gmra.mxu0 %v2847
    %v2849 = vpop.f32.mrf.mxu0
    %v2850 = vadd.f32 %v2593, %v2849
    %v2851 = vand.u32 %v76, 4294901760
    %v2852 = vsub.f32 %v76, %v2851
    %2853 = vmatmul.f32.gmra.mxu0 %v2852
    %v2854 = vpop.f32.mrf.mxu0
    %v2855 = vadd.f32 %v2597, %v2854
    %v2856 = vand.u32 %v79, 4294901760
    %v2857 = vsub.f32 %v79, %v2856
    %2858 = vmatmul.f32.gmra.mxu0 %v2857
    %v2859 = vpop.f32.mrf.mxu0
    %v2860 = vadd.f32 %v2601, %v2859
    %v2861 = vand.u32 %v82, 4294901760
    %v2862 = vsub.f32 %v82, %v2861
    %2863 = vmatmul.f32.gmra.mxu0 %v2862
    %v2864 = vpop.f32.mrf.mxu0
    %v2865 = vadd.f32 %v2605, %v2864
    %v2866 = vand.u32 %v85, 4294901760
    %v2867 = vsub.f32 %v85, %v2866
    %2868 = vmatmul.f32.gmra.mxu0 %v2867
    %v2869 = vpop.f32.mrf.mxu0
    %v2870 = vadd.f32 %v2609, %v2869
    %v2871 = vand.u32 %v88, 4294901760
    %v2872 = vsub.f32 %v88, %v2871
    %2873 = vmatmul.f32.gmra.mxu0 %v2872
    %v2874 = vpop.f32.mrf.mxu0
    %v2875 = vadd.f32 %v2613, %v2874
    %v2876 = vand.u32 %v91, 4294901760
    %v2877 = vsub.f32 %v91, %v2876
    %2878 = vmatmul.f32.gmra.mxu0 %v2877
    %v2879 = vpop.f32.mrf.mxu0
    %v2880 = vadd.f32 %v2617, %v2879
    %v2881 = vand.u32 %v94, 4294901760
    %v2882 = vsub.f32 %v94, %v2881
    %2883 = vmatmul.f32.gmra.mxu0 %v2882
    %v2884 = vpop.f32.mrf.mxu0
    %v2885 = vadd.f32 %v2621, %v2884
    %v2886 = vand.u32 %v97, 4294901760
    %v2887 = vsub.f32 %v97, %v2886
    %2888 = vmatmul.f32.gmra.mxu0 %v2887
    %v2889 = vpop.f32.mrf.mxu0
    %v2890 = vadd.f32 %v2625, %v2889
    %v2891 = vand.u32 %v100, 4294901760
    %v2892 = vsub.f32 %v100, %v2891
    %2893 = vmatmul.f32.gmra.mxu0 %v2892
    %v2894 = vpop.f32.mrf.mxu0
    %v2895 = vadd.f32 %v2629, %v2894
    %v2896 = vand.u32 %v103, 4294901760
    %v2897 = vsub.f32 %v103, %v2896
    %2898 = vmatmul.f32.gmra.mxu0 %v2897
    %v2899 = vpop.f32.mrf.mxu0
    %v2900 = vadd.f32 %v2633, %v2899
    %v2901 = vand.u32 %v106, 4294901760
    %v2902 = vsub.f32 %v106, %v2901
    %2903 = vmatmul.f32.gmra.mxu0 %v2902
    %v2904 = vpop.f32.mrf.mxu0
    %v2905 = vadd.f32 %v2637, %v2904
    %v2906 = vand.u32 %v109, 4294901760
    %v2907 = vsub.f32 %v109, %v2906
    %2908 = vmatmul.f32.gmra.mxu0 %v2907
    %v2909 = vpop.f32.mrf.mxu0
    %v2910 = vadd.f32 %v2641, %v2909
    %v2911 = vand.u32 %v112, 4294901760
    %v2912 = vsub.f32 %v112, %v2911
    %2913 = vmatmul.f32.gmra.mxu0 %v2912
    %v2914 = vpop.f32.mrf.mxu0
    %v2915 = vadd.f32 %v2645, %v2914
    %v2916 = vand.u32 %v115, 4294901760
    %v2917 = vsub.f32 %v115, %v2916
    %2918 = vmatmul.f32.gmra.mxu0 %v2917
    %v2919 = vpop.f32.mrf.mxu0
    %v2920 = vadd.f32 %v2649, %v2919
    %v2921 = vand.u32 %v118, 4294901760
    %v2922 = vsub.f32 %v118, %v2921
    %2923 = vmatmul.f32.gmra.mxu0 %v2922
    %v2924 = vpop.f32.mrf.mxu0
    %v2925 = vadd.f32 %v2653, %v2924
    %v2926 = vand.u32 %v121, 4294901760
    %v2927 = vsub.f32 %v121, %v2926
    %2928 = vmatmul.f32.gmra.mxu0 %v2927
    %v2929 = vpop.f32.mrf.mxu0
    %v2930 = vadd.f32 %v2657, %v2929
    %v2931 = vand.u32 %v124, 4294901760
    %v2932 = vsub.f32 %v124, %v2931
    %2933 = vmatmul.f32.gmra.mxu0 %v2932
    %v2934 = vpop.f32.mrf.mxu0
    %v2935 = vadd.f32 %v2661, %v2934
    %v2936 = vand.u32 %v127, 4294901760
    %v2937 = vsub.f32 %v127, %v2936
    %2938 = vmatmul.f32.gmra.mxu0 %v2937
    %v2939 = vpop.f32.mrf.mxu0
    %v2940 = vadd.f32 %v2665, %v2939
    %v2941 = vand.u32 %v130, 4294901760
    %v2942 = vsub.f32 %v130, %v2941
    %2943 = vmatmul.f32.gmra.mxu0 %v2942
    %v2944 = vpop.f32.mrf.mxu0
    %v2945 = vadd.f32 %v2669, %v2944
    %v2946 = vand.u32 %v133, 4294901760
    %v2947 = vsub.f32 %v133, %v2946
    %2948 = vmatmul.f32.gmra.mxu0 %v2947
    %v2949 = vpop.f32.mrf.mxu0
    %v2950 = vadd.f32 %v2673, %v2949
    %v2951 = vand.u32 %v136, 4294901760
    %v2952 = vsub.f32 %v136, %v2951
    %2953 = vmatmul.f32.gmra.mxu0 %v2952
    %v2954 = vpop.f32.mrf.mxu0
    %v2955 = vadd.f32 %v2677, %v2954
    %v2956 = vand.u32 %v139, 4294901760
    %v2957 = vsub.f32 %v139, %v2956
    %2958 = vmatmul.f32.gmra.mxu0 %v2957
    %v2959 = vpop.f32.mrf.mxu0
    %v2960 = vadd.f32 %v2681, %v2959
    %v2961 = vand.u32 %v142, 4294901760
    %v2962 = vsub.f32 %v142, %v2961
    %2963 = vmatmul.f32.gmra.mxu0 %v2962
    %v2964 = vpop.f32.mrf.mxu0
    %v2965 = vadd.f32 %v2685, %v2964
    %v2966 = vand.u32 %v145, 4294901760
    %v2967 = vsub.f32 %v145, %v2966
    %2968 = vmatmul.f32.gmra.mxu0 %v2967
    %v2969 = vpop.f32.mrf.mxu0
    %v2970 = vadd.f32 %v2689, %v2969
    %v2971 = vand.u32 %v148, 4294901760
    %v2972 = vsub.f32 %v148, %v2971
    %2973 = vmatmul.f32.gmra.mxu0 %v2972
    %v2974 = vpop.f32.mrf.mxu0
    %v2975 = vadd.f32 %v2693, %v2974
    %v2976 = vand.u32 %v151, 4294901760
    %v2977 = vsub.f32 %v151, %v2976
    %2978 = vmatmul.f32.gmra.mxu0 %v2977
    %v2979 = vpop.f32.mrf.mxu0
    %v2980 = vadd.f32 %v2697, %v2979
    %v2981 = vand.u32 %v154, 4294901760
    %v2982 = vsub.f32 %v154, %v2981
    %2983 = vmatmul.f32.gmra.mxu0 %v2982
    %v2984 = vpop.f32.mrf.mxu0
    %v2985 = vadd.f32 %v2701, %v2984
    %v2986 = vand.u32 %v157, 4294901760
    %v2987 = vsub.f32 %v157, %v2986
    %2988 = vmatmul.f32.gmra.mxu0 %v2987
    %v2989 = vpop.f32.mrf.mxu0
    %v2990 = vadd.f32 %v2705, %v2989
    %v2991 = vand.u32 %v160, 4294901760
    %v2992 = vsub.f32 %v160, %v2991
    %2993 = vmatmul.f32.gmra.mxu0 %v2992
    %v2994 = vpop.f32.mrf.mxu0
    %v2995 = vadd.f32 %v2709, %v2994
    %v2996 = vand.u32 %v163, 4294901760
    %v2997 = vsub.f32 %v163, %v2996
    %2998 = vmatmul.f32.gmra.mxu0 %v2997
    %v2999 = vpop.f32.mrf.mxu0
    %v3000 = vadd.f32 %v2713, %v2999
    %v3001 = vand.u32 %v166, 4294901760
    %v3002 = vsub.f32 %v166, %v3001
    %3003 = vmatmul.f32.gmra.mxu0 %v3002
    %v3004 = vpop.f32.mrf.mxu0
    %v3005 = vadd.f32 %v2717, %v3004
    %v3006 = vand.u32 %v169, 4294901760
    %v3007 = vsub.f32 %v169, %v3006
    %3008 = vmatmul.f32.gmra.mxu0 %v3007
    %v3009 = vpop.f32.mrf.mxu0
    %v3010 = vadd.f32 %v2721, %v3009
    %3011 = vdwg.mxu0
    %v3012 = vand.u32 %v202, 4294901760
    %3013 = vmatpush.msra.mxu0 %v3012
    %v3014 = vand.u32 %v201, 4294901760
    %3015 = vmatpush.msra.mxu0 %v3014
    %v3016 = vand.u32 %v200, 4294901760
    %3017 = vmatpush.msra.mxu0 %v3016
    %v3018 = vand.u32 %v199, 4294901760
    %3019 = vmatpush.msra.mxu0 %v3018
    %v3020 = vand.u32 %v198, 4294901760
    %3021 = vmatpush.msra.mxu0 %v3020
    %v3022 = vand.u32 %v197, 4294901760
    %3023 = vmatpush.msra.mxu0 %v3022
    %v3024 = vand.u32 %v196, 4294901760
    %3025 = vmatpush.msra.mxu0 %v3024
    %v3026 = vand.u32 %v195, 4294901760
    %3027 = vmatpush.msra.mxu0 %v3026
    %v3028 = vand.u32 %v194, 4294901760
    %3029 = vmatpush.msra.mxu0 %v3028
    %v3030 = vand.u32 %v193, 4294901760
    %3031 = vmatpush.msra.mxu0 %v3030
    %v3032 = vand.u32 %v192, 4294901760
    %3033 = vmatpush.msra.mxu0 %v3032
    %v3034 = vand.u32 %v191, 4294901760
    %3035 = vmatpush.msra.mxu0 %v3034
    %v3036 = vand.u32 %v190, 4294901760
    %3037 = vmatpush.msra.mxu0 %v3036
    %v3038 = vand.u32 %v189, 4294901760
    %3039 = vmatpush.msra.mxu0 %v3038
    %v3040 = vand.u32 %v188, 4294901760
    %3041 = vmatpush.msra.mxu0 %v3040
    %v3042 = vand.u32 %v187, 4294901760
    %3043 = vmatpush.msra.mxu0 %v3042
    %v3044 = vand.u32 %v28, 4294901760
    %v3045 = vsub.f32 %v28, %v3044
    %v3046 = vand.u32 %v3045, 4294901760
    %3047 = vmatmul.f32.gmra.mxu0 %v3046
    %v3048 = vpop.f32.mrf.mxu0
    %v3049 = vadd.f32 %v2775, %v3048
    %v3050 = vand.u32 %v31, 4294901760
    %v3051 = vsub.f32 %v31, %v3050
    %v3052 = vand.u32 %v3051, 4294901760
    %3053 = vmatmul.f32.gmra.mxu0 %v3052
    %v3054 = vpop.f32.mrf.mxu0
    %v3055 = vadd.f32 %v2780, %v3054
    %v3056 = vand.u32 %v34, 4294901760
    %v3057 = vsub.f32 %v34, %v3056
    %v3058 = vand.u32 %v3057, 4294901760
    %3059 = vmatmul.f32.gmra.mxu0 %v3058
    %v3060 = vpop.f32.mrf.mxu0
    %v3061 = vadd.f32 %v2785, %v3060
    %v3062 = vand.u32 %v37, 4294901760
    %v3063 = vsub.f32 %v37, %v3062
    %v3064 = vand.u32 %v3063, 4294901760
    %3065 = vmatmul.f32.gmra.mxu0 %v3064
    %v3066 = vpop.f32.mrf.mxu0
    %v3067 = vadd.f32 %v2790, %v3066
    %v3068 = vand.u32 %v40, 4294901760
    %v3069 = vsub.f32 %v40, %v3068
    %v3070 = vand.u32 %v3069, 4294901760
    %3071 = vmatmul.f32.gmra.mxu0 %v3070
    %v3072 = vpop.f32.mrf.mxu0
    %v3073 = vadd.f32 %v2795, %v3072
    %v3074 = vand.u32 %v43, 4294901760
    %v3075 = vsub.f32 %v43, %v3074
    %v3076 = vand.u32 %v3075, 4294901760
    %3077 = vmatmul.f32.gmra.mxu0 %v3076
    %v3078 = vpop.f32.mrf.mxu0
    %v3079 = vadd.f32 %v2800, %v3078
    %v3080 = vand.u32 %v46, 4294901760
    %v3081 = vsub.f32 %v46, %v3080
    %v3082 = vand.u32 %v3081, 4294901760
    %3083 = vmatmul.f32.gmra.mxu0 %v3082
    %v3084 = vpop.f32.mrf.mxu0
    %v3085 = vadd.f32 %v2805, %v3084
    %v3086 = vand.u32 %v49, 4294901760
    %v3087 = vsub.f32 %v49, %v3086
    %v3088 = vand.u32 %v3087, 4294901760
    %3089 = vmatmul.f32.gmra.mxu0 %v3088
    %v3090 = vpop.f32.mrf.mxu0
    %v3091 = vadd.f32 %v2810, %v3090
    %v3092 = vand.u32 %v52, 4294901760
    %v3093 = vsub.f32 %v52, %v3092
    %v3094 = vand.u32 %v3093, 4294901760
    %3095 = vmatmul.f32.gmra.mxu0 %v3094
    %v3096 = vpop.f32.mrf.mxu0
    %v3097 = vadd.f32 %v2815, %v3096
    %v3098 = vand.u32 %v55, 4294901760
    %v3099 = vsub.f32 %v55, %v3098
    %v3100 = vand.u32 %v3099, 4294901760
    %3101 = vmatmul.f32.gmra.mxu0 %v3100
    %v3102 = vpop.f32.mrf.mxu0
    %v3103 = vadd.f32 %v2820, %v3102
    %v3104 = vand.u32 %v58, 4294901760
    %v3105 = vsub.f32 %v58, %v3104
    %v3106 = vand.u32 %v3105, 4294901760
    %3107 = vmatmul.f32.gmra.mxu0 %v3106
    %v3108 = vpop.f32.mrf.mxu0
    %v3109 = vadd.f32 %v2825, %v3108
    %v3110 = vand.u32 %v61, 4294901760
    %v3111 = vsub.f32 %v61, %v3110
    %v3112 = vand.u32 %v3111, 4294901760
    %3113 = vmatmul.f32.gmra.mxu0 %v3112
    %v3114 = vpop.f32.mrf.mxu0
    %v3115 = vadd.f32 %v2830, %v3114
    %v3116 = vand.u32 %v64, 4294901760
    %v3117 = vsub.f32 %v64, %v3116
    %v3118 = vand.u32 %v3117, 4294901760
    %3119 = vmatmul.f32.gmra.mxu0 %v3118
    %v3120 = vpop.f32.mrf.mxu0
    %v3121 = vadd.f32 %v2835, %v3120
    %v3122 = vand.u32 %v67, 4294901760
    %v3123 = vsub.f32 %v67, %v3122
    %v3124 = vand.u32 %v3123, 4294901760
    %3125 = vmatmul.f32.gmra.mxu0 %v3124
    %v3126 = vpop.f32.mrf.mxu0
    %v3127 = vadd.f32 %v2840, %v3126
    %v3128 = vand.u32 %v70, 4294901760
    %v3129 = vsub.f32 %v70, %v3128
    %v3130 = vand.u32 %v3129, 4294901760
    %3131 = vmatmul.f32.gmra.mxu0 %v3130
    %v3132 = vpop.f32.mrf.mxu0
    %v3133 = vadd.f32 %v2845, %v3132
    %v3134 = vand.u32 %v73, 4294901760
    %v3135 = vsub.f32 %v73, %v3134
    %v3136 = vand.u32 %v3135, 4294901760
    %3137 = vmatmul.f32.gmra.mxu0 %v3136
    %v3138 = vpop.f32.mrf.mxu0
    %v3139 = vadd.f32 %v2850, %v3138
    %v3140 = vand.u32 %v76, 4294901760
    %v3141 = vsub.f32 %v76, %v3140
    %v3142 = vand.u32 %v3141, 4294901760
    %3143 = vmatmul.f32.gmra.mxu0 %v3142
    %v3144 = vpop.f32.mrf.mxu0
    %v3145 = vadd.f32 %v2855, %v3144
    %v3146 = vand.u32 %v79, 4294901760
    %v3147 = vsub.f32 %v79, %v3146
    %v3148 = vand.u32 %v3147, 4294901760
    %3149 = vmatmul.f32.gmra.mxu0 %v3148
    %v3150 = vpop.f32.mrf.mxu0
    %v3151 = vadd.f32 %v2860, %v3150
    %v3152 = vand.u32 %v82, 4294901760
    %v3153 = vsub.f32 %v82, %v3152
    %v3154 = vand.u32 %v3153, 4294901760
    %3155 = vmatmul.f32.gmra.mxu0 %v3154
    %v3156 = vpop.f32.mrf.mxu0
    %v3157 = vadd.f32 %v2865, %v3156
    %v3158 = vand.u32 %v85, 4294901760
    %v3159 = vsub.f32 %v85, %v3158
    %v3160 = vand.u32 %v3159, 4294901760
    %3161 = vmatmul.f32.gmra.mxu0 %v3160
    %v3162 = vpop.f32.mrf.mxu0
    %v3163 = vadd.f32 %v2870, %v3162
    %v3164 = vand.u32 %v88, 4294901760
    %v3165 = vsub.f32 %v88, %v3164
    %v3166 = vand.u32 %v3165, 4294901760
    %3167 = vmatmul.f32.gmra.mxu0 %v3166
    %v3168 = vpop.f32.mrf.mxu0
    %v3169 = vadd.f32 %v2875, %v3168
    %v3170 = vand.u32 %v91, 4294901760
    %v3171 = vsub.f32 %v91, %v3170
    %v3172 = vand.u32 %v3171, 4294901760
    %3173 = vmatmul.f32.gmra.mxu0 %v3172
    %v3174 = vpop.f32.mrf.mxu0
    %v3175 = vadd.f32 %v2880, %v3174
    %v3176 = vand.u32 %v94, 4294901760
    %v3177 = vsub.f32 %v94, %v3176
    %v3178 = vand.u32 %v3177, 4294901760
    %3179 = vmatmul.f32.gmra.mxu0 %v3178
    %v3180 = vpop.f32.mrf.mxu0
    %v3181 = vadd.f32 %v2885, %v3180
    %v3182 = vand.u32 %v97, 4294901760
    %v3183 = vsub.f32 %v97, %v3182
    %v3184 = vand.u32 %v3183, 4294901760
    %3185 = vmatmul.f32.gmra.mxu0 %v3184
    %v3186 = vpop.f32.mrf.mxu0
    %v3187 = vadd.f32 %v2890, %v3186
    %v3188 = vand.u32 %v100, 4294901760
    %v3189 = vsub.f32 %v100, %v3188
    %v3190 = vand.u32 %v3189, 4294901760
    %3191 = vmatmul.f32.gmra.mxu0 %v3190
    %v3192 = vpop.f32.mrf.mxu0
    %v3193 = vadd.f32 %v2895, %v3192
    %v3194 = vand.u32 %v103, 4294901760
    %v3195 = vsub.f32 %v103, %v3194
    %v3196 = vand.u32 %v3195, 4294901760
    %3197 = vmatmul.f32.gmra.mxu0 %v3196
    %v3198 = vpop.f32.mrf.mxu0
    %v3199 = vadd.f32 %v2900, %v3198
    %v3200 = vand.u32 %v106, 4294901760
    %v3201 = vsub.f32 %v106, %v3200
    %v3202 = vand.u32 %v3201, 4294901760
    %3203 = vmatmul.f32.gmra.mxu0 %v3202
    %v3204 = vpop.f32.mrf.mxu0
    %v3205 = vadd.f32 %v2905, %v3204
    %v3206 = vand.u32 %v109, 4294901760
    %v3207 = vsub.f32 %v109, %v3206
    %v3208 = vand.u32 %v3207, 4294901760
    %3209 = vmatmul.f32.gmra.mxu0 %v3208
    %v3210 = vpop.f32.mrf.mxu0
    %v3211 = vadd.f32 %v2910, %v3210
    %v3212 = vand.u32 %v112, 4294901760
    %v3213 = vsub.f32 %v112, %v3212
    %v3214 = vand.u32 %v3213, 4294901760
    %3215 = vmatmul.f32.gmra.mxu0 %v3214
    %v3216 = vpop.f32.mrf.mxu0
    %v3217 = vadd.f32 %v2915, %v3216
    %v3218 = vand.u32 %v115, 4294901760
    %v3219 = vsub.f32 %v115, %v3218
    %v3220 = vand.u32 %v3219, 4294901760
    %3221 = vmatmul.f32.gmra.mxu0 %v3220
    %v3222 = vpop.f32.mrf.mxu0
    %v3223 = vadd.f32 %v2920, %v3222
    %v3224 = vand.u32 %v118, 4294901760
    %v3225 = vsub.f32 %v118, %v3224
    %v3226 = vand.u32 %v3225, 4294901760
    %3227 = vmatmul.f32.gmra.mxu0 %v3226
    %v3228 = vpop.f32.mrf.mxu0
    %v3229 = vadd.f32 %v2925, %v3228
    %v3230 = vand.u32 %v121, 4294901760
    %v3231 = vsub.f32 %v121, %v3230
    %v3232 = vand.u32 %v3231, 4294901760
    %3233 = vmatmul.f32.gmra.mxu0 %v3232
    %v3234 = vpop.f32.mrf.mxu0
    %v3235 = vadd.f32 %v2930, %v3234
    %v3236 = vand.u32 %v124, 4294901760
    %v3237 = vsub.f32 %v124, %v3236
    %v3238 = vand.u32 %v3237, 4294901760
    %3239 = vmatmul.f32.gmra.mxu0 %v3238
    %v3240 = vpop.f32.mrf.mxu0
    %v3241 = vadd.f32 %v2935, %v3240
    %v3242 = vand.u32 %v127, 4294901760
    %v3243 = vsub.f32 %v127, %v3242
    %v3244 = vand.u32 %v3243, 4294901760
    %3245 = vmatmul.f32.gmra.mxu0 %v3244
    %v3246 = vpop.f32.mrf.mxu0
    %v3247 = vadd.f32 %v2940, %v3246
    %v3248 = vand.u32 %v130, 4294901760
    %v3249 = vsub.f32 %v130, %v3248
    %v3250 = vand.u32 %v3249, 4294901760
    %3251 = vmatmul.f32.gmra.mxu0 %v3250
    %v3252 = vpop.f32.mrf.mxu0
    %v3253 = vadd.f32 %v2945, %v3252
    %v3254 = vand.u32 %v133, 4294901760
    %v3255 = vsub.f32 %v133, %v3254
    %v3256 = vand.u32 %v3255, 4294901760
    %3257 = vmatmul.f32.gmra.mxu0 %v3256
    %v3258 = vpop.f32.mrf.mxu0
    %v3259 = vadd.f32 %v2950, %v3258
    %v3260 = vand.u32 %v136, 4294901760
    %v3261 = vsub.f32 %v136, %v3260
    %v3262 = vand.u32 %v3261, 4294901760
    %3263 = vmatmul.f32.gmra.mxu0 %v3262
    %v3264 = vpop.f32.mrf.mxu0
    %v3265 = vadd.f32 %v2955, %v3264
    %v3266 = vand.u32 %v139, 4294901760
    %v3267 = vsub.f32 %v139, %v3266
    %v3268 = vand.u32 %v3267, 4294901760
    %3269 = vmatmul.f32.gmra.mxu0 %v3268
    %v3270 = vpop.f32.mrf.mxu0
    %v3271 = vadd.f32 %v2960, %v3270
    %v3272 = vand.u32 %v142, 4294901760
    %v3273 = vsub.f32 %v142, %v3272
    %v3274 = vand.u32 %v3273, 4294901760
    %3275 = vmatmul.f32.gmra.mxu0 %v3274
    %v3276 = vpop.f32.mrf.mxu0
    %v3277 = vadd.f32 %v2965, %v3276
    %v3278 = vand.u32 %v145, 4294901760
    %v3279 = vsub.f32 %v145, %v3278
    %v3280 = vand.u32 %v3279, 4294901760
    %3281 = vmatmul.f32.gmra.mxu0 %v3280
    %v3282 = vpop.f32.mrf.mxu0
    %v3283 = vadd.f32 %v2970, %v3282
    %v3284 = vand.u32 %v148, 4294901760
    %v3285 = vsub.f32 %v148, %v3284
    %v3286 = vand.u32 %v3285, 4294901760
    %3287 = vmatmul.f32.gmra.mxu0 %v3286
    %v3288 = vpop.f32.mrf.mxu0
    %v3289 = vadd.f32 %v2975, %v3288
    %v3290 = vand.u32 %v151, 4294901760
    %v3291 = vsub.f32 %v151, %v3290
    %v3292 = vand.u32 %v3291, 4294901760
    %3293 = vmatmul.f32.gmra.mxu0 %v3292
    %v3294 = vpop.f32.mrf.mxu0
    %v3295 = vadd.f32 %v2980, %v3294
    %v3296 = vand.u32 %v154, 4294901760
    %v3297 = vsub.f32 %v154, %v3296
    %v3298 = vand.u32 %v3297, 4294901760
    %3299 = vmatmul.f32.gmra.mxu0 %v3298
    %v3300 = vpop.f32.mrf.mxu0
    %v3301 = vadd.f32 %v2985, %v3300
    %v3302 = vand.u32 %v157, 4294901760
    %v3303 = vsub.f32 %v157, %v3302
    %v3304 = vand.u32 %v3303, 4294901760
    %3305 = vmatmul.f32.gmra.mxu0 %v3304
    %v3306 = vpop.f32.mrf.mxu0
    %v3307 = vadd.f32 %v2990, %v3306
    %v3308 = vand.u32 %v160, 4294901760
    %v3309 = vsub.f32 %v160, %v3308
    %v3310 = vand.u32 %v3309, 4294901760
    %3311 = vmatmul.f32.gmra.mxu0 %v3310
    %v3312 = vpop.f32.mrf.mxu0
    %v3313 = vadd.f32 %v2995, %v3312
    %v3314 = vand.u32 %v163, 4294901760
    %v3315 = vsub.f32 %v163, %v3314
    %v3316 = vand.u32 %v3315, 4294901760
    %3317 = vmatmul.f32.gmra.mxu0 %v3316
    %v3318 = vpop.f32.mrf.mxu0
    %v3319 = vadd.f32 %v3000, %v3318
    %v3320 = vand.u32 %v166, 4294901760
    %v3321 = vsub.f32 %v166, %v3320
    %v3322 = vand.u32 %v3321, 4294901760
    %3323 = vmatmul.f32.gmra.mxu0 %v3322
    %v3324 = vpop.f32.mrf.mxu0
    %v3325 = vadd.f32 %v3005, %v3324
    %v3326 = vand.u32 %v169, 4294901760
    %v3327 = vsub.f32 %v169, %v3326
    %v3328 = vand.u32 %v3327, 4294901760
    %3329 = vmatmul.f32.gmra.mxu0 %v3328
    %v3330 = vpop.f32.mrf.mxu0
    %v3331 = vadd.f32 %v3010, %v3330
    %3332 = vdwg.mxu0
    %v3333 = vand.u32 %v202, 4294901760
    %v3334 = vsub.f32 %v202, %v3333
    %v3335 = vand.u32 %v3334, 4294901760
    %3336 = vmatpush.msra.mxu0 %v3335
    %v3337 = vand.u32 %v201, 4294901760
    %v3338 = vsub.f32 %v201, %v3337
    %v3339 = vand.u32 %v3338, 4294901760
    %3340 = vmatpush.msra.mxu0 %v3339
    %v3341 = vand.u32 %v200, 4294901760
    %v3342 = vsub.f32 %v200, %v3341
    %v3343 = vand.u32 %v3342, 4294901760
    %3344 = vmatpush.msra.mxu0 %v3343
    %v3345 = vand.u32 %v199, 4294901760
    %v3346 = vsub.f32 %v199, %v3345
    %v3347 = vand.u32 %v3346, 4294901760
    %3348 = vmatpush.msra.mxu0 %v3347
    %v3349 = vand.u32 %v198, 4294901760
    %v3350 = vsub.f32 %v198, %v3349
    %v3351 = vand.u32 %v3350, 4294901760
    %3352 = vmatpush.msra.mxu0 %v3351
    %v3353 = vand.u32 %v197, 4294901760
    %v3354 = vsub.f32 %v197, %v3353
    %v3355 = vand.u32 %v3354, 4294901760
    %3356 = vmatpush.msra.mxu0 %v3355
    %v3357 = vand.u32 %v196, 4294901760
    %v3358 = vsub.f32 %v196, %v3357
    %v3359 = vand.u32 %v3358, 4294901760
    %3360 = vmatpush.msra.mxu0 %v3359
    %v3361 = vand.u32 %v195, 4294901760
    %v3362 = vsub.f32 %v195, %v3361
    %v3363 = vand.u32 %v3362, 4294901760
    %3364 = vmatpush.msra.mxu0 %v3363
    %v3365 = vand.u32 %v194, 4294901760
    %v3366 = vsub.f32 %v194, %v3365
    %v3367 = vand.u32 %v3366, 4294901760
    %3368 = vmatpush.msra.mxu0 %v3367
    %v3369 = vand.u32 %v193, 4294901760
    %v3370 = vsub.f32 %v193, %v3369
    %v3371 = vand.u32 %v3370, 4294901760
    %3372 = vmatpush.msra.mxu0 %v3371
    %v3373 = vand.u32 %v192, 4294901760
    %v3374 = vsub.f32 %v192, %v3373
    %v3375 = vand.u32 %v3374, 4294901760
    %3376 = vmatpush.msra.mxu0 %v3375
    %v3377 = vand.u32 %v191, 4294901760
    %v3378 = vsub.f32 %v191, %v3377
    %v3379 = vand.u32 %v3378, 4294901760
    %3380 = vmatpush.msra.mxu0 %v3379
    %v3381 = vand.u32 %v190, 4294901760
    %v3382 = vsub.f32 %v190, %v3381
    %v3383 = vand.u32 %v3382, 4294901760
    %3384 = vmatpush.msra.mxu0 %v3383
    %v3385 = vand.u32 %v189, 4294901760
    %v3386 = vsub.f32 %v189, %v3385
    %v3387 = vand.u32 %v3386, 4294901760
    %3388 = vmatpush.msra.mxu0 %v3387
    %v3389 = vand.u32 %v188, 4294901760
    %v3390 = vsub.f32 %v188, %v3389
    %v3391 = vand.u32 %v3390, 4294901760
    %3392 = vmatpush.msra.mxu0 %v3391
    %v3393 = vand.u32 %v187, 4294901760
    %v3394 = vsub.f32 %v187, %v3393
    %v3395 = vand.u32 %v3394, 4294901760
    %3396 = vmatpush.msra.mxu0 %v3395
    %v3397 = vand.u32 %v28, 4294901760
    %3398 = vmatmul.f32.gmra.mxu0 %v3397
    %v3399 = vpop.f32.mrf.mxu0
    %v3400 = vadd.f32 %v3049, %v3399
    %v3401 = vand.u32 %v31, 4294901760
    %3402 = vmatmul.f32.gmra.mxu0 %v3401
    %v3403 = vpop.f32.mrf.mxu0
    %v3404 = vadd.f32 %v3055, %v3403
    %v3405 = vand.u32 %v34, 4294901760
    %3406 = vmatmul.f32.gmra.mxu0 %v3405
    %v3407 = vpop.f32.mrf.mxu0
    %v3408 = vadd.f32 %v3061, %v3407
    %v3409 = vand.u32 %v37, 4294901760
    %3410 = vmatmul.f32.gmra.mxu0 %v3409
    %v3411 = vpop.f32.mrf.mxu0
    %v3412 = vadd.f32 %v3067, %v3411
    %v3413 = vand.u32 %v40, 4294901760
    %3414 = vmatmul.f32.gmra.mxu0 %v3413
    %v3415 = vpop.f32.mrf.mxu0
    %v3416 = vadd.f32 %v3073, %v3415
    %v3417 = vand.u32 %v43, 4294901760
    %3418 = vmatmul.f32.gmra.mxu0 %v3417
    %v3419 = vpop.f32.mrf.mxu0
    %v3420 = vadd.f32 %v3079, %v3419
    %v3421 = vand.u32 %v46, 4294901760
    %3422 = vmatmul.f32.gmra.mxu0 %v3421
    %v3423 = vpop.f32.mrf.mxu0
    %v3424 = vadd.f32 %v3085, %v3423
    %v3425 = vand.u32 %v49, 4294901760
    %3426 = vmatmul.f32.gmra.mxu0 %v3425
    %v3427 = vpop.f32.mrf.mxu0
    %v3428 = vadd.f32 %v3091, %v3427
    %v3429 = vand.u32 %v52, 4294901760
    %3430 = vmatmul.f32.gmra.mxu0 %v3429
    %v3431 = vpop.f32.mrf.mxu0
    %v3432 = vadd.f32 %v3097, %v3431
    %v3433 = vand.u32 %v55, 4294901760
    %3434 = vmatmul.f32.gmra.mxu0 %v3433
    %v3435 = vpop.f32.mrf.mxu0
    %v3436 = vadd.f32 %v3103, %v3435
    %v3437 = vand.u32 %v58, 4294901760
    %3438 = vmatmul.f32.gmra.mxu0 %v3437
    %v3439 = vpop.f32.mrf.mxu0
    %v3440 = vadd.f32 %v3109, %v3439
    %v3441 = vand.u32 %v61, 4294901760
    %3442 = vmatmul.f32.gmra.mxu0 %v3441
    %v3443 = vpop.f32.mrf.mxu0
    %v3444 = vadd.f32 %v3115, %v3443
    %v3445 = vand.u32 %v64, 4294901760
    %3446 = vmatmul.f32.gmra.mxu0 %v3445
    %v3447 = vpop.f32.mrf.mxu0
    %v3448 = vadd.f32 %v3121, %v3447
    %v3449 = vand.u32 %v67, 4294901760
    %3450 = vmatmul.f32.gmra.mxu0 %v3449
    %v3451 = vpop.f32.mrf.mxu0
    %v3452 = vadd.f32 %v3127, %v3451
    %v3453 = vand.u32 %v70, 4294901760
    %3454 = vmatmul.f32.gmra.mxu0 %v3453
    %v3455 = vpop.f32.mrf.mxu0
    %v3456 = vadd.f32 %v3133, %v3455
    %v3457 = vand.u32 %v73, 4294901760
    %3458 = vmatmul.f32.gmra.mxu0 %v3457
    %v3459 = vpop.f32.mrf.mxu0
    %v3460 = vadd.f32 %v3139, %v3459
    %v3461 = vand.u32 %v76, 4294901760
    %3462 = vmatmul.f32.gmra.mxu0 %v3461
    %v3463 = vpop.f32.mrf.mxu0
    %v3464 = vadd.f32 %v3145, %v3463
    %v3465 = vand.u32 %v79, 4294901760
    %3466 = vmatmul.f32.gmra.mxu0 %v3465
    %v3467 = vpop.f32.mrf.mxu0
    %v3468 = vadd.f32 %v3151, %v3467
    %v3469 = vand.u32 %v82, 4294901760
    %3470 = vmatmul.f32.gmra.mxu0 %v3469
    %v3471 = vpop.f32.mrf.mxu0
    %v3472 = vadd.f32 %v3157, %v3471
    %v3473 = vand.u32 %v85, 4294901760
    %3474 = vmatmul.f32.gmra.mxu0 %v3473
    %v3475 = vpop.f32.mrf.mxu0
    %v3476 = vadd.f32 %v3163, %v3475
    %v3477 = vand.u32 %v88, 4294901760
    %3478 = vmatmul.f32.gmra.mxu0 %v3477
    %v3479 = vpop.f32.mrf.mxu0
    %v3480 = vadd.f32 %v3169, %v3479
    %v3481 = vand.u32 %v91, 4294901760
    %3482 = vmatmul.f32.gmra.mxu0 %v3481
    %v3483 = vpop.f32.mrf.mxu0
    %v3484 = vadd.f32 %v3175, %v3483
    %v3485 = vand.u32 %v94, 4294901760
    %3486 = vmatmul.f32.gmra.mxu0 %v3485
    %v3487 = vpop.f32.mrf.mxu0
    %v3488 = vadd.f32 %v3181, %v3487
    %v3489 = vand.u32 %v97, 4294901760
    %3490 = vmatmul.f32.gmra.mxu0 %v3489
    %v3491 = vpop.f32.mrf.mxu0
    %v3492 = vadd.f32 %v3187, %v3491
    %v3493 = vand.u32 %v100, 4294901760
    %3494 = vmatmul.f32.gmra.mxu0 %v3493
    %v3495 = vpop.f32.mrf.mxu0
    %v3496 = vadd.f32 %v3193, %v3495
    %v3497 = vand.u32 %v103, 4294901760
    %3498 = vmatmul.f32.gmra.mxu0 %v3497
    %v3499 = vpop.f32.mrf.mxu0
    %v3500 = vadd.f32 %v3199, %v3499
    %v3501 = vand.u32 %v106, 4294901760
    %3502 = vmatmul.f32.gmra.mxu0 %v3501
    %v3503 = vpop.f32.mrf.mxu0
    %v3504 = vadd.f32 %v3205, %v3503
    %v3505 = vand.u32 %v109, 4294901760
    %3506 = vmatmul.f32.gmra.mxu0 %v3505
    %v3507 = vpop.f32.mrf.mxu0
    %v3508 = vadd.f32 %v3211, %v3507
    %v3509 = vand.u32 %v112, 4294901760
    %3510 = vmatmul.f32.gmra.mxu0 %v3509
    %v3511 = vpop.f32.mrf.mxu0
    %v3512 = vadd.f32 %v3217, %v3511
    %v3513 = vand.u32 %v115, 4294901760
    %3514 = vmatmul.f32.gmra.mxu0 %v3513
    %v3515 = vpop.f32.mrf.mxu0
    %v3516 = vadd.f32 %v3223, %v3515
    %v3517 = vand.u32 %v118, 4294901760
    %3518 = vmatmul.f32.gmra.mxu0 %v3517
    %v3519 = vpop.f32.mrf.mxu0
    %v3520 = vadd.f32 %v3229, %v3519
    %v3521 = vand.u32 %v121, 4294901760
    %3522 = vmatmul.f32.gmra.mxu0 %v3521
    %v3523 = vpop.f32.mrf.mxu0
    %v3524 = vadd.f32 %v3235, %v3523
    %v3525 = vand.u32 %v124, 4294901760
    %3526 = vmatmul.f32.gmra.mxu0 %v3525
    %v3527 = vpop.f32.mrf.mxu0
    %v3528 = vadd.f32 %v3241, %v3527
    %v3529 = vand.u32 %v127, 4294901760
    %3530 = vmatmul.f32.gmra.mxu0 %v3529
    %v3531 = vpop.f32.mrf.mxu0
    %v3532 = vadd.f32 %v3247, %v3531
    %v3533 = vand.u32 %v130, 4294901760
    %3534 = vmatmul.f32.gmra.mxu0 %v3533
    %v3535 = vpop.f32.mrf.mxu0
    %v3536 = vadd.f32 %v3253, %v3535
    %v3537 = vand.u32 %v133, 4294901760
    %3538 = vmatmul.f32.gmra.mxu0 %v3537
    %v3539 = vpop.f32.mrf.mxu0
    %v3540 = vadd.f32 %v3259, %v3539
    %v3541 = vand.u32 %v136, 4294901760
    %3542 = vmatmul.f32.gmra.mxu0 %v3541
    %v3543 = vpop.f32.mrf.mxu0
    %v3544 = vadd.f32 %v3265, %v3543
    %v3545 = vand.u32 %v139, 4294901760
    %3546 = vmatmul.f32.gmra.mxu0 %v3545
    %v3547 = vpop.f32.mrf.mxu0
    %v3548 = vadd.f32 %v3271, %v3547
    %v3549 = vand.u32 %v142, 4294901760
    %3550 = vmatmul.f32.gmra.mxu0 %v3549
    %v3551 = vpop.f32.mrf.mxu0
    %v3552 = vadd.f32 %v3277, %v3551
    %v3553 = vand.u32 %v145, 4294901760
    %3554 = vmatmul.f32.gmra.mxu0 %v3553
    %v3555 = vpop.f32.mrf.mxu0
    %v3556 = vadd.f32 %v3283, %v3555
    %v3557 = vand.u32 %v148, 4294901760
    %3558 = vmatmul.f32.gmra.mxu0 %v3557
    %v3559 = vpop.f32.mrf.mxu0
    %v3560 = vadd.f32 %v3289, %v3559
    %v3561 = vand.u32 %v151, 4294901760
    %3562 = vmatmul.f32.gmra.mxu0 %v3561
    %v3563 = vpop.f32.mrf.mxu0
    %v3564 = vadd.f32 %v3295, %v3563
    %v3565 = vand.u32 %v154, 4294901760
    %3566 = vmatmul.f32.gmra.mxu0 %v3565
    %v3567 = vpop.f32.mrf.mxu0
    %v3568 = vadd.f32 %v3301, %v3567
    %v3569 = vand.u32 %v157, 4294901760
    %3570 = vmatmul.f32.gmra.mxu0 %v3569
    %v3571 = vpop.f32.mrf.mxu0
    %v3572 = vadd.f32 %v3307, %v3571
    %v3573 = vand.u32 %v160, 4294901760
    %3574 = vmatmul.f32.gmra.mxu0 %v3573
    %v3575 = vpop.f32.mrf.mxu0
    %v3576 = vadd.f32 %v3313, %v3575
    %v3577 = vand.u32 %v163, 4294901760
    %3578 = vmatmul.f32.gmra.mxu0 %v3577
    %v3579 = vpop.f32.mrf.mxu0
    %v3580 = vadd.f32 %v3319, %v3579
    %v3581 = vand.u32 %v166, 4294901760
    %3582 = vmatmul.f32.gmra.mxu0 %v3581
    %v3583 = vpop.f32.mrf.mxu0
    %v3584 = vadd.f32 %v3325, %v3583
    %v3585 = vand.u32 %v169, 4294901760
    %3586 = vmatmul.f32.gmra.mxu0 %v3585
    %v3587 = vpop.f32.mrf.mxu0
    %v3588 = vadd.f32 %v3331, %v3587
    %3589 = vdwg.mxu0
    %v3590 = vand.u32 %v202, 4294901760
    %3591 = vmatpush.msra.mxu0 %v3590
    %v3592 = vand.u32 %v201, 4294901760
    %3593 = vmatpush.msra.mxu0 %v3592
    %v3594 = vand.u32 %v200, 4294901760
    %3595 = vmatpush.msra.mxu0 %v3594
    %v3596 = vand.u32 %v199, 4294901760
    %3597 = vmatpush.msra.mxu0 %v3596
    %v3598 = vand.u32 %v198, 4294901760
    %3599 = vmatpush.msra.mxu0 %v3598
    %v3600 = vand.u32 %v197, 4294901760
    %3601 = vmatpush.msra.mxu0 %v3600
    %v3602 = vand.u32 %v196, 4294901760
    %3603 = vmatpush.msra.mxu0 %v3602
    %v3604 = vand.u32 %v195, 4294901760
    %3605 = vmatpush.msra.mxu0 %v3604
    %v3606 = vand.u32 %v194, 4294901760
    %3607 = vmatpush.msra.mxu0 %v3606
    %v3608 = vand.u32 %v193, 4294901760
    %3609 = vmatpush.msra.mxu0 %v3608
    %v3610 = vand.u32 %v192, 4294901760
    %3611 = vmatpush.msra.mxu0 %v3610
    %v3612 = vand.u32 %v191, 4294901760
    %3613 = vmatpush.msra.mxu0 %v3612
    %v3614 = vand.u32 %v190, 4294901760
    %3615 = vmatpush.msra.mxu0 %v3614
    %v3616 = vand.u32 %v189, 4294901760
    %3617 = vmatpush.msra.mxu0 %v3616
    %v3618 = vand.u32 %v188, 4294901760
    %3619 = vmatpush.msra.mxu0 %v3618
    %v3620 = vand.u32 %v187, 4294901760
    %3621 = vmatpush.msra.mxu0 %v3620
    %v3622 = vand.u32 %v28, 4294901760
    %3623 = vmatmul.f32.gmra.mxu0 %v3622
    %v3624 = vpop.f32.mrf.mxu0
    %v3625 = vadd.f32 %v3400, %v3624
    %v3626 = vand.u32 %v31, 4294901760
    %3627 = vmatmul.f32.gmra.mxu0 %v3626
    %v3628 = vpop.f32.mrf.mxu0
    %v3629 = vadd.f32 %v3404, %v3628
    %v3630 = vand.u32 %v34, 4294901760
    %3631 = vmatmul.f32.gmra.mxu0 %v3630
    %v3632 = vpop.f32.mrf.mxu0
    %v3633 = vadd.f32 %v3408, %v3632
    %v3634 = vand.u32 %v37, 4294901760
    %3635 = vmatmul.f32.gmra.mxu0 %v3634
    %v3636 = vpop.f32.mrf.mxu0
    %v3637 = vadd.f32 %v3412, %v3636
    %v3638 = vand.u32 %v40, 4294901760
    %3639 = vmatmul.f32.gmra.mxu0 %v3638
    %v3640 = vpop.f32.mrf.mxu0
    %v3641 = vadd.f32 %v3416, %v3640
    %v3642 = vand.u32 %v43, 4294901760
    %3643 = vmatmul.f32.gmra.mxu0 %v3642
    %v3644 = vpop.f32.mrf.mxu0
    %v3645 = vadd.f32 %v3420, %v3644
    %v3646 = vand.u32 %v46, 4294901760
    %3647 = vmatmul.f32.gmra.mxu0 %v3646
    %v3648 = vpop.f32.mrf.mxu0
    %v3649 = vadd.f32 %v3424, %v3648
    %v3650 = vand.u32 %v49, 4294901760
    %3651 = vmatmul.f32.gmra.mxu0 %v3650
    %v3652 = vpop.f32.mrf.mxu0
    %v3653 = vadd.f32 %v3428, %v3652
    %v3654 = vand.u32 %v52, 4294901760
    %3655 = vmatmul.f32.gmra.mxu0 %v3654
    %v3656 = vpop.f32.mrf.mxu0
    %v3657 = vadd.f32 %v3432, %v3656
    %v3658 = vand.u32 %v55, 4294901760
    %3659 = vmatmul.f32.gmra.mxu0 %v3658
    %v3660 = vpop.f32.mrf.mxu0
    %v3661 = vadd.f32 %v3436, %v3660
    %v3662 = vand.u32 %v58, 4294901760
    %3663 = vmatmul.f32.gmra.mxu0 %v3662
    %v3664 = vpop.f32.mrf.mxu0
    %v3665 = vadd.f32 %v3440, %v3664
    %v3666 = vand.u32 %v61, 4294901760
    %3667 = vmatmul.f32.gmra.mxu0 %v3666
    %v3668 = vpop.f32.mrf.mxu0
    %v3669 = vadd.f32 %v3444, %v3668
    %v3670 = vand.u32 %v64, 4294901760
    %3671 = vmatmul.f32.gmra.mxu0 %v3670
    %v3672 = vpop.f32.mrf.mxu0
    %v3673 = vadd.f32 %v3448, %v3672
    %v3674 = vand.u32 %v67, 4294901760
    %3675 = vmatmul.f32.gmra.mxu0 %v3674
    %v3676 = vpop.f32.mrf.mxu0
    %v3677 = vadd.f32 %v3452, %v3676
    %v3678 = vand.u32 %v70, 4294901760
    %3679 = vmatmul.f32.gmra.mxu0 %v3678
    %v3680 = vpop.f32.mrf.mxu0
    %v3681 = vadd.f32 %v3456, %v3680
    %v3682 = vand.u32 %v73, 4294901760
    %3683 = vmatmul.f32.gmra.mxu0 %v3682
    %v3684 = vpop.f32.mrf.mxu0
    %v3685 = vadd.f32 %v3460, %v3684
    %v3686 = vand.u32 %v76, 4294901760
    %3687 = vmatmul.f32.gmra.mxu0 %v3686
    %v3688 = vpop.f32.mrf.mxu0
    %v3689 = vadd.f32 %v3464, %v3688
    %v3690 = vand.u32 %v79, 4294901760
    %3691 = vmatmul.f32.gmra.mxu0 %v3690
    %v3692 = vpop.f32.mrf.mxu0
    %v3693 = vadd.f32 %v3468, %v3692
    %v3694 = vand.u32 %v82, 4294901760
    %3695 = vmatmul.f32.gmra.mxu0 %v3694
    %v3696 = vpop.f32.mrf.mxu0
    %v3697 = vadd.f32 %v3472, %v3696
    %v3698 = vand.u32 %v85, 4294901760
    %3699 = vmatmul.f32.gmra.mxu0 %v3698
    %v3700 = vpop.f32.mrf.mxu0
    %v3701 = vadd.f32 %v3476, %v3700
    %v3702 = vand.u32 %v88, 4294901760
    %3703 = vmatmul.f32.gmra.mxu0 %v3702
    %v3704 = vpop.f32.mrf.mxu0
    %v3705 = vadd.f32 %v3480, %v3704
    %v3706 = vand.u32 %v91, 4294901760
    %3707 = vmatmul.f32.gmra.mxu0 %v3706
    %v3708 = vpop.f32.mrf.mxu0
    %v3709 = vadd.f32 %v3484, %v3708
    %v3710 = vand.u32 %v94, 4294901760
    %3711 = vmatmul.f32.gmra.mxu0 %v3710
    %v3712 = vpop.f32.mrf.mxu0
    %v3713 = vadd.f32 %v3488, %v3712
    %v3714 = vand.u32 %v97, 4294901760
    %3715 = vmatmul.f32.gmra.mxu0 %v3714
    %v3716 = vpop.f32.mrf.mxu0
    %v3717 = vadd.f32 %v3492, %v3716
    %v3718 = vand.u32 %v100, 4294901760
    %3719 = vmatmul.f32.gmra.mxu0 %v3718
    %v3720 = vpop.f32.mrf.mxu0
    %v3721 = vadd.f32 %v3496, %v3720
    %v3722 = vand.u32 %v103, 4294901760
    %3723 = vmatmul.f32.gmra.mxu0 %v3722
    %v3724 = vpop.f32.mrf.mxu0
    %v3725 = vadd.f32 %v3500, %v3724
    %v3726 = vand.u32 %v106, 4294901760
    %3727 = vmatmul.f32.gmra.mxu0 %v3726
    %v3728 = vpop.f32.mrf.mxu0
    %v3729 = vadd.f32 %v3504, %v3728
    %v3730 = vand.u32 %v109, 4294901760
    %3731 = vmatmul.f32.gmra.mxu0 %v3730
    %v3732 = vpop.f32.mrf.mxu0
    %v3733 = vadd.f32 %v3508, %v3732
    %v3734 = vand.u32 %v112, 4294901760
    %3735 = vmatmul.f32.gmra.mxu0 %v3734
    %v3736 = vpop.f32.mrf.mxu0
    %v3737 = vadd.f32 %v3512, %v3736
    %v3738 = vand.u32 %v115, 4294901760
    %3739 = vmatmul.f32.gmra.mxu0 %v3738
    %v3740 = vpop.f32.mrf.mxu0
    %v3741 = vadd.f32 %v3516, %v3740
    %v3742 = vand.u32 %v118, 4294901760
    %3743 = vmatmul.f32.gmra.mxu0 %v3742
    %v3744 = vpop.f32.mrf.mxu0
    %v3745 = vadd.f32 %v3520, %v3744
    %v3746 = vand.u32 %v121, 4294901760
    %3747 = vmatmul.f32.gmra.mxu0 %v3746
    %v3748 = vpop.f32.mrf.mxu0
    %v3749 = vadd.f32 %v3524, %v3748
    %v3750 = vand.u32 %v124, 4294901760
    %3751 = vmatmul.f32.gmra.mxu0 %v3750
    %v3752 = vpop.f32.mrf.mxu0
    %v3753 = vadd.f32 %v3528, %v3752
    %v3754 = vand.u32 %v127, 4294901760
    %3755 = vmatmul.f32.gmra.mxu0 %v3754
    %v3756 = vpop.f32.mrf.mxu0
    %v3757 = vadd.f32 %v3532, %v3756
    %v3758 = vand.u32 %v130, 4294901760
    %3759 = vmatmul.f32.gmra.mxu0 %v3758
    %v3760 = vpop.f32.mrf.mxu0
    %v3761 = vadd.f32 %v3536, %v3760
    %v3762 = vand.u32 %v133, 4294901760
    %3763 = vmatmul.f32.gmra.mxu0 %v3762
    %v3764 = vpop.f32.mrf.mxu0
    %v3765 = vadd.f32 %v3540, %v3764
    %v3766 = vand.u32 %v136, 4294901760
    %3767 = vmatmul.f32.gmra.mxu0 %v3766
    %v3768 = vpop.f32.mrf.mxu0
    %v3769 = vadd.f32 %v3544, %v3768
    %v3770 = vand.u32 %v139, 4294901760
    %3771 = vmatmul.f32.gmra.mxu0 %v3770
    %v3772 = vpop.f32.mrf.mxu0
    %v3773 = vadd.f32 %v3548, %v3772
    %v3774 = vand.u32 %v142, 4294901760
    %3775 = vmatmul.f32.gmra.mxu0 %v3774
    %v3776 = vpop.f32.mrf.mxu0
    %v3777 = vadd.f32 %v3552, %v3776
    %v3778 = vand.u32 %v145, 4294901760
    %3779 = vmatmul.f32.gmra.mxu0 %v3778
    %v3780 = vpop.f32.mrf.mxu0
    %v3781 = vadd.f32 %v3556, %v3780
    %v3782 = vand.u32 %v148, 4294901760
    %3783 = vmatmul.f32.gmra.mxu0 %v3782
    %v3784 = vpop.f32.mrf.mxu0
    %v3785 = vadd.f32 %v3560, %v3784
    %v3786 = vand.u32 %v151, 4294901760
    %3787 = vmatmul.f32.gmra.mxu0 %v3786
    %v3788 = vpop.f32.mrf.mxu0
    %v3789 = vadd.f32 %v3564, %v3788
    %v3790 = vand.u32 %v154, 4294901760
    %3791 = vmatmul.f32.gmra.mxu0 %v3790
    %v3792 = vpop.f32.mrf.mxu0
    %v3793 = vadd.f32 %v3568, %v3792
    %v3794 = vand.u32 %v157, 4294901760
    %3795 = vmatmul.f32.gmra.mxu0 %v3794
    %v3796 = vpop.f32.mrf.mxu0
    %v3797 = vadd.f32 %v3572, %v3796
    %v3798 = vand.u32 %v160, 4294901760
    %3799 = vmatmul.f32.gmra.mxu0 %v3798
    %v3800 = vpop.f32.mrf.mxu0
    %v3801 = vadd.f32 %v3576, %v3800
    %v3802 = vand.u32 %v163, 4294901760
    %3803 = vmatmul.f32.gmra.mxu0 %v3802
    %v3804 = vpop.f32.mrf.mxu0
    %v3805 = vadd.f32 %v3580, %v3804
    %v3806 = vand.u32 %v166, 4294901760
    %3807 = vmatmul.f32.gmra.mxu0 %v3806
    %v3808 = vpop.f32.mrf.mxu0
    %v3809 = vadd.f32 %v3584, %v3808
    %v3810 = vand.u32 %v169, 4294901760
    %3811 = vmatmul.f32.gmra.mxu0 %v3810
    %v3812 = vpop.f32.mrf.mxu0
    %v3813 = vadd.f32 %v3588, %v3812
    %3814 = vdwg.mxu0
    %v3815 = vand.u32 %v218, 4294901760
    %3816 = vmatpush.msra.mxu0 %v3815
    %v3817 = vand.u32 %v217, 4294901760
    %3818 = vmatpush.msra.mxu0 %v3817
    %v3819 = vand.u32 %v216, 4294901760
    %3820 = vmatpush.msra.mxu0 %v3819
    %v3821 = vand.u32 %v215, 4294901760
    %3822 = vmatpush.msra.mxu0 %v3821
    %v3823 = vand.u32 %v214, 4294901760
    %3824 = vmatpush.msra.mxu0 %v3823
    %v3825 = vand.u32 %v213, 4294901760
    %3826 = vmatpush.msra.mxu0 %v3825
    %v3827 = vand.u32 %v212, 4294901760
    %3828 = vmatpush.msra.mxu0 %v3827
    %v3829 = vand.u32 %v211, 4294901760
    %3830 = vmatpush.msra.mxu0 %v3829
    %v3831 = vand.u32 %v210, 4294901760
    %3832 = vmatpush.msra.mxu0 %v3831
    %v3833 = vand.u32 %v209, 4294901760
    %3834 = vmatpush.msra.mxu0 %v3833
    %v3835 = vand.u32 %v208, 4294901760
    %3836 = vmatpush.msra.mxu0 %v3835
    %v3837 = vand.u32 %v207, 4294901760
    %3838 = vmatpush.msra.mxu0 %v3837
    %v3839 = vand.u32 %v206, 4294901760
    %3840 = vmatpush.msra.mxu0 %v3839
    %v3841 = vand.u32 %v205, 4294901760
    %3842 = vmatpush.msra.mxu0 %v3841
    %v3843 = vand.u32 %v204, 4294901760
    %3844 = vmatpush.msra.mxu0 %v3843
    %v3845 = vand.u32 %v203, 4294901760
    %3846 = vmatpush.msra.mxu0 %v3845
    %v3847 = vand.u32 %v29, 4294901760
    %v3848 = vsub.f32 %v29, %v3847
    %v3849 = vand.u32 %v3848, 4294901760
    %v3850 = vsub.f32 %v3848, %v3849
    %v3851 = vand.u32 %v3850, 4294901760
    %3852 = vmatmul.f32.gmra.mxu0 %v3851
    %v3853 = vpop.f32.mrf.mxu0
    %v3854 = vadd.f32 %v3625, %v3853
    %v3855 = vand.u32 %v32, 4294901760
    %v3856 = vsub.f32 %v32, %v3855
    %v3857 = vand.u32 %v3856, 4294901760
    %v3858 = vsub.f32 %v3856, %v3857
    %v3859 = vand.u32 %v3858, 4294901760
    %3860 = vmatmul.f32.gmra.mxu0 %v3859
    %v3861 = vpop.f32.mrf.mxu0
    %v3862 = vadd.f32 %v3629, %v3861
    %v3863 = vand.u32 %v35, 4294901760
    %v3864 = vsub.f32 %v35, %v3863
    %v3865 = vand.u32 %v3864, 4294901760
    %v3866 = vsub.f32 %v3864, %v3865
    %v3867 = vand.u32 %v3866, 4294901760
    %3868 = vmatmul.f32.gmra.mxu0 %v3867
    %v3869 = vpop.f32.mrf.mxu0
    %v3870 = vadd.f32 %v3633, %v3869
    %v3871 = vand.u32 %v38, 4294901760
    %v3872 = vsub.f32 %v38, %v3871
    %v3873 = vand.u32 %v3872, 4294901760
    %v3874 = vsub.f32 %v3872, %v3873
    %v3875 = vand.u32 %v3874, 4294901760
    %3876 = vmatmul.f32.gmra.mxu0 %v3875
    %v3877 = vpop.f32.mrf.mxu0
    %v3878 = vadd.f32 %v3637, %v3877
    %v3879 = vand.u32 %v41, 4294901760
    %v3880 = vsub.f32 %v41, %v3879
    %v3881 = vand.u32 %v3880, 4294901760
    %v3882 = vsub.f32 %v3880, %v3881
    %v3883 = vand.u32 %v3882, 4294901760
    %3884 = vmatmul.f32.gmra.mxu0 %v3883
    %v3885 = vpop.f32.mrf.mxu0
    %v3886 = vadd.f32 %v3641, %v3885
    %v3887 = vand.u32 %v44, 4294901760
    %v3888 = vsub.f32 %v44, %v3887
    %v3889 = vand.u32 %v3888, 4294901760
    %v3890 = vsub.f32 %v3888, %v3889
    %v3891 = vand.u32 %v3890, 4294901760
    %3892 = vmatmul.f32.gmra.mxu0 %v3891
    %v3893 = vpop.f32.mrf.mxu0
    %v3894 = vadd.f32 %v3645, %v3893
    %v3895 = vand.u32 %v47, 4294901760
    %v3896 = vsub.f32 %v47, %v3895
    %v3897 = vand.u32 %v3896, 4294901760
    %v3898 = vsub.f32 %v3896, %v3897
    %v3899 = vand.u32 %v3898, 4294901760
    %3900 = vmatmul.f32.gmra.mxu0 %v3899
    %v3901 = vpop.f32.mrf.mxu0
    %v3902 = vadd.f32 %v3649, %v3901
    %v3903 = vand.u32 %v50, 4294901760
    %v3904 = vsub.f32 %v50, %v3903
    %v3905 = vand.u32 %v3904, 4294901760
    %v3906 = vsub.f32 %v3904, %v3905
    %v3907 = vand.u32 %v3906, 4294901760
    %3908 = vmatmul.f32.gmra.mxu0 %v3907
    %v3909 = vpop.f32.mrf.mxu0
    %v3910 = vadd.f32 %v3653, %v3909
    %v3911 = vand.u32 %v53, 4294901760
    %v3912 = vsub.f32 %v53, %v3911
    %v3913 = vand.u32 %v3912, 4294901760
    %v3914 = vsub.f32 %v3912, %v3913
    %v3915 = vand.u32 %v3914, 4294901760
    %3916 = vmatmul.f32.gmra.mxu0 %v3915
    %v3917 = vpop.f32.mrf.mxu0
    %v3918 = vadd.f32 %v3657, %v3917
    %v3919 = vand.u32 %v56, 4294901760
    %v3920 = vsub.f32 %v56, %v3919
    %v3921 = vand.u32 %v3920, 4294901760
    %v3922 = vsub.f32 %v3920, %v3921
    %v3923 = vand.u32 %v3922, 4294901760
    %3924 = vmatmul.f32.gmra.mxu0 %v3923
    %v3925 = vpop.f32.mrf.mxu0
    %v3926 = vadd.f32 %v3661, %v3925
    %v3927 = vand.u32 %v59, 4294901760
    %v3928 = vsub.f32 %v59, %v3927
    %v3929 = vand.u32 %v3928, 4294901760
    %v3930 = vsub.f32 %v3928, %v3929
    %v3931 = vand.u32 %v3930, 4294901760
    %3932 = vmatmul.f32.gmra.mxu0 %v3931
    %v3933 = vpop.f32.mrf.mxu0
    %v3934 = vadd.f32 %v3665, %v3933
    %v3935 = vand.u32 %v62, 4294901760
    %v3936 = vsub.f32 %v62, %v3935
    %v3937 = vand.u32 %v3936, 4294901760
    %v3938 = vsub.f32 %v3936, %v3937
    %v3939 = vand.u32 %v3938, 4294901760
    %3940 = vmatmul.f32.gmra.mxu0 %v3939
    %v3941 = vpop.f32.mrf.mxu0
    %v3942 = vadd.f32 %v3669, %v3941
    %v3943 = vand.u32 %v65, 4294901760
    %v3944 = vsub.f32 %v65, %v3943
    %v3945 = vand.u32 %v3944, 4294901760
    %v3946 = vsub.f32 %v3944, %v3945
    %v3947 = vand.u32 %v3946, 4294901760
    %3948 = vmatmul.f32.gmra.mxu0 %v3947
    %v3949 = vpop.f32.mrf.mxu0
    %v3950 = vadd.f32 %v3673, %v3949
    %v3951 = vand.u32 %v68, 4294901760
    %v3952 = vsub.f32 %v68, %v3951
    %v3953 = vand.u32 %v3952, 4294901760
    %v3954 = vsub.f32 %v3952, %v3953
    %v3955 = vand.u32 %v3954, 4294901760
    %3956 = vmatmul.f32.gmra.mxu0 %v3955
    %v3957 = vpop.f32.mrf.mxu0
    %v3958 = vadd.f32 %v3677, %v3957
    %v3959 = vand.u32 %v71, 4294901760
    %v3960 = vsub.f32 %v71, %v3959
    %v3961 = vand.u32 %v3960, 4294901760
    %v3962 = vsub.f32 %v3960, %v3961
    %v3963 = vand.u32 %v3962, 4294901760
    %3964 = vmatmul.f32.gmra.mxu0 %v3963
    %v3965 = vpop.f32.mrf.mxu0
    %v3966 = vadd.f32 %v3681, %v3965
    %v3967 = vand.u32 %v74, 4294901760
    %v3968 = vsub.f32 %v74, %v3967
    %v3969 = vand.u32 %v3968, 4294901760
    %v3970 = vsub.f32 %v3968, %v3969
    %v3971 = vand.u32 %v3970, 4294901760
    %3972 = vmatmul.f32.gmra.mxu0 %v3971
    %v3973 = vpop.f32.mrf.mxu0
    %v3974 = vadd.f32 %v3685, %v3973
    %v3975 = vand.u32 %v77, 4294901760
    %v3976 = vsub.f32 %v77, %v3975
    %v3977 = vand.u32 %v3976, 4294901760
    %v3978 = vsub.f32 %v3976, %v3977
    %v3979 = vand.u32 %v3978, 4294901760
    %3980 = vmatmul.f32.gmra.mxu0 %v3979
    %v3981 = vpop.f32.mrf.mxu0
    %v3982 = vadd.f32 %v3689, %v3981
    %v3983 = vand.u32 %v80, 4294901760
    %v3984 = vsub.f32 %v80, %v3983
    %v3985 = vand.u32 %v3984, 4294901760
    %v3986 = vsub.f32 %v3984, %v3985
    %v3987 = vand.u32 %v3986, 4294901760
    %3988 = vmatmul.f32.gmra.mxu0 %v3987
    %v3989 = vpop.f32.mrf.mxu0
    %v3990 = vadd.f32 %v3693, %v3989
    %v3991 = vand.u32 %v83, 4294901760
    %v3992 = vsub.f32 %v83, %v3991
    %v3993 = vand.u32 %v3992, 4294901760
    %v3994 = vsub.f32 %v3992, %v3993
    %v3995 = vand.u32 %v3994, 4294901760
    %3996 = vmatmul.f32.gmra.mxu0 %v3995
    %v3997 = vpop.f32.mrf.mxu0
    %v3998 = vadd.f32 %v3697, %v3997
    %v3999 = vand.u32 %v86, 4294901760
    %v4000 = vsub.f32 %v86, %v3999
    %v4001 = vand.u32 %v4000, 4294901760
    %v4002 = vsub.f32 %v4000, %v4001
    %v4003 = vand.u32 %v4002, 4294901760
    %4004 = vmatmul.f32.gmra.mxu0 %v4003
    %v4005 = vpop.f32.mrf.mxu0
    %v4006 = vadd.f32 %v3701, %v4005
    %v4007 = vand.u32 %v89, 4294901760
    %v4008 = vsub.f32 %v89, %v4007
    %v4009 = vand.u32 %v4008, 4294901760
    %v4010 = vsub.f32 %v4008, %v4009
    %v4011 = vand.u32 %v4010, 4294901760
    %4012 = vmatmul.f32.gmra.mxu0 %v4011
    %v4013 = vpop.f32.mrf.mxu0
    %v4014 = vadd.f32 %v3705, %v4013
    %v4015 = vand.u32 %v92, 4294901760
    %v4016 = vsub.f32 %v92, %v4015
    %v4017 = vand.u32 %v4016, 4294901760
    %v4018 = vsub.f32 %v4016, %v4017
    %v4019 = vand.u32 %v4018, 4294901760
    %4020 = vmatmul.f32.gmra.mxu0 %v4019
    %v4021 = vpop.f32.mrf.mxu0
    %v4022 = vadd.f32 %v3709, %v4021
    %v4023 = vand.u32 %v95, 4294901760
    %v4024 = vsub.f32 %v95, %v4023
    %v4025 = vand.u32 %v4024, 4294901760
    %v4026 = vsub.f32 %v4024, %v4025
    %v4027 = vand.u32 %v4026, 4294901760
    %4028 = vmatmul.f32.gmra.mxu0 %v4027
    %v4029 = vpop.f32.mrf.mxu0
    %v4030 = vadd.f32 %v3713, %v4029
    %v4031 = vand.u32 %v98, 4294901760
    %v4032 = vsub.f32 %v98, %v4031
    %v4033 = vand.u32 %v4032, 4294901760
    %v4034 = vsub.f32 %v4032, %v4033
    %v4035 = vand.u32 %v4034, 4294901760
    %4036 = vmatmul.f32.gmra.mxu0 %v4035
    %v4037 = vpop.f32.mrf.mxu0
    %v4038 = vadd.f32 %v3717, %v4037
    %v4039 = vand.u32 %v101, 4294901760
    %v4040 = vsub.f32 %v101, %v4039
    %v4041 = vand.u32 %v4040, 4294901760
    %v4042 = vsub.f32 %v4040, %v4041
    %v4043 = vand.u32 %v4042, 4294901760
    %4044 = vmatmul.f32.gmra.mxu0 %v4043
    %v4045 = vpop.f32.mrf.mxu0
    %v4046 = vadd.f32 %v3721, %v4045
    %v4047 = vand.u32 %v104, 4294901760
    %v4048 = vsub.f32 %v104, %v4047
    %v4049 = vand.u32 %v4048, 4294901760
    %v4050 = vsub.f32 %v4048, %v4049
    %v4051 = vand.u32 %v4050, 4294901760
    %4052 = vmatmul.f32.gmra.mxu0 %v4051
    %v4053 = vpop.f32.mrf.mxu0
    %v4054 = vadd.f32 %v3725, %v4053
    %v4055 = vand.u32 %v107, 4294901760
    %v4056 = vsub.f32 %v107, %v4055
    %v4057 = vand.u32 %v4056, 4294901760
    %v4058 = vsub.f32 %v4056, %v4057
    %v4059 = vand.u32 %v4058, 4294901760
    %4060 = vmatmul.f32.gmra.mxu0 %v4059
    %v4061 = vpop.f32.mrf.mxu0
    %v4062 = vadd.f32 %v3729, %v4061
    %v4063 = vand.u32 %v110, 4294901760
    %v4064 = vsub.f32 %v110, %v4063
    %v4065 = vand.u32 %v4064, 4294901760
    %v4066 = vsub.f32 %v4064, %v4065
    %v4067 = vand.u32 %v4066, 4294901760
    %4068 = vmatmul.f32.gmra.mxu0 %v4067
    %v4069 = vpop.f32.mrf.mxu0
    %v4070 = vadd.f32 %v3733, %v4069
    %v4071 = vand.u32 %v113, 4294901760
    %v4072 = vsub.f32 %v113, %v4071
    %v4073 = vand.u32 %v4072, 4294901760
    %v4074 = vsub.f32 %v4072, %v4073
    %v4075 = vand.u32 %v4074, 4294901760
    %4076 = vmatmul.f32.gmra.mxu0 %v4075
    %v4077 = vpop.f32.mrf.mxu0
    %v4078 = vadd.f32 %v3737, %v4077
    %v4079 = vand.u32 %v116, 4294901760
    %v4080 = vsub.f32 %v116, %v4079
    %v4081 = vand.u32 %v4080, 4294901760
    %v4082 = vsub.f32 %v4080, %v4081
    %v4083 = vand.u32 %v4082, 4294901760
    %4084 = vmatmul.f32.gmra.mxu0 %v4083
    %v4085 = vpop.f32.mrf.mxu0
    %v4086 = vadd.f32 %v3741, %v4085
    %v4087 = vand.u32 %v119, 4294901760
    %v4088 = vsub.f32 %v119, %v4087
    %v4089 = vand.u32 %v4088, 4294901760
    %v4090 = vsub.f32 %v4088, %v4089
    %v4091 = vand.u32 %v4090, 4294901760
    %4092 = vmatmul.f32.gmra.mxu0 %v4091
    %v4093 = vpop.f32.mrf.mxu0
    %v4094 = vadd.f32 %v3745, %v4093
    %v4095 = vand.u32 %v122, 4294901760
    %v4096 = vsub.f32 %v122, %v4095
    %v4097 = vand.u32 %v4096, 4294901760
    %v4098 = vsub.f32 %v4096, %v4097
    %v4099 = vand.u32 %v4098, 4294901760
    %4100 = vmatmul.f32.gmra.mxu0 %v4099
    %v4101 = vpop.f32.mrf.mxu0
    %v4102 = vadd.f32 %v3749, %v4101
    %v4103 = vand.u32 %v125, 4294901760
    %v4104 = vsub.f32 %v125, %v4103
    %v4105 = vand.u32 %v4104, 4294901760
    %v4106 = vsub.f32 %v4104, %v4105
    %v4107 = vand.u32 %v4106, 4294901760
    %4108 = vmatmul.f32.gmra.mxu0 %v4107
    %v4109 = vpop.f32.mrf.mxu0
    %v4110 = vadd.f32 %v3753, %v4109
    %v4111 = vand.u32 %v128, 4294901760
    %v4112 = vsub.f32 %v128, %v4111
    %v4113 = vand.u32 %v4112, 4294901760
    %v4114 = vsub.f32 %v4112, %v4113
    %v4115 = vand.u32 %v4114, 4294901760
    %4116 = vmatmul.f32.gmra.mxu0 %v4115
    %v4117 = vpop.f32.mrf.mxu0
    %v4118 = vadd.f32 %v3757, %v4117
    %v4119 = vand.u32 %v131, 4294901760
    %v4120 = vsub.f32 %v131, %v4119
    %v4121 = vand.u32 %v4120, 4294901760
    %v4122 = vsub.f32 %v4120, %v4121
    %v4123 = vand.u32 %v4122, 4294901760
    %4124 = vmatmul.f32.gmra.mxu0 %v4123
    %v4125 = vpop.f32.mrf.mxu0
    %v4126 = vadd.f32 %v3761, %v4125
    %v4127 = vand.u32 %v134, 4294901760
    %v4128 = vsub.f32 %v134, %v4127
    %v4129 = vand.u32 %v4128, 4294901760
    %v4130 = vsub.f32 %v4128, %v4129
    %v4131 = vand.u32 %v4130, 4294901760
    %4132 = vmatmul.f32.gmra.mxu0 %v4131
    %v4133 = vpop.f32.mrf.mxu0
    %v4134 = vadd.f32 %v3765, %v4133
    %v4135 = vand.u32 %v137, 4294901760
    %v4136 = vsub.f32 %v137, %v4135
    %v4137 = vand.u32 %v4136, 4294901760
    %v4138 = vsub.f32 %v4136, %v4137
    %v4139 = vand.u32 %v4138, 4294901760
    %4140 = vmatmul.f32.gmra.mxu0 %v4139
    %v4141 = vpop.f32.mrf.mxu0
    %v4142 = vadd.f32 %v3769, %v4141
    %v4143 = vand.u32 %v140, 4294901760
    %v4144 = vsub.f32 %v140, %v4143
    %v4145 = vand.u32 %v4144, 4294901760
    %v4146 = vsub.f32 %v4144, %v4145
    %v4147 = vand.u32 %v4146, 4294901760
    %4148 = vmatmul.f32.gmra.mxu0 %v4147
    %v4149 = vpop.f32.mrf.mxu0
    %v4150 = vadd.f32 %v3773, %v4149
    %v4151 = vand.u32 %v143, 4294901760
    %v4152 = vsub.f32 %v143, %v4151
    %v4153 = vand.u32 %v4152, 4294901760
    %v4154 = vsub.f32 %v4152, %v4153
    %v4155 = vand.u32 %v4154, 4294901760
    %4156 = vmatmul.f32.gmra.mxu0 %v4155
    %v4157 = vpop.f32.mrf.mxu0
    %v4158 = vadd.f32 %v3777, %v4157
    %v4159 = vand.u32 %v146, 4294901760
    %v4160 = vsub.f32 %v146, %v4159
    %v4161 = vand.u32 %v4160, 4294901760
    %v4162 = vsub.f32 %v4160, %v4161
    %v4163 = vand.u32 %v4162, 4294901760
    %4164 = vmatmul.f32.gmra.mxu0 %v4163
    %v4165 = vpop.f32.mrf.mxu0
    %v4166 = vadd.f32 %v3781, %v4165
    %v4167 = vand.u32 %v149, 4294901760
    %v4168 = vsub.f32 %v149, %v4167
    %v4169 = vand.u32 %v4168, 4294901760
    %v4170 = vsub.f32 %v4168, %v4169
    %v4171 = vand.u32 %v4170, 4294901760
    %4172 = vmatmul.f32.gmra.mxu0 %v4171
    %v4173 = vpop.f32.mrf.mxu0
    %v4174 = vadd.f32 %v3785, %v4173
    %v4175 = vand.u32 %v152, 4294901760
    %v4176 = vsub.f32 %v152, %v4175
    %v4177 = vand.u32 %v4176, 4294901760
    %v4178 = vsub.f32 %v4176, %v4177
    %v4179 = vand.u32 %v4178, 4294901760
    %4180 = vmatmul.f32.gmra.mxu0 %v4179
    %v4181 = vpop.f32.mrf.mxu0
    %v4182 = vadd.f32 %v3789, %v4181
    %v4183 = vand.u32 %v155, 4294901760
    %v4184 = vsub.f32 %v155, %v4183
    %v4185 = vand.u32 %v4184, 4294901760
    %v4186 = vsub.f32 %v4184, %v4185
    %v4187 = vand.u32 %v4186, 4294901760
    %4188 = vmatmul.f32.gmra.mxu0 %v4187
    %v4189 = vpop.f32.mrf.mxu0
    %v4190 = vadd.f32 %v3793, %v4189
    %v4191 = vand.u32 %v158, 4294901760
    %v4192 = vsub.f32 %v158, %v4191
    %v4193 = vand.u32 %v4192, 4294901760
    %v4194 = vsub.f32 %v4192, %v4193
    %v4195 = vand.u32 %v4194, 4294901760
    %4196 = vmatmul.f32.gmra.mxu0 %v4195
    %v4197 = vpop.f32.mrf.mxu0
    %v4198 = vadd.f32 %v3797, %v4197
    %v4199 = vand.u32 %v161, 4294901760
    %v4200 = vsub.f32 %v161, %v4199
    %v4201 = vand.u32 %v4200, 4294901760
    %v4202 = vsub.f32 %v4200, %v4201
    %v4203 = vand.u32 %v4202, 4294901760
    %4204 = vmatmul.f32.gmra.mxu0 %v4203
    %v4205 = vpop.f32.mrf.mxu0
    %v4206 = vadd.f32 %v3801, %v4205
    %v4207 = vand.u32 %v164, 4294901760
    %v4208 = vsub.f32 %v164, %v4207
    %v4209 = vand.u32 %v4208, 4294901760
    %v4210 = vsub.f32 %v4208, %v4209
    %v4211 = vand.u32 %v4210, 4294901760
    %4212 = vmatmul.f32.gmra.mxu0 %v4211
    %v4213 = vpop.f32.mrf.mxu0
    %v4214 = vadd.f32 %v3805, %v4213
    %v4215 = vand.u32 %v167, 4294901760
    %v4216 = vsub.f32 %v167, %v4215
    %v4217 = vand.u32 %v4216, 4294901760
    %v4218 = vsub.f32 %v4216, %v4217
    %v4219 = vand.u32 %v4218, 4294901760
    %4220 = vmatmul.f32.gmra.mxu0 %v4219
    %v4221 = vpop.f32.mrf.mxu0
    %v4222 = vadd.f32 %v3809, %v4221
    %v4223 = vand.u32 %v170, 4294901760
    %v4224 = vsub.f32 %v170, %v4223
    %v4225 = vand.u32 %v4224, 4294901760
    %v4226 = vsub.f32 %v4224, %v4225
    %v4227 = vand.u32 %v4226, 4294901760
    %4228 = vmatmul.f32.gmra.mxu0 %v4227
    %v4229 = vpop.f32.mrf.mxu0
    %v4230 = vadd.f32 %v3813, %v4229
    %4231 = vdwg.mxu0
    %v4232 = vand.u32 %v218, 4294901760
    %v4233 = vsub.f32 %v218, %v4232
    %v4234 = vand.u32 %v4233, 4294901760
    %v4235 = vsub.f32 %v4233, %v4234
    %v4236 = vand.u32 %v4235, 4294901760
    %4237 = vmatpush.msra.mxu0 %v4236
    %v4238 = vand.u32 %v217, 4294901760
    %v4239 = vsub.f32 %v217, %v4238
    %v4240 = vand.u32 %v4239, 4294901760
    %v4241 = vsub.f32 %v4239, %v4240
    %v4242 = vand.u32 %v4241, 4294901760
    %4243 = vmatpush.msra.mxu0 %v4242
    %v4244 = vand.u32 %v216, 4294901760
    %v4245 = vsub.f32 %v216, %v4244
    %v4246 = vand.u32 %v4245, 4294901760
    %v4247 = vsub.f32 %v4245, %v4246
    %v4248 = vand.u32 %v4247, 4294901760
    %4249 = vmatpush.msra.mxu0 %v4248
    %v4250 = vand.u32 %v215, 4294901760
    %v4251 = vsub.f32 %v215, %v4250
    %v4252 = vand.u32 %v4251, 4294901760
    %v4253 = vsub.f32 %v4251, %v4252
    %v4254 = vand.u32 %v4253, 4294901760
    %4255 = vmatpush.msra.mxu0 %v4254
    %v4256 = vand.u32 %v214, 4294901760
    %v4257 = vsub.f32 %v214, %v4256
    %v4258 = vand.u32 %v4257, 4294901760
    %v4259 = vsub.f32 %v4257, %v4258
    %v4260 = vand.u32 %v4259, 4294901760
    %4261 = vmatpush.msra.mxu0 %v4260
    %v4262 = vand.u32 %v213, 4294901760
    %v4263 = vsub.f32 %v213, %v4262
    %v4264 = vand.u32 %v4263, 4294901760
    %v4265 = vsub.f32 %v4263, %v4264
    %v4266 = vand.u32 %v4265, 4294901760
    %4267 = vmatpush.msra.mxu0 %v4266
    %v4268 = vand.u32 %v212, 4294901760
    %v4269 = vsub.f32 %v212, %v4268
    %v4270 = vand.u32 %v4269, 4294901760
    %v4271 = vsub.f32 %v4269, %v4270
    %v4272 = vand.u32 %v4271, 4294901760
    %4273 = vmatpush.msra.mxu0 %v4272
    %v4274 = vand.u32 %v211, 4294901760
    %v4275 = vsub.f32 %v211, %v4274
    %v4276 = vand.u32 %v4275, 4294901760
    %v4277 = vsub.f32 %v4275, %v4276
    %v4278 = vand.u32 %v4277, 4294901760
    %4279 = vmatpush.msra.mxu0 %v4278
    %v4280 = vand.u32 %v210, 4294901760
    %v4281 = vsub.f32 %v210, %v4280
    %v4282 = vand.u32 %v4281, 4294901760
    %v4283 = vsub.f32 %v4281, %v4282
    %v4284 = vand.u32 %v4283, 4294901760
    %4285 = vmatpush.msra.mxu0 %v4284
    %v4286 = vand.u32 %v209, 4294901760
    %v4287 = vsub.f32 %v209, %v4286
    %v4288 = vand.u32 %v4287, 4294901760
    %v4289 = vsub.f32 %v4287, %v4288
    %v4290 = vand.u32 %v4289, 4294901760
    %4291 = vmatpush.msra.mxu0 %v4290
    %v4292 = vand.u32 %v208, 4294901760
    %v4293 = vsub.f32 %v208, %v4292
    %v4294 = vand.u32 %v4293, 4294901760
    %v4295 = vsub.f32 %v4293, %v4294
    %v4296 = vand.u32 %v4295, 4294901760
    %4297 = vmatpush.msra.mxu0 %v4296
    %v4298 = vand.u32 %v207, 4294901760
    %v4299 = vsub.f32 %v207, %v4298
    %v4300 = vand.u32 %v4299, 4294901760
    %v4301 = vsub.f32 %v4299, %v4300
    %v4302 = vand.u32 %v4301, 4294901760
    %4303 = vmatpush.msra.mxu0 %v4302
    %v4304 = vand.u32 %v206, 4294901760
    %v4305 = vsub.f32 %v206, %v4304
    %v4306 = vand.u32 %v4305, 4294901760
    %v4307 = vsub.f32 %v4305, %v4306
    %v4308 = vand.u32 %v4307, 4294901760
    %4309 = vmatpush.msra.mxu0 %v4308
    %v4310 = vand.u32 %v205, 4294901760
    %v4311 = vsub.f32 %v205, %v4310
    %v4312 = vand.u32 %v4311, 4294901760
    %v4313 = vsub.f32 %v4311, %v4312
    %v4314 = vand.u32 %v4313, 4294901760
    %4315 = vmatpush.msra.mxu0 %v4314
    %v4316 = vand.u32 %v204, 4294901760
    %v4317 = vsub.f32 %v204, %v4316
    %v4318 = vand.u32 %v4317, 4294901760
    %v4319 = vsub.f32 %v4317, %v4318
    %v4320 = vand.u32 %v4319, 4294901760
    %4321 = vmatpush.msra.mxu0 %v4320
    %v4322 = vand.u32 %v203, 4294901760
    %v4323 = vsub.f32 %v203, %v4322
    %v4324 = vand.u32 %v4323, 4294901760
    %v4325 = vsub.f32 %v4323, %v4324
    %v4326 = vand.u32 %v4325, 4294901760
    %4327 = vmatpush.msra.mxu0 %v4326
    %v4328 = vand.u32 %v29, 4294901760
    %4329 = vmatmul.f32.gmra.mxu0 %v4328
    %v4330 = vpop.f32.mrf.mxu0
    %v4331 = vadd.f32 %v3854, %v4330
    %v4332 = vand.u32 %v32, 4294901760
    %4333 = vmatmul.f32.gmra.mxu0 %v4332
    %v4334 = vpop.f32.mrf.mxu0
    %v4335 = vadd.f32 %v3862, %v4334
    %v4336 = vand.u32 %v35, 4294901760
    %4337 = vmatmul.f32.gmra.mxu0 %v4336
    %v4338 = vpop.f32.mrf.mxu0
    %v4339 = vadd.f32 %v3870, %v4338
    %v4340 = vand.u32 %v38, 4294901760
    %4341 = vmatmul.f32.gmra.mxu0 %v4340
    %v4342 = vpop.f32.mrf.mxu0
    %v4343 = vadd.f32 %v3878, %v4342
    %v4344 = vand.u32 %v41, 4294901760
    %4345 = vmatmul.f32.gmra.mxu0 %v4344
    %v4346 = vpop.f32.mrf.mxu0
    %v4347 = vadd.f32 %v3886, %v4346
    %v4348 = vand.u32 %v44, 4294901760
    %4349 = vmatmul.f32.gmra.mxu0 %v4348
    %v4350 = vpop.f32.mrf.mxu0
    %v4351 = vadd.f32 %v3894, %v4350
    %v4352 = vand.u32 %v47, 4294901760
    %4353 = vmatmul.f32.gmra.mxu0 %v4352
    %v4354 = vpop.f32.mrf.mxu0
    %v4355 = vadd.f32 %v3902, %v4354
    %v4356 = vand.u32 %v50, 4294901760
    %4357 = vmatmul.f32.gmra.mxu0 %v4356
    %v4358 = vpop.f32.mrf.mxu0
    %v4359 = vadd.f32 %v3910, %v4358
    %v4360 = vand.u32 %v53, 4294901760
    %4361 = vmatmul.f32.gmra.mxu0 %v4360
    %v4362 = vpop.f32.mrf.mxu0
    %v4363 = vadd.f32 %v3918, %v4362
    %v4364 = vand.u32 %v56, 4294901760
    %4365 = vmatmul.f32.gmra.mxu0 %v4364
    %v4366 = vpop.f32.mrf.mxu0
    %v4367 = vadd.f32 %v3926, %v4366
    %v4368 = vand.u32 %v59, 4294901760
    %4369 = vmatmul.f32.gmra.mxu0 %v4368
    %v4370 = vpop.f32.mrf.mxu0
    %v4371 = vadd.f32 %v3934, %v4370
    %v4372 = vand.u32 %v62, 4294901760
    %4373 = vmatmul.f32.gmra.mxu0 %v4372
    %v4374 = vpop.f32.mrf.mxu0
    %v4375 = vadd.f32 %v3942, %v4374
    %v4376 = vand.u32 %v65, 4294901760
    %4377 = vmatmul.f32.gmra.mxu0 %v4376
    %v4378 = vpop.f32.mrf.mxu0
    %v4379 = vadd.f32 %v3950, %v4378
    %v4380 = vand.u32 %v68, 4294901760
    %4381 = vmatmul.f32.gmra.mxu0 %v4380
    %v4382 = vpop.f32.mrf.mxu0
    %v4383 = vadd.f32 %v3958, %v4382
    %v4384 = vand.u32 %v71, 4294901760
    %4385 = vmatmul.f32.gmra.mxu0 %v4384
    %v4386 = vpop.f32.mrf.mxu0
    %v4387 = vadd.f32 %v3966, %v4386
    %v4388 = vand.u32 %v74, 4294901760
    %4389 = vmatmul.f32.gmra.mxu0 %v4388
    %v4390 = vpop.f32.mrf.mxu0
    %v4391 = vadd.f32 %v3974, %v4390
    %v4392 = vand.u32 %v77, 4294901760
    %4393 = vmatmul.f32.gmra.mxu0 %v4392
    %v4394 = vpop.f32.mrf.mxu0
    %v4395 = vadd.f32 %v3982, %v4394
    %v4396 = vand.u32 %v80, 4294901760
    %4397 = vmatmul.f32.gmra.mxu0 %v4396
    %v4398 = vpop.f32.mrf.mxu0
    %v4399 = vadd.f32 %v3990, %v4398
    %v4400 = vand.u32 %v83, 4294901760
    %4401 = vmatmul.f32.gmra.mxu0 %v4400
    %v4402 = vpop.f32.mrf.mxu0
    %v4403 = vadd.f32 %v3998, %v4402
    %v4404 = vand.u32 %v86, 4294901760
    %4405 = vmatmul.f32.gmra.mxu0 %v4404
    %v4406 = vpop.f32.mrf.mxu0
    %v4407 = vadd.f32 %v4006, %v4406
    %v4408 = vand.u32 %v89, 4294901760
    %4409 = vmatmul.f32.gmra.mxu0 %v4408
    %v4410 = vpop.f32.mrf.mxu0
    %v4411 = vadd.f32 %v4014, %v4410
    %v4412 = vand.u32 %v92, 4294901760
    %4413 = vmatmul.f32.gmra.mxu0 %v4412
    %v4414 = vpop.f32.mrf.mxu0
    %v4415 = vadd.f32 %v4022, %v4414
    %v4416 = vand.u32 %v95, 4294901760
    %4417 = vmatmul.f32.gmra.mxu0 %v4416
    %v4418 = vpop.f32.mrf.mxu0
    %v4419 = vadd.f32 %v4030, %v4418
    %v4420 = vand.u32 %v98, 4294901760
    %4421 = vmatmul.f32.gmra.mxu0 %v4420
    %v4422 = vpop.f32.mrf.mxu0
    %v4423 = vadd.f32 %v4038, %v4422
    %v4424 = vand.u32 %v101, 4294901760
    %4425 = vmatmul.f32.gmra.mxu0 %v4424
    %v4426 = vpop.f32.mrf.mxu0
    %v4427 = vadd.f32 %v4046, %v4426
    %v4428 = vand.u32 %v104, 4294901760
    %4429 = vmatmul.f32.gmra.mxu0 %v4428
    %v4430 = vpop.f32.mrf.mxu0
    %v4431 = vadd.f32 %v4054, %v4430
    %v4432 = vand.u32 %v107, 4294901760
    %4433 = vmatmul.f32.gmra.mxu0 %v4432
    %v4434 = vpop.f32.mrf.mxu0
    %v4435 = vadd.f32 %v4062, %v4434
    %v4436 = vand.u32 %v110, 4294901760
    %4437 = vmatmul.f32.gmra.mxu0 %v4436
    %v4438 = vpop.f32.mrf.mxu0
    %v4439 = vadd.f32 %v4070, %v4438
    %v4440 = vand.u32 %v113, 4294901760
    %4441 = vmatmul.f32.gmra.mxu0 %v4440
    %v4442 = vpop.f32.mrf.mxu0
    %v4443 = vadd.f32 %v4078, %v4442
    %v4444 = vand.u32 %v116, 4294901760
    %4445 = vmatmul.f32.gmra.mxu0 %v4444
    %v4446 = vpop.f32.mrf.mxu0
    %v4447 = vadd.f32 %v4086, %v4446
    %v4448 = vand.u32 %v119, 4294901760
    %4449 = vmatmul.f32.gmra.mxu0 %v4448
    %v4450 = vpop.f32.mrf.mxu0
    %v4451 = vadd.f32 %v4094, %v4450
    %v4452 = vand.u32 %v122, 4294901760
    %4453 = vmatmul.f32.gmra.mxu0 %v4452
    %v4454 = vpop.f32.mrf.mxu0
    %v4455 = vadd.f32 %v4102, %v4454
    %v4456 = vand.u32 %v125, 4294901760
    %4457 = vmatmul.f32.gmra.mxu0 %v4456
    %v4458 = vpop.f32.mrf.mxu0
    %v4459 = vadd.f32 %v4110, %v4458
    %v4460 = vand.u32 %v128, 4294901760
    %4461 = vmatmul.f32.gmra.mxu0 %v4460
    %v4462 = vpop.f32.mrf.mxu0
    %v4463 = vadd.f32 %v4118, %v4462
    %v4464 = vand.u32 %v131, 4294901760
    %4465 = vmatmul.f32.gmra.mxu0 %v4464
    %v4466 = vpop.f32.mrf.mxu0
    %v4467 = vadd.f32 %v4126, %v4466
    %v4468 = vand.u32 %v134, 4294901760
    %4469 = vmatmul.f32.gmra.mxu0 %v4468
    %v4470 = vpop.f32.mrf.mxu0
    %v4471 = vadd.f32 %v4134, %v4470
    %v4472 = vand.u32 %v137, 4294901760
    %4473 = vmatmul.f32.gmra.mxu0 %v4472
    %v4474 = vpop.f32.mrf.mxu0
    %v4475 = vadd.f32 %v4142, %v4474
    %v4476 = vand.u32 %v140, 4294901760
    %4477 = vmatmul.f32.gmra.mxu0 %v4476
    %v4478 = vpop.f32.mrf.mxu0
    %v4479 = vadd.f32 %v4150, %v4478
    %v4480 = vand.u32 %v143, 4294901760
    %4481 = vmatmul.f32.gmra.mxu0 %v4480
    %v4482 = vpop.f32.mrf.mxu0
    %v4483 = vadd.f32 %v4158, %v4482
    %v4484 = vand.u32 %v146, 4294901760
    %4485 = vmatmul.f32.gmra.mxu0 %v4484
    %v4486 = vpop.f32.mrf.mxu0
    %v4487 = vadd.f32 %v4166, %v4486
    %v4488 = vand.u32 %v149, 4294901760
    %4489 = vmatmul.f32.gmra.mxu0 %v4488
    %v4490 = vpop.f32.mrf.mxu0
    %v4491 = vadd.f32 %v4174, %v4490
    %v4492 = vand.u32 %v152, 4294901760
    %4493 = vmatmul.f32.gmra.mxu0 %v4492
    %v4494 = vpop.f32.mrf.mxu0
    %v4495 = vadd.f32 %v4182, %v4494
    %v4496 = vand.u32 %v155, 4294901760
    %4497 = vmatmul.f32.gmra.mxu0 %v4496
    %v4498 = vpop.f32.mrf.mxu0
    %v4499 = vadd.f32 %v4190, %v4498
    %v4500 = vand.u32 %v158, 4294901760
    %4501 = vmatmul.f32.gmra.mxu0 %v4500
    %v4502 = vpop.f32.mrf.mxu0
    %v4503 = vadd.f32 %v4198, %v4502
    %v4504 = vand.u32 %v161, 4294901760
    %4505 = vmatmul.f32.gmra.mxu0 %v4504
    %v4506 = vpop.f32.mrf.mxu0
    %v4507 = vadd.f32 %v4206, %v4506
    %v4508 = vand.u32 %v164, 4294901760
    %4509 = vmatmul.f32.gmra.mxu0 %v4508
    %v4510 = vpop.f32.mrf.mxu0
    %v4511 = vadd.f32 %v4214, %v4510
    %v4512 = vand.u32 %v167, 4294901760
    %4513 = vmatmul.f32.gmra.mxu0 %v4512
    %v4514 = vpop.f32.mrf.mxu0
    %v4515 = vadd.f32 %v4222, %v4514
    %v4516 = vand.u32 %v170, 4294901760
    %4517 = vmatmul.f32.gmra.mxu0 %v4516
    %v4518 = vpop.f32.mrf.mxu0
    %v4519 = vadd.f32 %v4230, %v4518
    %4520 = vdwg.mxu0
    %v4521 = vand.u32 %v218, 4294901760
    %v4522 = vsub.f32 %v218, %v4521
    %4523 = vmatpush.msra.mxu0 %v4522
    %v4524 = vand.u32 %v217, 4294901760
    %v4525 = vsub.f32 %v217, %v4524
    %4526 = vmatpush.msra.mxu0 %v4525
    %v4527 = vand.u32 %v216, 4294901760
    %v4528 = vsub.f32 %v216, %v4527
    %4529 = vmatpush.msra.mxu0 %v4528
    %v4530 = vand.u32 %v215, 4294901760
    %v4531 = vsub.f32 %v215, %v4530
    %4532 = vmatpush.msra.mxu0 %v4531
    %v4533 = vand.u32 %v214, 4294901760
    %v4534 = vsub.f32 %v214, %v4533
    %4535 = vmatpush.msra.mxu0 %v4534
    %v4536 = vand.u32 %v213, 4294901760
    %v4537 = vsub.f32 %v213, %v4536
    %4538 = vmatpush.msra.mxu0 %v4537
    %v4539 = vand.u32 %v212, 4294901760
    %v4540 = vsub.f32 %v212, %v4539
    %4541 = vmatpush.msra.mxu0 %v4540
    %v4542 = vand.u32 %v211, 4294901760
    %v4543 = vsub.f32 %v211, %v4542
    %4544 = vmatpush.msra.mxu0 %v4543
    %v4545 = vand.u32 %v210, 4294901760
    %v4546 = vsub.f32 %v210, %v4545
    %4547 = vmatpush.msra.mxu0 %v4546
    %v4548 = vand.u32 %v209, 4294901760
    %v4549 = vsub.f32 %v209, %v4548
    %4550 = vmatpush.msra.mxu0 %v4549
    %v4551 = vand.u32 %v208, 4294901760
    %v4552 = vsub.f32 %v208, %v4551
    %4553 = vmatpush.msra.mxu0 %v4552
    %v4554 = vand.u32 %v207, 4294901760
    %v4555 = vsub.f32 %v207, %v4554
    %4556 = vmatpush.msra.mxu0 %v4555
    %v4557 = vand.u32 %v206, 4294901760
    %v4558 = vsub.f32 %v206, %v4557
    %4559 = vmatpush.msra.mxu0 %v4558
    %v4560 = vand.u32 %v205, 4294901760
    %v4561 = vsub.f32 %v205, %v4560
    %4562 = vmatpush.msra.mxu0 %v4561
    %v4563 = vand.u32 %v204, 4294901760
    %v4564 = vsub.f32 %v204, %v4563
    %4565 = vmatpush.msra.mxu0 %v4564
    %v4566 = vand.u32 %v203, 4294901760
    %v4567 = vsub.f32 %v203, %v4566
    %4568 = vmatpush.msra.mxu0 %v4567
    %v4569 = vand.u32 %v29, 4294901760
    %v4570 = vsub.f32 %v29, %v4569
    %4571 = vmatmul.f32.gmra.mxu0 %v4570
    %v4572 = vpop.f32.mrf.mxu0
    %v4573 = vadd.f32 %v4331, %v4572
    %v4574 = vand.u32 %v32, 4294901760
    %v4575 = vsub.f32 %v32, %v4574
    %4576 = vmatmul.f32.gmra.mxu0 %v4575
    %v4577 = vpop.f32.mrf.mxu0
    %v4578 = vadd.f32 %v4335, %v4577
    %v4579 = vand.u32 %v35, 4294901760
    %v4580 = vsub.f32 %v35, %v4579
    %4581 = vmatmul.f32.gmra.mxu0 %v4580
    %v4582 = vpop.f32.mrf.mxu0
    %v4583 = vadd.f32 %v4339, %v4582
    %v4584 = vand.u32 %v38, 4294901760
    %v4585 = vsub.f32 %v38, %v4584
    %4586 = vmatmul.f32.gmra.mxu0 %v4585
    %v4587 = vpop.f32.mrf.mxu0
    %v4588 = vadd.f32 %v4343, %v4587
    %v4589 = vand.u32 %v41, 4294901760
    %v4590 = vsub.f32 %v41, %v4589
    %4591 = vmatmul.f32.gmra.mxu0 %v4590
    %v4592 = vpop.f32.mrf.mxu0
    %v4593 = vadd.f32 %v4347, %v4592
    %v4594 = vand.u32 %v44, 4294901760
    %v4595 = vsub.f32 %v44, %v4594
    %4596 = vmatmul.f32.gmra.mxu0 %v4595
    %v4597 = vpop.f32.mrf.mxu0
    %v4598 = vadd.f32 %v4351, %v4597
    %v4599 = vand.u32 %v47, 4294901760
    %v4600 = vsub.f32 %v47, %v4599
    %4601 = vmatmul.f32.gmra.mxu0 %v4600
    %v4602 = vpop.f32.mrf.mxu0
    %v4603 = vadd.f32 %v4355, %v4602
    %v4604 = vand.u32 %v50, 4294901760
    %v4605 = vsub.f32 %v50, %v4604
    %4606 = vmatmul.f32.gmra.mxu0 %v4605
    %v4607 = vpop.f32.mrf.mxu0
    %v4608 = vadd.f32 %v4359, %v4607
    %v4609 = vand.u32 %v53, 4294901760
    %v4610 = vsub.f32 %v53, %v4609
    %4611 = vmatmul.f32.gmra.mxu0 %v4610
    %v4612 = vpop.f32.mrf.mxu0
    %v4613 = vadd.f32 %v4363, %v4612
    %v4614 = vand.u32 %v56, 4294901760
    %v4615 = vsub.f32 %v56, %v4614
    %4616 = vmatmul.f32.gmra.mxu0 %v4615
    %v4617 = vpop.f32.mrf.mxu0
    %v4618 = vadd.f32 %v4367, %v4617
    %v4619 = vand.u32 %v59, 4294901760
    %v4620 = vsub.f32 %v59, %v4619
    %4621 = vmatmul.f32.gmra.mxu0 %v4620
    %v4622 = vpop.f32.mrf.mxu0
    %v4623 = vadd.f32 %v4371, %v4622
    %v4624 = vand.u32 %v62, 4294901760
    %v4625 = vsub.f32 %v62, %v4624
    %4626 = vmatmul.f32.gmra.mxu0 %v4625
    %v4627 = vpop.f32.mrf.mxu0
    %v4628 = vadd.f32 %v4375, %v4627
    %v4629 = vand.u32 %v65, 4294901760
    %v4630 = vsub.f32 %v65, %v4629
    %4631 = vmatmul.f32.gmra.mxu0 %v4630
    %v4632 = vpop.f32.mrf.mxu0
    %v4633 = vadd.f32 %v4379, %v4632
    %v4634 = vand.u32 %v68, 4294901760
    %v4635 = vsub.f32 %v68, %v4634
    %4636 = vmatmul.f32.gmra.mxu0 %v4635
    %v4637 = vpop.f32.mrf.mxu0
    %v4638 = vadd.f32 %v4383, %v4637
    %v4639 = vand.u32 %v71, 4294901760
    %v4640 = vsub.f32 %v71, %v4639
    %4641 = vmatmul.f32.gmra.mxu0 %v4640
    %v4642 = vpop.f32.mrf.mxu0
    %v4643 = vadd.f32 %v4387, %v4642
    %v4644 = vand.u32 %v74, 4294901760
    %v4645 = vsub.f32 %v74, %v4644
    %4646 = vmatmul.f32.gmra.mxu0 %v4645
    %v4647 = vpop.f32.mrf.mxu0
    %v4648 = vadd.f32 %v4391, %v4647
    %v4649 = vand.u32 %v77, 4294901760
    %v4650 = vsub.f32 %v77, %v4649
    %4651 = vmatmul.f32.gmra.mxu0 %v4650
    %v4652 = vpop.f32.mrf.mxu0
    %v4653 = vadd.f32 %v4395, %v4652
    %v4654 = vand.u32 %v80, 4294901760
    %v4655 = vsub.f32 %v80, %v4654
    %4656 = vmatmul.f32.gmra.mxu0 %v4655
    %v4657 = vpop.f32.mrf.mxu0
    %v4658 = vadd.f32 %v4399, %v4657
    %v4659 = vand.u32 %v83, 4294901760
    %v4660 = vsub.f32 %v83, %v4659
    %4661 = vmatmul.f32.gmra.mxu0 %v4660
    %v4662 = vpop.f32.mrf.mxu0
    %v4663 = vadd.f32 %v4403, %v4662
    %v4664 = vand.u32 %v86, 4294901760
    %v4665 = vsub.f32 %v86, %v4664
    %4666 = vmatmul.f32.gmra.mxu0 %v4665
    %v4667 = vpop.f32.mrf.mxu0
    %v4668 = vadd.f32 %v4407, %v4667
    %v4669 = vand.u32 %v89, 4294901760
    %v4670 = vsub.f32 %v89, %v4669
    %4671 = vmatmul.f32.gmra.mxu0 %v4670
    %v4672 = vpop.f32.mrf.mxu0
    %v4673 = vadd.f32 %v4411, %v4672
    %v4674 = vand.u32 %v92, 4294901760
    %v4675 = vsub.f32 %v92, %v4674
    %4676 = vmatmul.f32.gmra.mxu0 %v4675
    %v4677 = vpop.f32.mrf.mxu0
    %v4678 = vadd.f32 %v4415, %v4677
    %v4679 = vand.u32 %v95, 4294901760
    %v4680 = vsub.f32 %v95, %v4679
    %4681 = vmatmul.f32.gmra.mxu0 %v4680
    %v4682 = vpop.f32.mrf.mxu0
    %v4683 = vadd.f32 %v4419, %v4682
    %v4684 = vand.u32 %v98, 4294901760
    %v4685 = vsub.f32 %v98, %v4684
    %4686 = vmatmul.f32.gmra.mxu0 %v4685
    %v4687 = vpop.f32.mrf.mxu0
    %v4688 = vadd.f32 %v4423, %v4687
    %v4689 = vand.u32 %v101, 4294901760
    %v4690 = vsub.f32 %v101, %v4689
    %4691 = vmatmul.f32.gmra.mxu0 %v4690
    %v4692 = vpop.f32.mrf.mxu0
    %v4693 = vadd.f32 %v4427, %v4692
    %v4694 = vand.u32 %v104, 4294901760
    %v4695 = vsub.f32 %v104, %v4694
    %4696 = vmatmul.f32.gmra.mxu0 %v4695
    %v4697 = vpop.f32.mrf.mxu0
    %v4698 = vadd.f32 %v4431, %v4697
    %v4699 = vand.u32 %v107, 4294901760
    %v4700 = vsub.f32 %v107, %v4699
    %4701 = vmatmul.f32.gmra.mxu0 %v4700
    %v4702 = vpop.f32.mrf.mxu0
    %v4703 = vadd.f32 %v4435, %v4702
    %v4704 = vand.u32 %v110, 4294901760
    %v4705 = vsub.f32 %v110, %v4704
    %4706 = vmatmul.f32.gmra.mxu0 %v4705
    %v4707 = vpop.f32.mrf.mxu0
    %v4708 = vadd.f32 %v4439, %v4707
    %v4709 = vand.u32 %v113, 4294901760
    %v4710 = vsub.f32 %v113, %v4709
    %4711 = vmatmul.f32.gmra.mxu0 %v4710
    %v4712 = vpop.f32.mrf.mxu0
    %v4713 = vadd.f32 %v4443, %v4712
    %v4714 = vand.u32 %v116, 4294901760
    %v4715 = vsub.f32 %v116, %v4714
    %4716 = vmatmul.f32.gmra.mxu0 %v4715
    %v4717 = vpop.f32.mrf.mxu0
    %v4718 = vadd.f32 %v4447, %v4717
    %v4719 = vand.u32 %v119, 4294901760
    %v4720 = vsub.f32 %v119, %v4719
    %4721 = vmatmul.f32.gmra.mxu0 %v4720
    %v4722 = vpop.f32.mrf.mxu0
    %v4723 = vadd.f32 %v4451, %v4722
    %v4724 = vand.u32 %v122, 4294901760
    %v4725 = vsub.f32 %v122, %v4724
    %4726 = vmatmul.f32.gmra.mxu0 %v4725
    %v4727 = vpop.f32.mrf.mxu0
    %v4728 = vadd.f32 %v4455, %v4727
    %v4729 = vand.u32 %v125, 4294901760
    %v4730 = vsub.f32 %v125, %v4729
    %4731 = vmatmul.f32.gmra.mxu0 %v4730
    %v4732 = vpop.f32.mrf.mxu0
    %v4733 = vadd.f32 %v4459, %v4732
    %v4734 = vand.u32 %v128, 4294901760
    %v4735 = vsub.f32 %v128, %v4734
    %4736 = vmatmul.f32.gmra.mxu0 %v4735
    %v4737 = vpop.f32.mrf.mxu0
    %v4738 = vadd.f32 %v4463, %v4737
    %v4739 = vand.u32 %v131, 4294901760
    %v4740 = vsub.f32 %v131, %v4739
    %4741 = vmatmul.f32.gmra.mxu0 %v4740
    %v4742 = vpop.f32.mrf.mxu0
    %v4743 = vadd.f32 %v4467, %v4742
    %v4744 = vand.u32 %v134, 4294901760
    %v4745 = vsub.f32 %v134, %v4744
    %4746 = vmatmul.f32.gmra.mxu0 %v4745
    %v4747 = vpop.f32.mrf.mxu0
    %v4748 = vadd.f32 %v4471, %v4747
    %v4749 = vand.u32 %v137, 4294901760
    %v4750 = vsub.f32 %v137, %v4749
    %4751 = vmatmul.f32.gmra.mxu0 %v4750
    %v4752 = vpop.f32.mrf.mxu0
    %v4753 = vadd.f32 %v4475, %v4752
    %v4754 = vand.u32 %v140, 4294901760
    %v4755 = vsub.f32 %v140, %v4754
    %4756 = vmatmul.f32.gmra.mxu0 %v4755
    %v4757 = vpop.f32.mrf.mxu0
    %v4758 = vadd.f32 %v4479, %v4757
    %v4759 = vand.u32 %v143, 4294901760
    %v4760 = vsub.f32 %v143, %v4759
    %4761 = vmatmul.f32.gmra.mxu0 %v4760
    %v4762 = vpop.f32.mrf.mxu0
    %v4763 = vadd.f32 %v4483, %v4762
    %v4764 = vand.u32 %v146, 4294901760
    %v4765 = vsub.f32 %v146, %v4764
    %4766 = vmatmul.f32.gmra.mxu0 %v4765
    %v4767 = vpop.f32.mrf.mxu0
    %v4768 = vadd.f32 %v4487, %v4767
    %v4769 = vand.u32 %v149, 4294901760
    %v4770 = vsub.f32 %v149, %v4769
    %4771 = vmatmul.f32.gmra.mxu0 %v4770
    %v4772 = vpop.f32.mrf.mxu0
    %v4773 = vadd.f32 %v4491, %v4772
    %v4774 = vand.u32 %v152, 4294901760
    %v4775 = vsub.f32 %v152, %v4774
    %4776 = vmatmul.f32.gmra.mxu0 %v4775
    %v4777 = vpop.f32.mrf.mxu0
    %v4778 = vadd.f32 %v4495, %v4777
    %v4779 = vand.u32 %v155, 4294901760
    %v4780 = vsub.f32 %v155, %v4779
    %4781 = vmatmul.f32.gmra.mxu0 %v4780
    %v4782 = vpop.f32.mrf.mxu0
    %v4783 = vadd.f32 %v4499, %v4782
    %v4784 = vand.u32 %v158, 4294901760
    %v4785 = vsub.f32 %v158, %v4784
    %4786 = vmatmul.f32.gmra.mxu0 %v4785
    %v4787 = vpop.f32.mrf.mxu0
    %v4788 = vadd.f32 %v4503, %v4787
    %v4789 = vand.u32 %v161, 4294901760
    %v4790 = vsub.f32 %v161, %v4789
    %4791 = vmatmul.f32.gmra.mxu0 %v4790
    %v4792 = vpop.f32.mrf.mxu0
    %v4793 = vadd.f32 %v4507, %v4792
    %v4794 = vand.u32 %v164, 4294901760
    %v4795 = vsub.f32 %v164, %v4794
    %4796 = vmatmul.f32.gmra.mxu0 %v4795
    %v4797 = vpop.f32.mrf.mxu0
    %v4798 = vadd.f32 %v4511, %v4797
    %v4799 = vand.u32 %v167, 4294901760
    %v4800 = vsub.f32 %v167, %v4799
    %4801 = vmatmul.f32.gmra.mxu0 %v4800
    %v4802 = vpop.f32.mrf.mxu0
    %v4803 = vadd.f32 %v4515, %v4802
    %v4804 = vand.u32 %v170, 4294901760
    %v4805 = vsub.f32 %v170, %v4804
    %4806 = vmatmul.f32.gmra.mxu0 %v4805
    %v4807 = vpop.f32.mrf.mxu0
    %v4808 = vadd.f32 %v4519, %v4807
    %4809 = vdwg.mxu0
    %v4810 = vand.u32 %v218, 4294901760
    %4811 = vmatpush.msra.mxu0 %v4810
    %v4812 = vand.u32 %v217, 4294901760
    %4813 = vmatpush.msra.mxu0 %v4812
    %v4814 = vand.u32 %v216, 4294901760
    %4815 = vmatpush.msra.mxu0 %v4814
    %v4816 = vand.u32 %v215, 4294901760
    %4817 = vmatpush.msra.mxu0 %v4816
    %v4818 = vand.u32 %v214, 4294901760
    %4819 = vmatpush.msra.mxu0 %v4818
    %v4820 = vand.u32 %v213, 4294901760
    %4821 = vmatpush.msra.mxu0 %v4820
    %v4822 = vand.u32 %v212, 4294901760
    %4823 = vmatpush.msra.mxu0 %v4822
    %v4824 = vand.u32 %v211, 4294901760
    %4825 = vmatpush.msra.mxu0 %v4824
    %v4826 = vand.u32 %v210, 4294901760
    %4827 = vmatpush.msra.mxu0 %v4826
    %v4828 = vand.u32 %v209, 4294901760
    %4829 = vmatpush.msra.mxu0 %v4828
    %v4830 = vand.u32 %v208, 4294901760
    %4831 = vmatpush.msra.mxu0 %v4830
    %v4832 = vand.u32 %v207, 4294901760
    %4833 = vmatpush.msra.mxu0 %v4832
    %v4834 = vand.u32 %v206, 4294901760
    %4835 = vmatpush.msra.mxu0 %v4834
    %v4836 = vand.u32 %v205, 4294901760
    %4837 = vmatpush.msra.mxu0 %v4836
    %v4838 = vand.u32 %v204, 4294901760
    %4839 = vmatpush.msra.mxu0 %v4838
    %v4840 = vand.u32 %v203, 4294901760
    %4841 = vmatpush.msra.mxu0 %v4840
    %v4842 = vand.u32 %v29, 4294901760
    %v4843 = vsub.f32 %v29, %v4842
    %v4844 = vand.u32 %v4843, 4294901760
    %4845 = vmatmul.f32.gmra.mxu0 %v4844
    %v4846 = vpop.f32.mrf.mxu0
    %v4847 = vadd.f32 %v4573, %v4846
    %v4848 = vand.u32 %v32, 4294901760
    %v4849 = vsub.f32 %v32, %v4848
    %v4850 = vand.u32 %v4849, 4294901760
    %4851 = vmatmul.f32.gmra.mxu0 %v4850
    %v4852 = vpop.f32.mrf.mxu0
    %v4853 = vadd.f32 %v4578, %v4852
    %v4854 = vand.u32 %v35, 4294901760
    %v4855 = vsub.f32 %v35, %v4854
    %v4856 = vand.u32 %v4855, 4294901760
    %4857 = vmatmul.f32.gmra.mxu0 %v4856
    %v4858 = vpop.f32.mrf.mxu0
    %v4859 = vadd.f32 %v4583, %v4858
    %v4860 = vand.u32 %v38, 4294901760
    %v4861 = vsub.f32 %v38, %v4860
    %v4862 = vand.u32 %v4861, 4294901760
    %4863 = vmatmul.f32.gmra.mxu0 %v4862
    %v4864 = vpop.f32.mrf.mxu0
    %v4865 = vadd.f32 %v4588, %v4864
    %v4866 = vand.u32 %v41, 4294901760
    %v4867 = vsub.f32 %v41, %v4866
    %v4868 = vand.u32 %v4867, 4294901760
    %4869 = vmatmul.f32.gmra.mxu0 %v4868
    %v4870 = vpop.f32.mrf.mxu0
    %v4871 = vadd.f32 %v4593, %v4870
    %v4872 = vand.u32 %v44, 4294901760
    %v4873 = vsub.f32 %v44, %v4872
    %v4874 = vand.u32 %v4873, 4294901760
    %4875 = vmatmul.f32.gmra.mxu0 %v4874
    %v4876 = vpop.f32.mrf.mxu0
    %v4877 = vadd.f32 %v4598, %v4876
    %v4878 = vand.u32 %v47, 4294901760
    %v4879 = vsub.f32 %v47, %v4878
    %v4880 = vand.u32 %v4879, 4294901760
    %4881 = vmatmul.f32.gmra.mxu0 %v4880
    %v4882 = vpop.f32.mrf.mxu0
    %v4883 = vadd.f32 %v4603, %v4882
    %v4884 = vand.u32 %v50, 4294901760
    %v4885 = vsub.f32 %v50, %v4884
    %v4886 = vand.u32 %v4885, 4294901760
    %4887 = vmatmul.f32.gmra.mxu0 %v4886
    %v4888 = vpop.f32.mrf.mxu0
    %v4889 = vadd.f32 %v4608, %v4888
    %v4890 = vand.u32 %v53, 4294901760
    %v4891 = vsub.f32 %v53, %v4890
    %v4892 = vand.u32 %v4891, 4294901760
    %4893 = vmatmul.f32.gmra.mxu0 %v4892
    %v4894 = vpop.f32.mrf.mxu0
    %v4895 = vadd.f32 %v4613, %v4894
    %v4896 = vand.u32 %v56, 4294901760
    %v4897 = vsub.f32 %v56, %v4896
    %v4898 = vand.u32 %v4897, 4294901760
    %4899 = vmatmul.f32.gmra.mxu0 %v4898
    %v4900 = vpop.f32.mrf.mxu0
    %v4901 = vadd.f32 %v4618, %v4900
    %v4902 = vand.u32 %v59, 4294901760
    %v4903 = vsub.f32 %v59, %v4902
    %v4904 = vand.u32 %v4903, 4294901760
    %4905 = vmatmul.f32.gmra.mxu0 %v4904
    %v4906 = vpop.f32.mrf.mxu0
    %v4907 = vadd.f32 %v4623, %v4906
    %v4908 = vand.u32 %v62, 4294901760
    %v4909 = vsub.f32 %v62, %v4908
    %v4910 = vand.u32 %v4909, 4294901760
    %4911 = vmatmul.f32.gmra.mxu0 %v4910
    %v4912 = vpop.f32.mrf.mxu0
    %v4913 = vadd.f32 %v4628, %v4912
    %v4914 = vand.u32 %v65, 4294901760
    %v4915 = vsub.f32 %v65, %v4914
    %v4916 = vand.u32 %v4915, 4294901760
    %4917 = vmatmul.f32.gmra.mxu0 %v4916
    %v4918 = vpop.f32.mrf.mxu0
    %v4919 = vadd.f32 %v4633, %v4918
    %v4920 = vand.u32 %v68, 4294901760
    %v4921 = vsub.f32 %v68, %v4920
    %v4922 = vand.u32 %v4921, 4294901760
    %4923 = vmatmul.f32.gmra.mxu0 %v4922
    %v4924 = vpop.f32.mrf.mxu0
    %v4925 = vadd.f32 %v4638, %v4924
    %v4926 = vand.u32 %v71, 4294901760
    %v4927 = vsub.f32 %v71, %v4926
    %v4928 = vand.u32 %v4927, 4294901760
    %4929 = vmatmul.f32.gmra.mxu0 %v4928
    %v4930 = vpop.f32.mrf.mxu0
    %v4931 = vadd.f32 %v4643, %v4930
    %v4932 = vand.u32 %v74, 4294901760
    %v4933 = vsub.f32 %v74, %v4932
    %v4934 = vand.u32 %v4933, 4294901760
    %4935 = vmatmul.f32.gmra.mxu0 %v4934
    %v4936 = vpop.f32.mrf.mxu0
    %v4937 = vadd.f32 %v4648, %v4936
    %v4938 = vand.u32 %v77, 4294901760
    %v4939 = vsub.f32 %v77, %v4938
    %v4940 = vand.u32 %v4939, 4294901760
    %4941 = vmatmul.f32.gmra.mxu0 %v4940
    %v4942 = vpop.f32.mrf.mxu0
    %v4943 = vadd.f32 %v4653, %v4942
    %v4944 = vand.u32 %v80, 4294901760
    %v4945 = vsub.f32 %v80, %v4944
    %v4946 = vand.u32 %v4945, 4294901760
    %4947 = vmatmul.f32.gmra.mxu0 %v4946
    %v4948 = vpop.f32.mrf.mxu0
    %v4949 = vadd.f32 %v4658, %v4948
    %v4950 = vand.u32 %v83, 4294901760
    %v4951 = vsub.f32 %v83, %v4950
    %v4952 = vand.u32 %v4951, 4294901760
    %4953 = vmatmul.f32.gmra.mxu0 %v4952
    %v4954 = vpop.f32.mrf.mxu0
    %v4955 = vadd.f32 %v4663, %v4954
    %v4956 = vand.u32 %v86, 4294901760
    %v4957 = vsub.f32 %v86, %v4956
    %v4958 = vand.u32 %v4957, 4294901760
    %4959 = vmatmul.f32.gmra.mxu0 %v4958
    %v4960 = vpop.f32.mrf.mxu0
    %v4961 = vadd.f32 %v4668, %v4960
    %v4962 = vand.u32 %v89, 4294901760
    %v4963 = vsub.f32 %v89, %v4962
    %v4964 = vand.u32 %v4963, 4294901760
    %4965 = vmatmul.f32.gmra.mxu0 %v4964
    %v4966 = vpop.f32.mrf.mxu0
    %v4967 = vadd.f32 %v4673, %v4966
    %v4968 = vand.u32 %v92, 4294901760
    %v4969 = vsub.f32 %v92, %v4968
    %v4970 = vand.u32 %v4969, 4294901760
    %4971 = vmatmul.f32.gmra.mxu0 %v4970
    %v4972 = vpop.f32.mrf.mxu0
    %v4973 = vadd.f32 %v4678, %v4972
    %v4974 = vand.u32 %v95, 4294901760
    %v4975 = vsub.f32 %v95, %v4974
    %v4976 = vand.u32 %v4975, 4294901760
    %4977 = vmatmul.f32.gmra.mxu0 %v4976
    %v4978 = vpop.f32.mrf.mxu0
    %v4979 = vadd.f32 %v4683, %v4978
    %v4980 = vand.u32 %v98, 4294901760
    %v4981 = vsub.f32 %v98, %v4980
    %v4982 = vand.u32 %v4981, 4294901760
    %4983 = vmatmul.f32.gmra.mxu0 %v4982
    %v4984 = vpop.f32.mrf.mxu0
    %v4985 = vadd.f32 %v4688, %v4984
    %v4986 = vand.u32 %v101, 4294901760
    %v4987 = vsub.f32 %v101, %v4986
    %v4988 = vand.u32 %v4987, 4294901760
    %4989 = vmatmul.f32.gmra.mxu0 %v4988
    %v4990 = vpop.f32.mrf.mxu0
    %v4991 = vadd.f32 %v4693, %v4990
    %v4992 = vand.u32 %v104, 4294901760
    %v4993 = vsub.f32 %v104, %v4992
    %v4994 = vand.u32 %v4993, 4294901760
    %4995 = vmatmul.f32.gmra.mxu0 %v4994
    %v4996 = vpop.f32.mrf.mxu0
    %v4997 = vadd.f32 %v4698, %v4996
    %v4998 = vand.u32 %v107, 4294901760
    %v4999 = vsub.f32 %v107, %v4998
    %v5000 = vand.u32 %v4999, 4294901760
    %5001 = vmatmul.f32.gmra.mxu0 %v5000
    %v5002 = vpop.f32.mrf.mxu0
    %v5003 = vadd.f32 %v4703, %v5002
    %v5004 = vand.u32 %v110, 4294901760
    %v5005 = vsub.f32 %v110, %v5004
    %v5006 = vand.u32 %v5005, 4294901760
    %5007 = vmatmul.f32.gmra.mxu0 %v5006
    %v5008 = vpop.f32.mrf.mxu0
    %v5009 = vadd.f32 %v4708, %v5008
    %v5010 = vand.u32 %v113, 4294901760
    %v5011 = vsub.f32 %v113, %v5010
    %v5012 = vand.u32 %v5011, 4294901760
    %5013 = vmatmul.f32.gmra.mxu0 %v5012
    %v5014 = vpop.f32.mrf.mxu0
    %v5015 = vadd.f32 %v4713, %v5014
    %v5016 = vand.u32 %v116, 4294901760
    %v5017 = vsub.f32 %v116, %v5016
    %v5018 = vand.u32 %v5017, 4294901760
    %5019 = vmatmul.f32.gmra.mxu0 %v5018
    %v5020 = vpop.f32.mrf.mxu0
    %v5021 = vadd.f32 %v4718, %v5020
    %v5022 = vand.u32 %v119, 4294901760
    %v5023 = vsub.f32 %v119, %v5022
    %v5024 = vand.u32 %v5023, 4294901760
    %5025 = vmatmul.f32.gmra.mxu0 %v5024
    %v5026 = vpop.f32.mrf.mxu0
    %v5027 = vadd.f32 %v4723, %v5026
    %v5028 = vand.u32 %v122, 4294901760
    %v5029 = vsub.f32 %v122, %v5028
    %v5030 = vand.u32 %v5029, 4294901760
    %5031 = vmatmul.f32.gmra.mxu0 %v5030
    %v5032 = vpop.f32.mrf.mxu0
    %v5033 = vadd.f32 %v4728, %v5032
    %v5034 = vand.u32 %v125, 4294901760
    %v5035 = vsub.f32 %v125, %v5034
    %v5036 = vand.u32 %v5035, 4294901760
    %5037 = vmatmul.f32.gmra.mxu0 %v5036
    %v5038 = vpop.f32.mrf.mxu0
    %v5039 = vadd.f32 %v4733, %v5038
    %v5040 = vand.u32 %v128, 4294901760
    %v5041 = vsub.f32 %v128, %v5040
    %v5042 = vand.u32 %v5041, 4294901760
    %5043 = vmatmul.f32.gmra.mxu0 %v5042
    %v5044 = vpop.f32.mrf.mxu0
    %v5045 = vadd.f32 %v4738, %v5044
    %v5046 = vand.u32 %v131, 4294901760
    %v5047 = vsub.f32 %v131, %v5046
    %v5048 = vand.u32 %v5047, 4294901760
    %5049 = vmatmul.f32.gmra.mxu0 %v5048
    %v5050 = vpop.f32.mrf.mxu0
    %v5051 = vadd.f32 %v4743, %v5050
    %v5052 = vand.u32 %v134, 4294901760
    %v5053 = vsub.f32 %v134, %v5052
    %v5054 = vand.u32 %v5053, 4294901760
    %5055 = vmatmul.f32.gmra.mxu0 %v5054
    %v5056 = vpop.f32.mrf.mxu0
    %v5057 = vadd.f32 %v4748, %v5056
    %v5058 = vand.u32 %v137, 4294901760
    %v5059 = vsub.f32 %v137, %v5058
    %v5060 = vand.u32 %v5059, 4294901760
    %5061 = vmatmul.f32.gmra.mxu0 %v5060
    %v5062 = vpop.f32.mrf.mxu0
    %v5063 = vadd.f32 %v4753, %v5062
    %v5064 = vand.u32 %v140, 4294901760
    %v5065 = vsub.f32 %v140, %v5064
    %v5066 = vand.u32 %v5065, 4294901760
    %5067 = vmatmul.f32.gmra.mxu0 %v5066
    %v5068 = vpop.f32.mrf.mxu0
    %v5069 = vadd.f32 %v4758, %v5068
    %v5070 = vand.u32 %v143, 4294901760
    %v5071 = vsub.f32 %v143, %v5070
    %v5072 = vand.u32 %v5071, 4294901760
    %5073 = vmatmul.f32.gmra.mxu0 %v5072
    %v5074 = vpop.f32.mrf.mxu0
    %v5075 = vadd.f32 %v4763, %v5074
    %v5076 = vand.u32 %v146, 4294901760
    %v5077 = vsub.f32 %v146, %v5076
    %v5078 = vand.u32 %v5077, 4294901760
    %5079 = vmatmul.f32.gmra.mxu0 %v5078
    %v5080 = vpop.f32.mrf.mxu0
    %v5081 = vadd.f32 %v4768, %v5080
    %v5082 = vand.u32 %v149, 4294901760
    %v5083 = vsub.f32 %v149, %v5082
    %v5084 = vand.u32 %v5083, 4294901760
    %5085 = vmatmul.f32.gmra.mxu0 %v5084
    %v5086 = vpop.f32.mrf.mxu0
    %v5087 = vadd.f32 %v4773, %v5086
    %v5088 = vand.u32 %v152, 4294901760
    %v5089 = vsub.f32 %v152, %v5088
    %v5090 = vand.u32 %v5089, 4294901760
    %5091 = vmatmul.f32.gmra.mxu0 %v5090
    %v5092 = vpop.f32.mrf.mxu0
    %v5093 = vadd.f32 %v4778, %v5092
    %v5094 = vand.u32 %v155, 4294901760
    %v5095 = vsub.f32 %v155, %v5094
    %v5096 = vand.u32 %v5095, 4294901760
    %5097 = vmatmul.f32.gmra.mxu0 %v5096
    %v5098 = vpop.f32.mrf.mxu0
    %v5099 = vadd.f32 %v4783, %v5098
    %v5100 = vand.u32 %v158, 4294901760
    %v5101 = vsub.f32 %v158, %v5100
    %v5102 = vand.u32 %v5101, 4294901760
    %5103 = vmatmul.f32.gmra.mxu0 %v5102
    %v5104 = vpop.f32.mrf.mxu0
    %v5105 = vadd.f32 %v4788, %v5104
    %v5106 = vand.u32 %v161, 4294901760
    %v5107 = vsub.f32 %v161, %v5106
    %v5108 = vand.u32 %v5107, 4294901760
    %5109 = vmatmul.f32.gmra.mxu0 %v5108
    %v5110 = vpop.f32.mrf.mxu0
    %v5111 = vadd.f32 %v4793, %v5110
    %v5112 = vand.u32 %v164, 4294901760
    %v5113 = vsub.f32 %v164, %v5112
    %v5114 = vand.u32 %v5113, 4294901760
    %5115 = vmatmul.f32.gmra.mxu0 %v5114
    %v5116 = vpop.f32.mrf.mxu0
    %v5117 = vadd.f32 %v4798, %v5116
    %v5118 = vand.u32 %v167, 4294901760
    %v5119 = vsub.f32 %v167, %v5118
    %v5120 = vand.u32 %v5119, 4294901760
    %5121 = vmatmul.f32.gmra.mxu0 %v5120
    %v5122 = vpop.f32.mrf.mxu0
    %v5123 = vadd.f32 %v4803, %v5122
    %v5124 = vand.u32 %v170, 4294901760
    %v5125 = vsub.f32 %v170, %v5124
    %v5126 = vand.u32 %v5125, 4294901760
    %5127 = vmatmul.f32.gmra.mxu0 %v5126
    %v5128 = vpop.f32.mrf.mxu0
    %v5129 = vadd.f32 %v4808, %v5128
    %5130 = vdwg.mxu0
    %v5131 = vand.u32 %v218, 4294901760
    %v5132 = vsub.f32 %v218, %v5131
    %v5133 = vand.u32 %v5132, 4294901760
    %5134 = vmatpush.msra.mxu0 %v5133
    %v5135 = vand.u32 %v217, 4294901760
    %v5136 = vsub.f32 %v217, %v5135
    %v5137 = vand.u32 %v5136, 4294901760
    %5138 = vmatpush.msra.mxu0 %v5137
    %v5139 = vand.u32 %v216, 4294901760
    %v5140 = vsub.f32 %v216, %v5139
    %v5141 = vand.u32 %v5140, 4294901760
    %5142 = vmatpush.msra.mxu0 %v5141
    %v5143 = vand.u32 %v215, 4294901760
    %v5144 = vsub.f32 %v215, %v5143
    %v5145 = vand.u32 %v5144, 4294901760
    %5146 = vmatpush.msra.mxu0 %v5145
    %v5147 = vand.u32 %v214, 4294901760
    %v5148 = vsub.f32 %v214, %v5147
    %v5149 = vand.u32 %v5148, 4294901760
    %5150 = vmatpush.msra.mxu0 %v5149
    %v5151 = vand.u32 %v213, 4294901760
    %v5152 = vsub.f32 %v213, %v5151
    %v5153 = vand.u32 %v5152, 4294901760
    %5154 = vmatpush.msra.mxu0 %v5153
    %v5155 = vand.u32 %v212, 4294901760
    %v5156 = vsub.f32 %v212, %v5155
    %v5157 = vand.u32 %v5156, 4294901760
    %5158 = vmatpush.msra.mxu0 %v5157
    %v5159 = vand.u32 %v211, 4294901760
    %v5160 = vsub.f32 %v211, %v5159
    %v5161 = vand.u32 %v5160, 4294901760
    %5162 = vmatpush.msra.mxu0 %v5161
    %v5163 = vand.u32 %v210, 4294901760
    %v5164 = vsub.f32 %v210, %v5163
    %v5165 = vand.u32 %v5164, 4294901760
    %5166 = vmatpush.msra.mxu0 %v5165
    %v5167 = vand.u32 %v209, 4294901760
    %v5168 = vsub.f32 %v209, %v5167
    %v5169 = vand.u32 %v5168, 4294901760
    %5170 = vmatpush.msra.mxu0 %v5169
    %v5171 = vand.u32 %v208, 4294901760
    %v5172 = vsub.f32 %v208, %v5171
    %v5173 = vand.u32 %v5172, 4294901760
    %5174 = vmatpush.msra.mxu0 %v5173
    %v5175 = vand.u32 %v207, 4294901760
    %v5176 = vsub.f32 %v207, %v5175
    %v5177 = vand.u32 %v5176, 4294901760
    %5178 = vmatpush.msra.mxu0 %v5177
    %v5179 = vand.u32 %v206, 4294901760
    %v5180 = vsub.f32 %v206, %v5179
    %v5181 = vand.u32 %v5180, 4294901760
    %5182 = vmatpush.msra.mxu0 %v5181
    %v5183 = vand.u32 %v205, 4294901760
    %v5184 = vsub.f32 %v205, %v5183
    %v5185 = vand.u32 %v5184, 4294901760
    %5186 = vmatpush.msra.mxu0 %v5185
    %v5187 = vand.u32 %v204, 4294901760
    %v5188 = vsub.f32 %v204, %v5187
    %v5189 = vand.u32 %v5188, 4294901760
    %5190 = vmatpush.msra.mxu0 %v5189
    %v5191 = vand.u32 %v203, 4294901760
    %v5192 = vsub.f32 %v203, %v5191
    %v5193 = vand.u32 %v5192, 4294901760
    %5194 = vmatpush.msra.mxu0 %v5193
    %v5195 = vand.u32 %v29, 4294901760
    %5196 = vmatmul.f32.gmra.mxu0 %v5195
    %v5197 = vpop.f32.mrf.mxu0
    %v5198 = vadd.f32 %v4847, %v5197
    %v5199 = vand.u32 %v32, 4294901760
    %5200 = vmatmul.f32.gmra.mxu0 %v5199
    %v5201 = vpop.f32.mrf.mxu0
    %v5202 = vadd.f32 %v4853, %v5201
    %v5203 = vand.u32 %v35, 4294901760
    %5204 = vmatmul.f32.gmra.mxu0 %v5203
    %v5205 = vpop.f32.mrf.mxu0
    %v5206 = vadd.f32 %v4859, %v5205
    %v5207 = vand.u32 %v38, 4294901760
    %5208 = vmatmul.f32.gmra.mxu0 %v5207
    %v5209 = vpop.f32.mrf.mxu0
    %v5210 = vadd.f32 %v4865, %v5209
    %v5211 = vand.u32 %v41, 4294901760
    %5212 = vmatmul.f32.gmra.mxu0 %v5211
    %v5213 = vpop.f32.mrf.mxu0
    %v5214 = vadd.f32 %v4871, %v5213
    %v5215 = vand.u32 %v44, 4294901760
    %5216 = vmatmul.f32.gmra.mxu0 %v5215
    %v5217 = vpop.f32.mrf.mxu0
    %v5218 = vadd.f32 %v4877, %v5217
    %v5219 = vand.u32 %v47, 4294901760
    %5220 = vmatmul.f32.gmra.mxu0 %v5219
    %v5221 = vpop.f32.mrf.mxu0
    %v5222 = vadd.f32 %v4883, %v5221
    %v5223 = vand.u32 %v50, 4294901760
    %5224 = vmatmul.f32.gmra.mxu0 %v5223
    %v5225 = vpop.f32.mrf.mxu0
    %v5226 = vadd.f32 %v4889, %v5225
    %v5227 = vand.u32 %v53, 4294901760
    %5228 = vmatmul.f32.gmra.mxu0 %v5227
    %v5229 = vpop.f32.mrf.mxu0
    %v5230 = vadd.f32 %v4895, %v5229
    %v5231 = vand.u32 %v56, 4294901760
    %5232 = vmatmul.f32.gmra.mxu0 %v5231
    %v5233 = vpop.f32.mrf.mxu0
    %v5234 = vadd.f32 %v4901, %v5233
    %v5235 = vand.u32 %v59, 4294901760
    %5236 = vmatmul.f32.gmra.mxu0 %v5235
    %v5237 = vpop.f32.mrf.mxu0
    %v5238 = vadd.f32 %v4907, %v5237
    %v5239 = vand.u32 %v62, 4294901760
    %5240 = vmatmul.f32.gmra.mxu0 %v5239
    %v5241 = vpop.f32.mrf.mxu0
    %v5242 = vadd.f32 %v4913, %v5241
    %v5243 = vand.u32 %v65, 4294901760
    %5244 = vmatmul.f32.gmra.mxu0 %v5243
    %v5245 = vpop.f32.mrf.mxu0
    %v5246 = vadd.f32 %v4919, %v5245
    %v5247 = vand.u32 %v68, 4294901760
    %5248 = vmatmul.f32.gmra.mxu0 %v5247
    %v5249 = vpop.f32.mrf.mxu0
    %v5250 = vadd.f32 %v4925, %v5249
    %v5251 = vand.u32 %v71, 4294901760
    %5252 = vmatmul.f32.gmra.mxu0 %v5251
    %v5253 = vpop.f32.mrf.mxu0
    %v5254 = vadd.f32 %v4931, %v5253
    %v5255 = vand.u32 %v74, 4294901760
    %5256 = vmatmul.f32.gmra.mxu0 %v5255
    %v5257 = vpop.f32.mrf.mxu0
    %v5258 = vadd.f32 %v4937, %v5257
    %v5259 = vand.u32 %v77, 4294901760
    %5260 = vmatmul.f32.gmra.mxu0 %v5259
    %v5261 = vpop.f32.mrf.mxu0
    %v5262 = vadd.f32 %v4943, %v5261
    %v5263 = vand.u32 %v80, 4294901760
    %5264 = vmatmul.f32.gmra.mxu0 %v5263
    %v5265 = vpop.f32.mrf.mxu0
    %v5266 = vadd.f32 %v4949, %v5265
    %v5267 = vand.u32 %v83, 4294901760
    %5268 = vmatmul.f32.gmra.mxu0 %v5267
    %v5269 = vpop.f32.mrf.mxu0
    %v5270 = vadd.f32 %v4955, %v5269
    %v5271 = vand.u32 %v86, 4294901760
    %5272 = vmatmul.f32.gmra.mxu0 %v5271
    %v5273 = vpop.f32.mrf.mxu0
    %v5274 = vadd.f32 %v4961, %v5273
    %v5275 = vand.u32 %v89, 4294901760
    %5276 = vmatmul.f32.gmra.mxu0 %v5275
    %v5277 = vpop.f32.mrf.mxu0
    %v5278 = vadd.f32 %v4967, %v5277
    %v5279 = vand.u32 %v92, 4294901760
    %5280 = vmatmul.f32.gmra.mxu0 %v5279
    %v5281 = vpop.f32.mrf.mxu0
    %v5282 = vadd.f32 %v4973, %v5281
    %v5283 = vand.u32 %v95, 4294901760
    %5284 = vmatmul.f32.gmra.mxu0 %v5283
    %v5285 = vpop.f32.mrf.mxu0
    %v5286 = vadd.f32 %v4979, %v5285
    %v5287 = vand.u32 %v98, 4294901760
    %5288 = vmatmul.f32.gmra.mxu0 %v5287
    %v5289 = vpop.f32.mrf.mxu0
    %v5290 = vadd.f32 %v4985, %v5289
    %v5291 = vand.u32 %v101, 4294901760
    %5292 = vmatmul.f32.gmra.mxu0 %v5291
    %v5293 = vpop.f32.mrf.mxu0
    %v5294 = vadd.f32 %v4991, %v5293
    %v5295 = vand.u32 %v104, 4294901760
    %5296 = vmatmul.f32.gmra.mxu0 %v5295
    %v5297 = vpop.f32.mrf.mxu0
    %v5298 = vadd.f32 %v4997, %v5297
    %v5299 = vand.u32 %v107, 4294901760
    %5300 = vmatmul.f32.gmra.mxu0 %v5299
    %v5301 = vpop.f32.mrf.mxu0
    %v5302 = vadd.f32 %v5003, %v5301
    %v5303 = vand.u32 %v110, 4294901760
    %5304 = vmatmul.f32.gmra.mxu0 %v5303
    %v5305 = vpop.f32.mrf.mxu0
    %v5306 = vadd.f32 %v5009, %v5305
    %v5307 = vand.u32 %v113, 4294901760
    %5308 = vmatmul.f32.gmra.mxu0 %v5307
    %v5309 = vpop.f32.mrf.mxu0
    %v5310 = vadd.f32 %v5015, %v5309
    %v5311 = vand.u32 %v116, 4294901760
    %5312 = vmatmul.f32.gmra.mxu0 %v5311
    %v5313 = vpop.f32.mrf.mxu0
    %v5314 = vadd.f32 %v5021, %v5313
    %v5315 = vand.u32 %v119, 4294901760
    %5316 = vmatmul.f32.gmra.mxu0 %v5315
    %v5317 = vpop.f32.mrf.mxu0
    %v5318 = vadd.f32 %v5027, %v5317
    %v5319 = vand.u32 %v122, 4294901760
    %5320 = vmatmul.f32.gmra.mxu0 %v5319
    %v5321 = vpop.f32.mrf.mxu0
    %v5322 = vadd.f32 %v5033, %v5321
    %v5323 = vand.u32 %v125, 4294901760
    %5324 = vmatmul.f32.gmra.mxu0 %v5323
    %v5325 = vpop.f32.mrf.mxu0
    %v5326 = vadd.f32 %v5039, %v5325
    %v5327 = vand.u32 %v128, 4294901760
    %5328 = vmatmul.f32.gmra.mxu0 %v5327
    %v5329 = vpop.f32.mrf.mxu0
    %v5330 = vadd.f32 %v5045, %v5329
    %v5331 = vand.u32 %v131, 4294901760
    %5332 = vmatmul.f32.gmra.mxu0 %v5331
    %v5333 = vpop.f32.mrf.mxu0
    %v5334 = vadd.f32 %v5051, %v5333
    %v5335 = vand.u32 %v134, 4294901760
    %5336 = vmatmul.f32.gmra.mxu0 %v5335
    %v5337 = vpop.f32.mrf.mxu0
    %v5338 = vadd.f32 %v5057, %v5337
    %v5339 = vand.u32 %v137, 4294901760
    %5340 = vmatmul.f32.gmra.mxu0 %v5339
    %v5341 = vpop.f32.mrf.mxu0
    %v5342 = vadd.f32 %v5063, %v5341
    %v5343 = vand.u32 %v140, 4294901760
    %5344 = vmatmul.f32.gmra.mxu0 %v5343
    %v5345 = vpop.f32.mrf.mxu0
    %v5346 = vadd.f32 %v5069, %v5345
    %v5347 = vand.u32 %v143, 4294901760
    %5348 = vmatmul.f32.gmra.mxu0 %v5347
    %v5349 = vpop.f32.mrf.mxu0
    %v5350 = vadd.f32 %v5075, %v5349
    %v5351 = vand.u32 %v146, 4294901760
    %5352 = vmatmul.f32.gmra.mxu0 %v5351
    %v5353 = vpop.f32.mrf.mxu0
    %v5354 = vadd.f32 %v5081, %v5353
    %v5355 = vand.u32 %v149, 4294901760
    %5356 = vmatmul.f32.gmra.mxu0 %v5355
    %v5357 = vpop.f32.mrf.mxu0
    %v5358 = vadd.f32 %v5087, %v5357
    %v5359 = vand.u32 %v152, 4294901760
    %5360 = vmatmul.f32.gmra.mxu0 %v5359
    %v5361 = vpop.f32.mrf.mxu0
    %v5362 = vadd.f32 %v5093, %v5361
    %v5363 = vand.u32 %v155, 4294901760
    %5364 = vmatmul.f32.gmra.mxu0 %v5363
    %v5365 = vpop.f32.mrf.mxu0
    %v5366 = vadd.f32 %v5099, %v5365
    %v5367 = vand.u32 %v158, 4294901760
    %5368 = vmatmul.f32.gmra.mxu0 %v5367
    %v5369 = vpop.f32.mrf.mxu0
    %v5370 = vadd.f32 %v5105, %v5369
    %v5371 = vand.u32 %v161, 4294901760
    %5372 = vmatmul.f32.gmra.mxu0 %v5371
    %v5373 = vpop.f32.mrf.mxu0
    %v5374 = vadd.f32 %v5111, %v5373
    %v5375 = vand.u32 %v164, 4294901760
    %5376 = vmatmul.f32.gmra.mxu0 %v5375
    %v5377 = vpop.f32.mrf.mxu0
    %v5378 = vadd.f32 %v5117, %v5377
    %v5379 = vand.u32 %v167, 4294901760
    %5380 = vmatmul.f32.gmra.mxu0 %v5379
    %v5381 = vpop.f32.mrf.mxu0
    %v5382 = vadd.f32 %v5123, %v5381
    %v5383 = vand.u32 %v170, 4294901760
    %5384 = vmatmul.f32.gmra.mxu0 %v5383
    %v5385 = vpop.f32.mrf.mxu0
    %v5386 = vadd.f32 %v5129, %v5385
    %5387 = vdwg.mxu0
    %v5388 = vand.u32 %v218, 4294901760
    %5389 = vmatpush.msra.mxu0 %v5388
    %v5390 = vand.u32 %v217, 4294901760
    %5391 = vmatpush.msra.mxu0 %v5390
    %v5392 = vand.u32 %v216, 4294901760
    %5393 = vmatpush.msra.mxu0 %v5392
    %v5394 = vand.u32 %v215, 4294901760
    %5395 = vmatpush.msra.mxu0 %v5394
    %v5396 = vand.u32 %v214, 4294901760
    %5397 = vmatpush.msra.mxu0 %v5396
    %v5398 = vand.u32 %v213, 4294901760
    %5399 = vmatpush.msra.mxu0 %v5398
    %v5400 = vand.u32 %v212, 4294901760
    %5401 = vmatpush.msra.mxu0 %v5400
    %v5402 = vand.u32 %v211, 4294901760
    %5403 = vmatpush.msra.mxu0 %v5402
    %v5404 = vand.u32 %v210, 4294901760
    %5405 = vmatpush.msra.mxu0 %v5404
    %v5406 = vand.u32 %v209, 4294901760
    %5407 = vmatpush.msra.mxu0 %v5406
    %v5408 = vand.u32 %v208, 4294901760
    %5409 = vmatpush.msra.mxu0 %v5408
    %v5410 = vand.u32 %v207, 4294901760
    %5411 = vmatpush.msra.mxu0 %v5410
    %v5412 = vand.u32 %v206, 4294901760
    %5413 = vmatpush.msra.mxu0 %v5412
    %v5414 = vand.u32 %v205, 4294901760
    %5415 = vmatpush.msra.mxu0 %v5414
    %v5416 = vand.u32 %v204, 4294901760
    %5417 = vmatpush.msra.mxu0 %v5416
    %v5418 = vand.u32 %v203, 4294901760
    %5419 = vmatpush.msra.mxu0 %v5418
    %v5420 = vand.u32 %v29, 4294901760
    %5421 = vmatmul.f32.gmra.mxu0 %v5420
    %v5422 = vpop.f32.mrf.mxu0
    %v5423 = vadd.f32 %v5198, %v5422
    %v5424 = vand.u32 %v32, 4294901760
    %5425 = vmatmul.f32.gmra.mxu0 %v5424
    %v5426 = vpop.f32.mrf.mxu0
    %v5427 = vadd.f32 %v5202, %v5426
    %v5428 = vand.u32 %v35, 4294901760
    %5429 = vmatmul.f32.gmra.mxu0 %v5428
    %v5430 = vpop.f32.mrf.mxu0
    %v5431 = vadd.f32 %v5206, %v5430
    %v5432 = vand.u32 %v38, 4294901760
    %5433 = vmatmul.f32.gmra.mxu0 %v5432
    %v5434 = vpop.f32.mrf.mxu0
    %v5435 = vadd.f32 %v5210, %v5434
    %v5436 = vand.u32 %v41, 4294901760
    %5437 = vmatmul.f32.gmra.mxu0 %v5436
    %v5438 = vpop.f32.mrf.mxu0
    %v5439 = vadd.f32 %v5214, %v5438
    %v5440 = vand.u32 %v44, 4294901760
    %5441 = vmatmul.f32.gmra.mxu0 %v5440
    %v5442 = vpop.f32.mrf.mxu0
    %v5443 = vadd.f32 %v5218, %v5442
    %v5444 = vand.u32 %v47, 4294901760
    %5445 = vmatmul.f32.gmra.mxu0 %v5444
    %v5446 = vpop.f32.mrf.mxu0
    %v5447 = vadd.f32 %v5222, %v5446
    %v5448 = vand.u32 %v50, 4294901760
    %5449 = vmatmul.f32.gmra.mxu0 %v5448
    %v5450 = vpop.f32.mrf.mxu0
    %v5451 = vadd.f32 %v5226, %v5450
    %v5452 = vand.u32 %v53, 4294901760
    %5453 = vmatmul.f32.gmra.mxu0 %v5452
    %v5454 = vpop.f32.mrf.mxu0
    %v5455 = vadd.f32 %v5230, %v5454
    %v5456 = vand.u32 %v56, 4294901760
    %5457 = vmatmul.f32.gmra.mxu0 %v5456
    %v5458 = vpop.f32.mrf.mxu0
    %v5459 = vadd.f32 %v5234, %v5458
    %v5460 = vand.u32 %v59, 4294901760
    %5461 = vmatmul.f32.gmra.mxu0 %v5460
    %v5462 = vpop.f32.mrf.mxu0
    %v5463 = vadd.f32 %v5238, %v5462
    %v5464 = vand.u32 %v62, 4294901760
    %5465 = vmatmul.f32.gmra.mxu0 %v5464
    %v5466 = vpop.f32.mrf.mxu0
    %v5467 = vadd.f32 %v5242, %v5466
    %v5468 = vand.u32 %v65, 4294901760
    %5469 = vmatmul.f32.gmra.mxu0 %v5468
    %v5470 = vpop.f32.mrf.mxu0
    %v5471 = vadd.f32 %v5246, %v5470
    %v5472 = vand.u32 %v68, 4294901760
    %5473 = vmatmul.f32.gmra.mxu0 %v5472
    %v5474 = vpop.f32.mrf.mxu0
    %v5475 = vadd.f32 %v5250, %v5474
    %v5476 = vand.u32 %v71, 4294901760
    %5477 = vmatmul.f32.gmra.mxu0 %v5476
    %v5478 = vpop.f32.mrf.mxu0
    %v5479 = vadd.f32 %v5254, %v5478
    %v5480 = vand.u32 %v74, 4294901760
    %5481 = vmatmul.f32.gmra.mxu0 %v5480
    %v5482 = vpop.f32.mrf.mxu0
    %v5483 = vadd.f32 %v5258, %v5482
    %v5484 = vand.u32 %v77, 4294901760
    %5485 = vmatmul.f32.gmra.mxu0 %v5484
    %v5486 = vpop.f32.mrf.mxu0
    %v5487 = vadd.f32 %v5262, %v5486
    %v5488 = vand.u32 %v80, 4294901760
    %5489 = vmatmul.f32.gmra.mxu0 %v5488
    %v5490 = vpop.f32.mrf.mxu0
    %v5491 = vadd.f32 %v5266, %v5490
    %v5492 = vand.u32 %v83, 4294901760
    %5493 = vmatmul.f32.gmra.mxu0 %v5492
    %v5494 = vpop.f32.mrf.mxu0
    %v5495 = vadd.f32 %v5270, %v5494
    %v5496 = vand.u32 %v86, 4294901760
    %5497 = vmatmul.f32.gmra.mxu0 %v5496
    %v5498 = vpop.f32.mrf.mxu0
    %v5499 = vadd.f32 %v5274, %v5498
    %v5500 = vand.u32 %v89, 4294901760
    %5501 = vmatmul.f32.gmra.mxu0 %v5500
    %v5502 = vpop.f32.mrf.mxu0
    %v5503 = vadd.f32 %v5278, %v5502
    %v5504 = vand.u32 %v92, 4294901760
    %5505 = vmatmul.f32.gmra.mxu0 %v5504
    %v5506 = vpop.f32.mrf.mxu0
    %v5507 = vadd.f32 %v5282, %v5506
    %v5508 = vand.u32 %v95, 4294901760
    %5509 = vmatmul.f32.gmra.mxu0 %v5508
    %v5510 = vpop.f32.mrf.mxu0
    %v5511 = vadd.f32 %v5286, %v5510
    %v5512 = vand.u32 %v98, 4294901760
    %5513 = vmatmul.f32.gmra.mxu0 %v5512
    %v5514 = vpop.f32.mrf.mxu0
    %v5515 = vadd.f32 %v5290, %v5514
    %v5516 = vand.u32 %v101, 4294901760
    %5517 = vmatmul.f32.gmra.mxu0 %v5516
    %v5518 = vpop.f32.mrf.mxu0
    %v5519 = vadd.f32 %v5294, %v5518
    %v5520 = vand.u32 %v104, 4294901760
    %5521 = vmatmul.f32.gmra.mxu0 %v5520
    %v5522 = vpop.f32.mrf.mxu0
    %v5523 = vadd.f32 %v5298, %v5522
    %v5524 = vand.u32 %v107, 4294901760
    %5525 = vmatmul.f32.gmra.mxu0 %v5524
    %v5526 = vpop.f32.mrf.mxu0
    %v5527 = vadd.f32 %v5302, %v5526
    %v5528 = vand.u32 %v110, 4294901760
    %5529 = vmatmul.f32.gmra.mxu0 %v5528
    %v5530 = vpop.f32.mrf.mxu0
    %v5531 = vadd.f32 %v5306, %v5530
    %v5532 = vand.u32 %v113, 4294901760
    %5533 = vmatmul.f32.gmra.mxu0 %v5532
    %v5534 = vpop.f32.mrf.mxu0
    %v5535 = vadd.f32 %v5310, %v5534
    %v5536 = vand.u32 %v116, 4294901760
    %5537 = vmatmul.f32.gmra.mxu0 %v5536
    %v5538 = vpop.f32.mrf.mxu0
    %v5539 = vadd.f32 %v5314, %v5538
    %v5540 = vand.u32 %v119, 4294901760
    %5541 = vmatmul.f32.gmra.mxu0 %v5540
    %v5542 = vpop.f32.mrf.mxu0
    %v5543 = vadd.f32 %v5318, %v5542
    %v5544 = vand.u32 %v122, 4294901760
    %5545 = vmatmul.f32.gmra.mxu0 %v5544
    %v5546 = vpop.f32.mrf.mxu0
    %v5547 = vadd.f32 %v5322, %v5546
    %v5548 = vand.u32 %v125, 4294901760
    %5549 = vmatmul.f32.gmra.mxu0 %v5548
    %v5550 = vpop.f32.mrf.mxu0
    %v5551 = vadd.f32 %v5326, %v5550
    %v5552 = vand.u32 %v128, 4294901760
    %5553 = vmatmul.f32.gmra.mxu0 %v5552
    %v5554 = vpop.f32.mrf.mxu0
    %v5555 = vadd.f32 %v5330, %v5554
    %v5556 = vand.u32 %v131, 4294901760
    %5557 = vmatmul.f32.gmra.mxu0 %v5556
    %v5558 = vpop.f32.mrf.mxu0
    %v5559 = vadd.f32 %v5334, %v5558
    %v5560 = vand.u32 %v134, 4294901760
    %5561 = vmatmul.f32.gmra.mxu0 %v5560
    %v5562 = vpop.f32.mrf.mxu0
    %v5563 = vadd.f32 %v5338, %v5562
    %v5564 = vand.u32 %v137, 4294901760
    %5565 = vmatmul.f32.gmra.mxu0 %v5564
    %v5566 = vpop.f32.mrf.mxu0
    %v5567 = vadd.f32 %v5342, %v5566
    %v5568 = vand.u32 %v140, 4294901760
    %5569 = vmatmul.f32.gmra.mxu0 %v5568
    %v5570 = vpop.f32.mrf.mxu0
    %v5571 = vadd.f32 %v5346, %v5570
    %v5572 = vand.u32 %v143, 4294901760
    %5573 = vmatmul.f32.gmra.mxu0 %v5572
    %v5574 = vpop.f32.mrf.mxu0
    %v5575 = vadd.f32 %v5350, %v5574
    %v5576 = vand.u32 %v146, 4294901760
    %5577 = vmatmul.f32.gmra.mxu0 %v5576
    %v5578 = vpop.f32.mrf.mxu0
    %v5579 = vadd.f32 %v5354, %v5578
    %v5580 = vand.u32 %v149, 4294901760
    %5581 = vmatmul.f32.gmra.mxu0 %v5580
    %v5582 = vpop.f32.mrf.mxu0
    %v5583 = vadd.f32 %v5358, %v5582
    %v5584 = vand.u32 %v152, 4294901760
    %5585 = vmatmul.f32.gmra.mxu0 %v5584
    %v5586 = vpop.f32.mrf.mxu0
    %v5587 = vadd.f32 %v5362, %v5586
    %v5588 = vand.u32 %v155, 4294901760
    %5589 = vmatmul.f32.gmra.mxu0 %v5588
    %v5590 = vpop.f32.mrf.mxu0
    %v5591 = vadd.f32 %v5366, %v5590
    %v5592 = vand.u32 %v158, 4294901760
    %5593 = vmatmul.f32.gmra.mxu0 %v5592
    %v5594 = vpop.f32.mrf.mxu0
    %v5595 = vadd.f32 %v5370, %v5594
    %v5596 = vand.u32 %v161, 4294901760
    %5597 = vmatmul.f32.gmra.mxu0 %v5596
    %v5598 = vpop.f32.mrf.mxu0
    %v5599 = vadd.f32 %v5374, %v5598
    %v5600 = vand.u32 %v164, 4294901760
    %5601 = vmatmul.f32.gmra.mxu0 %v5600
    %v5602 = vpop.f32.mrf.mxu0
    %v5603 = vadd.f32 %v5378, %v5602
    %v5604 = vand.u32 %v167, 4294901760
    %5605 = vmatmul.f32.gmra.mxu0 %v5604
    %v5606 = vpop.f32.mrf.mxu0
    %v5607 = vadd.f32 %v5382, %v5606
    %v5608 = vand.u32 %v170, 4294901760
    %5609 = vmatmul.f32.gmra.mxu0 %v5608
    %v5610 = vpop.f32.mrf.mxu0
    %v5611 = vadd.f32 %v5386, %v5610
    %5612 = vdwg.mxu0
    %vm5613 = vcmask 400384
    %5614 = vst.msk [vmem:[%s2] sm:$0xff] %vm5613, %v5423
    %5615 = vst.msk [vmem:[%s2 + $0x8] sm:$0xff] %vm5613, %v5427
    %5616 = vst.msk [vmem:[%s2 + $0x10] sm:$0xff] %vm5613, %v5431
    %5617 = vst.msk [vmem:[%s2 + $0x18] sm:$0xff] %vm5613, %v5435
    %5618 = vst.msk [vmem:[%s2 + $0x20] sm:$0xff] %vm5613, %v5439
    %5619 = vst.msk [vmem:[%s2 + $0x28] sm:$0xff] %vm5613, %v5443
    %5620 = vst.msk [vmem:[%s2 + $0x30] sm:$0xff] %vm5613, %v5447
    %5621 = vst.msk [vmem:[%s2 + $0x38] sm:$0xff] %vm5613, %v5451
    %5622 = vst.msk [vmem:[%s2 + $0x40] sm:$0xff] %vm5613, %v5455
    %5623 = vst.msk [vmem:[%s2 + $0x48] sm:$0xff] %vm5613, %v5459
    %5624 = vst.msk [vmem:[%s2 + $0x50] sm:$0xff] %vm5613, %v5463
    %5625 = vst.msk [vmem:[%s2 + $0x58] sm:$0xff] %vm5613, %v5467
    %5626 = vst.msk [vmem:[%s2 + $0x60] sm:$0xff] %vm5613, %v5471
    %5627 = vst.msk [vmem:[%s2 + $0x68] sm:$0xff] %vm5613, %v5475
    %5628 = vst.msk [vmem:[%s2 + $0x70] sm:$0xff] %vm5613, %v5479
    %5629 = vst.msk [vmem:[%s2 + $0x78] sm:$0xff] %vm5613, %v5483
    %5630 = vst.msk [vmem:[%s2 + $0x80] sm:$0xff] %vm5613, %v5487
    %5631 = vst.msk [vmem:[%s2 + $0x88] sm:$0xff] %vm5613, %v5491
    %5632 = vst.msk [vmem:[%s2 + $0x90] sm:$0xff] %vm5613, %v5495
    %5633 = vst.msk [vmem:[%s2 + $0x98] sm:$0xff] %vm5613, %v5499
    %5634 = vst.msk [vmem:[%s2 + $0xa0] sm:$0xff] %vm5613, %v5503
    %5635 = vst.msk [vmem:[%s2 + $0xa8] sm:$0xff] %vm5613, %v5507
    %5636 = vst.msk [vmem:[%s2 + $0xb0] sm:$0xff] %vm5613, %v5511
    %5637 = vst.msk [vmem:[%s2 + $0xb8] sm:$0xff] %vm5613, %v5515
    %5638 = vst.msk [vmem:[%s2 + $0xc0] sm:$0xff] %vm5613, %v5519
    %5639 = vst.msk [vmem:[%s2 + $0xc8] sm:$0xff] %vm5613, %v5523
    %5640 = vst.msk [vmem:[%s2 + $0xd0] sm:$0xff] %vm5613, %v5527
    %5641 = vst.msk [vmem:[%s2 + $0xd8] sm:$0xff] %vm5613, %v5531
    %5642 = vst.msk [vmem:[%s2 + $0xe0] sm:$0xff] %vm5613, %v5535
    %5643 = vst.msk [vmem:[%s2 + $0xe8] sm:$0xff] %vm5613, %v5539
    %5644 = vst.msk [vmem:[%s2 + $0xf0] sm:$0xff] %vm5613, %v5543
    %5645 = vst.msk [vmem:[%s2 + $0xf8] sm:$0xff] %vm5613, %v5547
    %5646 = vst.msk [vmem:[%s2 + $0x100] sm:$0xff] %vm5613, %v5551
    %5647 = vst.msk [vmem:[%s2 + $0x108] sm:$0xff] %vm5613, %v5555
    %5648 = vst.msk [vmem:[%s2 + $0x110] sm:$0xff] %vm5613, %v5559
    %5649 = vst.msk [vmem:[%s2 + $0x118] sm:$0xff] %vm5613, %v5563
    %5650 = vst.msk [vmem:[%s2 + $0x120] sm:$0xff] %vm5613, %v5567
    %5651 = vst.msk [vmem:[%s2 + $0x128] sm:$0xff] %vm5613, %v5571
    %5652 = vst.msk [vmem:[%s2 + $0x130] sm:$0xff] %vm5613, %v5575
    %5653 = vst.msk [vmem:[%s2 + $0x138] sm:$0xff] %vm5613, %v5579
    %5654 = vst.msk [vmem:[%s2 + $0x140] sm:$0xff] %vm5613, %v5583
    %5655 = vst.msk [vmem:[%s2 + $0x148] sm:$0xff] %vm5613, %v5587
    %5656 = vst.msk [vmem:[%s2 + $0x150] sm:$0xff] %vm5613, %v5591
    %5657 = vst.msk [vmem:[%s2 + $0x158] sm:$0xff] %vm5613, %v5595
    %5658 = vst.msk [vmem:[%s2 + $0x160] sm:$0xff] %vm5613, %v5599
    %5659 = vst.msk [vmem:[%s2 + $0x168] sm:$0xff] %vm5613, %v5603
    %5660 = vst.msk [vmem:[%s2 + $0x170] sm:$0xff] %vm5613, %v5607
    %5661 = vst.msk [vmem:[%s2 + $0x178] sm:$0xff] %vm5613, %v5611
    // Predicated region
    $region14: #{tpu_custom_call.1} parent=1 // pred_check
      _
    $region15: #{tpu_custom_call.1} parent=1 // pred_check_branch
      %5663 = sbr.rel (0) target = $region17
    $region16: #{tpu_custom_call.1} parent=1 // pred_region
      _
    $region17: #{tpu_custom_call.1} parent=1 // pred_fallthru
      _
    // Predicated region
    $region18: #{tpu_custom_call.1} parent=1 // pred_check
      _
    $region19: #{tpu_custom_call.1} parent=1 // pred_check_branch
      %5665 = sbr.rel (0) target = $region21
    $region20: #{tpu_custom_call.1} parent=1 // pred_region
      _
    $region21: #{tpu_custom_call.1} parent=1 // pred_fallthru
      _
    %5666 = vsyncpa [#allocation3], 1

</llo_original>
